<compile_context>
chip_gen: v5e
topology: v5e:2x2
jax: 0.10.0
libtpu: 0.0.40
codegen_flags: <defaults>
</compile_context>

<pallas_src>
import math

import jax
import jax.numpy as jnp
from jax import lax
from jax.experimental import pallas as pl
from jax.experimental.pallas import tpu as pltpu

K = 3
PAD = 1
KK = K * K        # module defaults: kernel_size=3, stride=1, padding=1


def _make_kernel(H, W, Cin, tile_h, hp_r, wp, tap_group, fold_mask):
    tile_n = tile_h * W

    def kernel(xflat_ref, xp_ref, rc_ref, w_om_ref, b_om_ref,
               w_main_ref, b_main_ref, o_ref, col_ref):
        # xflat_ref : (1, Cin*hp_r, Wp)  bf16   flattened padded image (sampling LHS)
        # xp_ref    : (1, Cin, hp_r, Wp) bf16   padded image (offset-conv slab)
        # rc_ref    : (2, tile_n)        f32    global (row, col) ids of this tile
        # w_om_ref  : (3KK, KK*Cin)      bf16   fused offset+modulator weights
        # b_om_ref  : (3KK, 1)           f32
        # w_main_ref: (Cout, KK*Cin)     bf16
        # b_main_ref: (Cout, 1)          f32
        # o_ref     : (1, Cout, tile_n)  f32
        # col_ref   : (KK*Cin, tile_n)   bf16   shared im2col / sample scratch
        t = pl.program_id(1)
        row0 = t * tile_h
        if tile_h % 8 == 0:
            row0 = pl.multiple_of(row0, 8)

        # ---- phase 1: fused offset + modulator 3x3 conv (single deep-K dot) --
        slab = xp_ref[0, :, pl.ds(row0, tile_h + 2 * PAD), :]  # (Cin, th+2, Wp)
        for p in range(KK):
            i, j = p // K, p % K
            col_ref[p * Cin:(p + 1) * Cin, :] = (
                slab[:, i:i + tile_h, j:j + W].reshape(Cin, tile_n))
        om = jnp.dot(w_om_ref[...], col_ref[...],
                     preferred_element_type=jnp.float32) + b_om_ref[...]
        off = om[:2 * KK]                               # (2KK, tile_n) f32
        mask = 2.0 * jax.nn.sigmoid(om[2 * KK:])        # (KK,  tile_n) f32

        # ---- phase 2: deformable bilinear sampling (grouped one-hot matmuls) -
        out_h = rc_ref[0:1, :]                          # (1, tile_n) f32, global row
        out_w = rc_ref[1:2, :]                          # (1, tile_n) f32, global col
        x_rows = xflat_ref[0]                           # (Cin*hp_r, Wp) bf16, no reshape
        r_iota = lax.broadcasted_iota(jnp.int32, (hp_r, tile_n), 0)
        c_iota = lax.broadcasted_iota(jnp.int32, (wp, tile_n), 0)

        for p0 in range(0, KK, tap_group):
            taps = list(range(p0, min(p0 + tap_group, KK)))
            cxs, rys = [], []
            for p in taps:
                i, j = p // K, p % K
                dy = off[2 * p:2 * p + 1]               # torchvision channel order
                dx = off[2 * p + 1:2 * p + 2]
                py = out_h - PAD + i + dy               # stride == 1
                px = out_w - PAD + j + dx
                y0 = jnp.floor(py)
                x0 = jnp.floor(px)
                ly = py - y0
                lx = px - x0
                # Out-of-range corners land on the zero pad ring or miss the
                # iota entirely -> contribute 0 (torchvision border rule);
                # the clip only keeps the int32 cast sane for huge offsets.
                y0i = jnp.clip(y0, -PAD - 1.0, H + 1.0 * PAD).astype(jnp.int32) + PAD
                x0i = jnp.clip(x0, -PAD - 1.0, W + 1.0 * PAD).astype(jnp.int32) + PAD
                ry = (jnp.where(r_iota == y0i, 1.0 - ly, 0.0)
                      + jnp.where(r_iota == y0i + 1, ly, 0.0))    # (hp_r, tile_n)
                cx = (jnp.where(c_iota == x0i, 1.0 - lx, 0.0)
                      + jnp.where(c_iota == x0i + 1, lx, 0.0))    # (wp,  tile_n)
                if fold_mask:
                    cx = cx * mask[p:p + 1]             # fold modulator into CX
                cxs.append(cx)
                rys.append(ry)
            cx_cat = jnp.concatenate(cxs, axis=1) if len(taps) > 1 else cxs[0]
            ry_cat = jnp.concatenate(rys, axis=1) if len(taps) > 1 else rys[0]
            a = jnp.dot(x_rows, cx_cat.astype(x_rows.dtype),
                        preferred_element_type=jnp.float32)  # (Cin*hp_r, G*tile_n)
            samp = jnp.sum(a.reshape(Cin, hp_r, len(taps) * tile_n)
                           * ry_cat[None, :, :], axis=1)     # (Cin, G*tile_n)
            for gi, p in enumerate(taps):
                chunk = samp[:, gi * tile_n:(gi + 1) * tile_n]
                if not fold_mask:
                    chunk = chunk * mask[p:p + 1]
                col_ref[p * Cin:(p + 1) * Cin, :] = chunk.astype(col_ref.dtype)

        # ---- phase 3: single deep-K output projection + bias -----------------
        o_ref[0] = jnp.dot(w_main_ref[...], col_ref[...],
                           preferred_element_type=jnp.float32) + b_main_ref[...]

    return kernel


def deformable_conv2d(x, w_off, b_off, w_mod, b_mod, weight, bias,
                      *, tile_rows=None, tap_group=3, fold_mask=None):
    B, Cin, H, W = x.shape
    Cout = weight.shape[0]
    N = H * W
    Hp, Wp = H + 2 * PAD, W + 2 * PAD
    # Round padded rows up to a multiple of 8 so in-kernel (Cin*Hp_r, n) <->
    # (Cin, Hp_r, n) reshapes of the f32 sampling temp are tile-aligned views.
    # Extra rows are zero and never contribute to the bilinear sample.
    Hp_r = ((Hp + 7) // 8) * 8

    # Whole-output-row tiles; keep tile_rows*W a multiple of 128 (lane-dense).
    base = 128 // math.gcd(128, W)
    if tile_rows is None:
        target_lanes = 512
        tile_rows = base * max(1, target_lanes // (base * W))
    tile_rows = int(min(H, max(base, tile_rows)))
    if H % tile_rows != 0 or (tile_rows * W) % 128 != 0:
        tile_rows = H          # safe fallback (see TODO at top for the padded path)
    TILE_N = tile_rows * W
    num_tiles = H // tile_rows

    tap_group = max(1, min(int(tap_group), KK))
    if fold_mask is None:
        fold_mask = Cin >= Wp  # folding modulator into CX only wins when Cin >= Wp

    # Host-side prep: pad once, pre-flatten the sampling operand, bf16 MXU
    # operands, f32 biases.
    xp = jnp.pad(x, ((0, 0), (0, 0), (PAD, PAD + (Hp_r - Hp)), (PAD, PAD))
                 ).astype(jnp.bfloat16)                       # (B, Cin, Hp_r, Wp)
    xflat = xp.reshape(B, Cin * Hp_r, Wp)                     # flattened once on host

    # Column order of every weight matrix: tap p = i*K + j major, cin minor.
    w_om = jnp.concatenate(
        [jnp.transpose(w_off, (0, 2, 3, 1)).reshape(2 * KK, KK * Cin),
         jnp.transpose(w_mod, (0, 2, 3, 1)).reshape(KK, KK * Cin)],
        axis=0).astype(jnp.bfloat16)                          # (3KK, KK*Cin)
    b_om = jnp.concatenate([b_off, b_mod]).reshape(-1, 1).astype(jnp.float32)
    w_main = jnp.transpose(weight, (0, 2, 3, 1)).reshape(
        Cout, KK * Cin).astype(jnp.bfloat16)
    b_main = bias.reshape(-1, 1).astype(jnp.float32)

    flat = jnp.arange(N, dtype=jnp.int32)
    rc = jnp.stack([(flat // W).astype(jnp.float32),
                    (flat % W).astype(jnp.float32)], axis=0)  # (2, N)

    kernel = _make_kernel(H, W, Cin, tile_rows, Hp_r, Wp, tap_group, fold_mask)

    out_flat = pl.pallas_call(
        kernel,
        out_shape=jax.ShapeDtypeStruct((B, Cout, N), jnp.float32),
        grid=(B, num_tiles),
        in_specs=[
            # flattened padded image: resident across the spatial tile axis
            pl.BlockSpec((1, Cin * Hp_r, Wp), lambda b, t: (b, 0, 0)),
            # 4D padded image (offset-conv slab source): resident as well
            pl.BlockSpec((1, Cin, Hp_r, Wp), lambda b, t: (b, 0, 0, 0)),
            pl.BlockSpec((2, TILE_N), lambda b, t: (0, t)),
            pl.BlockSpec(w_om.shape, lambda b, t: (0, 0)),
            pl.BlockSpec(b_om.shape, lambda b, t: (0, 0)),
            pl.BlockSpec(w_main.shape, lambda b, t: (0, 0)),
            pl.BlockSpec(b_main.shape, lambda b, t: (0, 0)),
        ],
        out_specs=pl.BlockSpec((1, Cout, TILE_N), lambda b, t: (b, 0, t)),
        scratch_shapes=[pltpu.VMEM((KK * Cin, TILE_N), jnp.bfloat16)],
        compiler_params=pltpu.CompilerParams(
            dimension_semantics=("parallel", "parallel"),
            vmem_limit_bytes=48 * 1024 * 1024),
    )(xflat, xp, rc, w_om, b_om, w_main, b_main)

    return out_flat.reshape(B, Cout, H, W)


def _deform_conv2d_reference(x, w_off, b_off, w_mod, b_mod, weight, bias):
    """Pure-JAX (non-Pallas) reference with torchvision deform_conv2d rules."""
    B, Cin, H, W = x.shape
    hi = lax.Precision.HIGHEST

    def conv3x3(inp, w, b):
        return lax.conv_general_dilated(
            inp, w, window_strides=(1, 1), padding=((PAD, PAD), (PAD, PAD)),
            dimension_numbers=("NCHW", "OIHW", "NCHW"),
            precision=hi) + b[None, :, None, None]

    off = conv3x3(x, w_off, b_off)                           # (B, 2KK, H, W)
    mask = 2.0 * jax.nn.sigmoid(conv3x3(x, w_mod, b_mod))    # (B, KK, H, W)

    hh = jnp.arange(H, dtype=jnp.float32)[:, None]
    ww = jnp.arange(W, dtype=jnp.float32)[None, :]
    x_flat = x.reshape(B, Cin, H * W)
    out = jnp.zeros((B, weight.shape[0], H, W), jnp.float32)
    for p in range(KK):
        i, j = p // K, p % K
        py = hh - PAD + i + off[:, 2 * p]
        px = ww - PAD + j + off[:, 2 * p + 1]
        y0 = jnp.floor(py)
        x0 = jnp.floor(px)
        ly = py - y0
        lx = px - x0
        samp = jnp.zeros((B, Cin, H, W), jnp.float32)
        for yc, xc, wgt in ((y0, x0, (1 - ly) * (1 - lx)),
                            (y0, x0 + 1, (1 - ly) * lx),
                            (y0 + 1, x0, ly * (1 - lx)),
                            (y0 + 1, x0 + 1, ly * lx)):
            valid = (yc >= 0) & (yc <= H - 1) & (xc >= 0) & (xc <= W - 1)
            yi = jnp.clip(yc, 0, H - 1).astype(jnp.int32)
            xi = jnp.clip(xc, 0, W - 1).astype(jnp.int32)
            idx = (yi * W + xi).reshape(B, 1, H * W)
            g = jnp.take_along_axis(
                x_flat, jnp.broadcast_to(idx, (B, Cin, H * W)),
                axis=2).reshape(B, Cin, H, W)
            samp = samp + jnp.where(valid, wgt, 0.0)[:, None] * g
        out = out + jnp.einsum("oc,bchw->bohw", weight[:, :, i, j],
                               samp * mask[:, p][:, None], precision=hi)
    return out + bias[None, :, None, None]


def _kaiming_uniform(key, shape):
    fan_in = shape[1] * shape[2] * shape[3]
    bound = math.sqrt(2.0) * math.sqrt(3.0 / fan_in)  # relu gain, fan_in mode
    return jax.random.uniform(key, shape, jnp.float32, minval=-bound, maxval=bound)


if __name__ == "__main__":
    key = jax.random.PRNGKey(0)
    kx, kw, k1, k2, k3, k4, kx3, kw3 = jax.random.split(key, 8)
    bf16_round = lambda a: a.astype(jnp.bfloat16).astype(jnp.float32)

    # ----------------- test 1: module-default (zero) offsets -----------------
    B, Cin, H, W = 2, 4, 16, 16
    Cout = 8
    x = bf16_round(jax.random.normal(kx, (B, Cin, H, W), jnp.float32))
    weight = bf16_round(_kaiming_uniform(kw, (Cout, Cin, K, K)))
    bias = jnp.zeros((Cout,), jnp.float32)
    w_off = jnp.zeros((2 * KK, Cin, K, K), jnp.float32)
    b_off = jnp.zeros((2 * KK,), jnp.float32)
    w_mod = jnp.zeros((KK, Cin, K, K), jnp.float32)
    b_mod = jnp.full((KK,), 0.5, jnp.float32)

    out = jax.block_until_ready(
        deformable_conv2d(x, w_off, b_off, w_mod, b_mod, weight, bias,
                          tile_rows=8))
    scale = 2.0 * jax.nn.sigmoid(0.5)
    ref = lax.conv_general_dilated(
        x, weight, window_strides=(1, 1), padding=((PAD, PAD), (PAD, PAD)),
        dimension_numbers=("NCHW", "OIHW", "NCHW"),
        precision=lax.Precision.HIGHEST) * scale + bias[None, :, None, None]
    err1 = float(jnp.max(jnp.abs(out - ref)))
    assert jnp.allclose(out, ref, atol=3e-2, rtol=3e-2), err1   # bf16 MXU operands

    # ----------------- test 2: non-zero offsets / modulator -------------------
    w_off2 = bf16_round(0.3 * jax.random.normal(k1, (2 * KK, Cin, K, K), jnp.float32))
    b_off2 = bf16_round(0.2 * jax.random.normal(k2, (2 * KK,), jnp.float32))
    w_mod2 = bf16_round(0.3 * jax.random.normal(k3, (KK, Cin, K, K), jnp.float32))
    b_mod2 = bf16_round(0.2 * jax.random.normal(k4, (KK,), jnp.float32))
    bias2 = bf16_round(0.1 * jnp.arange(Cout, dtype=jnp.float32))

    out2 = jax.block_until_ready(
        deformable_conv2d(x, w_off2, b_off2, w_mod2, b_mod2, weight, bias2,
                          tile_rows=8))
    ref2 = _deform_conv2d_reference(x, w_off2, b_off2, w_mod2, b_mod2,
                                    weight, bias2)
    err2 = float(jnp.max(jnp.abs(out2 - ref2)))
    assert jnp.allclose(out2, ref2, atol=1e-1, rtol=5e-2), err2  # bf16 offsets/weights

    # --------- test 3: Cin >= Wp so the mask-folded-into-CX path runs ---------
    Cin3, Cout3 = 32, 16
    x3 = bf16_round(jax.random.normal(kx3, (1, Cin3, H, W), jnp.float32))
    weight3 = bf16_round(_kaiming_uniform(kw3, (Cout3, Cin3, K, K)))
    bias3 = jnp.zeros((Cout3,), jnp.float32)
    out3 = jax.block_until_ready(
        deformable_conv2d(x3,
                          jnp.zeros((2 * KK, Cin3, K, K), jnp.float32),
                          jnp.zeros((2 * KK,), jnp.float32),
                          jnp.zeros((KK, Cin3, K, K), jnp.float32),
                          jnp.full((KK,), 0.5, jnp.float32),
                          weight3, bias3, tile_rows=8))
    ref3 = lax.conv_general_dilated(
        x3, weight3, window_strides=(1, 1), padding=((PAD, PAD), (PAD, PAD)),
        dimension_numbers=("NCHW", "OIHW", "NCHW"),
        precision=lax.Precision.HIGHEST) * scale + bias3[None, :, None, None]
    err3 = float(jnp.max(jnp.abs(out3 - ref3)))
    assert jnp.allclose(out3, ref3, atol=5e-2, rtol=3e-2), err3

    print("KERNEL_OK")
</pallas_src>

<mosaic_0001>
module attributes {stable_mosaic.version = 11 : i64} {
  func.func @kernel(%arg0: i32, %arg1: i32, %arg2: memref<1x96x18xbf16, #tpu.memory_space<vmem>>, %arg3: memref<1x4x24x18xbf16, #tpu.memory_space<vmem>>, %arg4: memref<2x128xf32, #tpu.memory_space<vmem>>, %arg5: memref<27x36xbf16, #tpu.memory_space<vmem>>, %arg6: memref<27x1xf32, #tpu.memory_space<vmem>>, %arg7: memref<8x36xbf16, #tpu.memory_space<vmem>>, %arg8: memref<8x1xf32, #tpu.memory_space<vmem>>, %arg9: memref<1x8x128xf32, #tpu.memory_space<vmem>>, %arg10: memref<36x128xbf16, #tpu.memory_space<vmem>>) attributes {dimension_semantics = [#tpu.dimension_semantics<parallel>, #tpu.dimension_semantics<parallel>], iteration_bounds = array<i64: 2, 2>, scalar_prefetch = 0 : i64, scratch_operands = 1 : i64, tpu.core_type = #tpu.core_type<tc>, window_params = [{transform_indices = @transform_0, window_bounds = array<i64: 1, 96, 18>}, {transform_indices = @transform_1, window_bounds = array<i64: 1, 4, 24, 18>}, {transform_indices = @transform_2, window_bounds = array<i64: 2, 128>}, {pipeline_mode = #tpu.pipeline_mode<synchronous>, transform_indices = @transform_3, window_bounds = array<i64: 27, 36>}, {pipeline_mode = #tpu.pipeline_mode<synchronous>, transform_indices = @transform_4, window_bounds = array<i64: 27, 1>}, {pipeline_mode = #tpu.pipeline_mode<synchronous>, transform_indices = @transform_5, window_bounds = array<i64: 8, 36>}, {pipeline_mode = #tpu.pipeline_mode<synchronous>, transform_indices = @transform_6, window_bounds = array<i64: 8, 1>}, {transform_indices = @transform_7, window_bounds = array<i64: 1, 8, 128>}]} {
    %c8_i32 = arith.constant 8 : i32
    %0 = arith.muli %arg1, %c8_i32 : i32
    %1 = tpu.assume_multiple %0, 8 : i32
    %c0 = arith.constant 0 : index
    %c0_0 = arith.constant 0 : index
    %2 = arith.index_cast %1 : i32 to index
    %c0_1 = arith.constant 0 : index
    %3 = vector.load %arg3[%c0, %c0_0, %2, %c0_1] : memref<1x4x24x18xbf16, #tpu.memory_space<vmem>>, vector<1x4x10x18xbf16>
    %4 = vector.shape_cast %3 : vector<1x4x10x18xbf16> to vector<4x10x18xbf16>
    %5 = vector.extract_strided_slice %4 {offsets = [0, 0, 0], sizes = [4, 8, 16], strides = [1, 1, 1]} : vector<4x10x18xbf16> to vector<4x8x16xbf16>
    %6 = vector.shape_cast %5 : vector<4x8x16xbf16> to vector<4x128xbf16>
    %c0_2 = arith.constant 0 : index
    %c0_3 = arith.constant 0 : index
    %7 = vector.load %arg10[%c0_2, %c0_3] : memref<36x128xbf16, #tpu.memory_space<vmem>>, vector<4x128xbf16>
    tpu.vector_store %arg10[%c0_2, %c0_3], %6 {strides = array<i32>} : memref<36x128xbf16, #tpu.memory_space<vmem>>, vector<4x128xbf16>,
    %8 = vector.extract_strided_slice %4 {offsets = [0, 0, 1], sizes = [4, 8, 16], strides = [1, 1, 1]} : vector<4x10x18xbf16> to vector<4x8x16xbf16>
    %9 = vector.shape_cast %8 : vector<4x8x16xbf16> to vector<4x128xbf16>
    %c4 = arith.constant 4 : index
    %c0_4 = arith.constant 0 : index
    %10 = vector.load %arg10[%c4, %c0_4] : memref<36x128xbf16, #tpu.memory_space<vmem>>, vector<4x128xbf16>
    tpu.vector_store %arg10[%c4, %c0_4], %9 {strides = array<i32>} : memref<36x128xbf16, #tpu.memory_space<vmem>>, vector<4x128xbf16>,
    %11 = vector.extract_strided_slice %4 {offsets = [0, 0, 2], sizes = [4, 8, 16], strides = [1, 1, 1]} : vector<4x10x18xbf16> to vector<4x8x16xbf16>
    %12 = vector.shape_cast %11 : vector<4x8x16xbf16> to vector<4x128xbf16>
    %c8 = arith.constant 8 : index
    %c0_5 = arith.constant 0 : index
    %13 = vector.load %arg10[%c8, %c0_5] : memref<36x128xbf16, #tpu.memory_space<vmem>>, vector<4x128xbf16>
    tpu.vector_store %arg10[%c8, %c0_5], %12 {strides = array<i32>} : memref<36x128xbf16, #tpu.memory_space<vmem>>, vector<4x128xbf16>,
    %14 = vector.extract_strided_slice %4 {offsets = [0, 1, 0], sizes = [4, 8, 16], strides = [1, 1, 1]} : vector<4x10x18xbf16> to vector<4x8x16xbf16>
    %15 = vector.shape_cast %14 : vector<4x8x16xbf16> to vector<4x128xbf16>
    %c12 = arith.constant 12 : index
    %c0_6 = arith.constant 0 : index
    %16 = vector.load %arg10[%c12, %c0_6] : memref<36x128xbf16, #tpu.memory_space<vmem>>, vector<4x128xbf16>
    tpu.vector_store %arg10[%c12, %c0_6], %15 {strides = array<i32>} : memref<36x128xbf16, #tpu.memory_space<vmem>>, vector<4x128xbf16>,
    %17 = vector.extract_strided_slice %4 {offsets = [0, 1, 1], sizes = [4, 8, 16], strides = [1, 1, 1]} : vector<4x10x18xbf16> to vector<4x8x16xbf16>
    %18 = vector.shape_cast %17 : vector<4x8x16xbf16> to vector<4x128xbf16>
    %c16 = arith.constant 16 : index
    %c0_7 = arith.constant 0 : index
    %19 = vector.load %arg10[%c16, %c0_7] : memref<36x128xbf16, #tpu.memory_space<vmem>>, vector<4x128xbf16>
    tpu.vector_store %arg10[%c16, %c0_7], %18 {strides = array<i32>} : memref<36x128xbf16, #tpu.memory_space<vmem>>, vector<4x128xbf16>,
    %20 = vector.extract_strided_slice %4 {offsets = [0, 1, 2], sizes = [4, 8, 16], strides = [1, 1, 1]} : vector<4x10x18xbf16> to vector<4x8x16xbf16>
    %21 = vector.shape_cast %20 : vector<4x8x16xbf16> to vector<4x128xbf16>
    %c20 = arith.constant 20 : index
    %c0_8 = arith.constant 0 : index
    %22 = vector.load %arg10[%c20, %c0_8] : memref<36x128xbf16, #tpu.memory_space<vmem>>, vector<4x128xbf16>
    tpu.vector_store %arg10[%c20, %c0_8], %21 {strides = array<i32>} : memref<36x128xbf16, #tpu.memory_space<vmem>>, vector<4x128xbf16>,
    %23 = vector.extract_strided_slice %4 {offsets = [0, 2, 0], sizes = [4, 8, 16], strides = [1, 1, 1]} : vector<4x10x18xbf16> to vector<4x8x16xbf16>
    %24 = vector.shape_cast %23 : vector<4x8x16xbf16> to vector<4x128xbf16>
    %c24 = arith.constant 24 : index
    %c0_9 = arith.constant 0 : index
    %25 = vector.load %arg10[%c24, %c0_9] : memref<36x128xbf16, #tpu.memory_space<vmem>>, vector<4x128xbf16>
    tpu.vector_store %arg10[%c24, %c0_9], %24 {strides = array<i32>} : memref<36x128xbf16, #tpu.memory_space<vmem>>, vector<4x128xbf16>,
    %26 = vector.extract_strided_slice %4 {offsets = [0, 2, 1], sizes = [4, 8, 16], strides = [1, 1, 1]} : vector<4x10x18xbf16> to vector<4x8x16xbf16>
    %27 = vector.shape_cast %26 : vector<4x8x16xbf16> to vector<4x128xbf16>
    %c28 = arith.constant 28 : index
    %c0_10 = arith.constant 0 : index
    %28 = vector.load %arg10[%c28, %c0_10] : memref<36x128xbf16, #tpu.memory_space<vmem>>, vector<4x128xbf16>
    tpu.vector_store %arg10[%c28, %c0_10], %27 {strides = array<i32>} : memref<36x128xbf16, #tpu.memory_space<vmem>>, vector<4x128xbf16>,
    %29 = vector.extract_strided_slice %4 {offsets = [0, 2, 2], sizes = [4, 8, 16], strides = [1, 1, 1]} : vector<4x10x18xbf16> to vector<4x8x16xbf16>
    %30 = vector.shape_cast %29 : vector<4x8x16xbf16> to vector<4x128xbf16>
    %c32 = arith.constant 32 : index
    %c0_11 = arith.constant 0 : index
    %31 = vector.load %arg10[%c32, %c0_11] : memref<36x128xbf16, #tpu.memory_space<vmem>>, vector<4x128xbf16>
    tpu.vector_store %arg10[%c32, %c0_11], %30 {strides = array<i32>} : memref<36x128xbf16, #tpu.memory_space<vmem>>, vector<4x128xbf16>,
    %c0_12 = arith.constant 0 : index
    %c0_13 = arith.constant 0 : index
    %32 = vector.load %arg5[%c0_12, %c0_13] : memref<27x36xbf16, #tpu.memory_space<vmem>>, vector<27x36xbf16>
    %c0_14 = arith.constant 0 : index
    %c0_15 = arith.constant 0 : index
    %33 = vector.load %arg10[%c0_14, %c0_15] : memref<36x128xbf16, #tpu.memory_space<vmem>>, vector<36x128xbf16>
    %cst = arith.constant dense<0.000000e+00> : vector<27x128xf32>
    %34 = tpu.matmul %32, %33, %cst {dimension_numbers = #tpu.dot_dimension_numbers<[1], [0], [0], [1], [0, 0, 1, 1], [], []>} : vector<27x36xbf16>, vector<36x128xbf16>, vector<27x128xf32> -> vector<27x128xf32>
    %c0_16 = arith.constant 0 : index
    %c0_17 = arith.constant 0 : index
    %35 = vector.load %arg6[%c0_16, %c0_17] : memref<27x1xf32, #tpu.memory_space<vmem>>, vector<27x1xf32>
    %36 = vector.broadcast %35 : vector<27x1xf32> to vector<27x128xf32>
    %37 = arith.addf %34, %36 : vector<27x128xf32>
    %38 = vector.extract_strided_slice %37 {offsets = [0, 0], sizes = [18, 128], strides = [1, 1]} : vector<27x128xf32> to vector<18x128xf32>
    %39 = vector.extract_strided_slice %37 {offsets = [18, 0], sizes = [9, 128], strides = [1, 1]} : vector<27x128xf32> to vector<9x128xf32>
    %40 = arith.negf %39 : vector<9x128xf32>
    %41 = math.exp %40 : vector<9x128xf32>
    %cst_18 = arith.constant 1.000000e+00 : f32
    %42 = vector.broadcast %cst_18 : f32 to vector<9x128xf32>
    %43 = arith.addf %42, %41 : vector<9x128xf32>
    %44 = arith.divf %42, %43 : vector<9x128xf32>
    %cst_19 = arith.constant 2.000000e+00 : f32
    %45 = vector.broadcast %cst_19 : f32 to vector<9x128xf32>
    %46 = arith.mulf %45, %44 : vector<9x128xf32>
    %c0_20 = arith.constant 0 : index
    %c0_21 = arith.constant 0 : index
    %47 = vector.load %arg4[%c0_20, %c0_21] : memref<2x128xf32, #tpu.memory_space<vmem>>, vector<1x128xf32>
    %c1 = arith.constant 1 : index
    %c0_22 = arith.constant 0 : index
    %48 = vector.load %arg4[%c1, %c0_22] : memref<2x128xf32, #tpu.memory_space<vmem>>, vector<1x128xf32>
    %c0_23 = arith.constant 0 : index
    %c0_24 = arith.constant 0 : index
    %c0_25 = arith.constant 0 : index
    %49 = vector.load %arg2[%c0_23, %c0_24, %c0_25] : memref<1x96x18xbf16, #tpu.memory_space<vmem>>, vector<1x96x18xbf16>
    %50 = vector.shape_cast %49 : vector<1x96x18xbf16> to vector<96x18xbf16>
    %51 = tpu.iota {dimensions = array<i32: 0>} : vector<24x128xi32>
    %52 = tpu.iota {dimensions = array<i32: 0>} : vector<18x128xi32>
    %53 = vector.extract_strided_slice %38 {offsets = [0, 0], sizes = [1, 128], strides = [1, 1]} : vector<18x128xf32> to vector<1x128xf32>
    %54 = vector.extract_strided_slice %38 {offsets = [1, 0], sizes = [1, 128], strides = [1, 1]} : vector<18x128xf32> to vector<1x128xf32>
    %cst_26 = arith.constant 1.000000e+00 : f32
    %55 = vector.broadcast %cst_26 : f32 to vector<1x128xf32>
    %56 = arith.subf %47, %55 : vector<1x128xf32>
    %cst_27 = arith.constant 0.000000e+00 : f32
    %57 = vector.broadcast %cst_27 : f32 to vector<1x128xf32>
    %58 = arith.addf %56, %57 : vector<1x128xf32>
    %59 = arith.addf %58, %53 : vector<1x128xf32>
    %cst_28 = arith.constant 1.000000e+00 : f32
    %60 = vector.broadcast %cst_28 : f32 to vector<1x128xf32>
    %61 = arith.subf %48, %60 : vector<1x128xf32>
    %cst_29 = arith.constant 0.000000e+00 : f32
    %62 = vector.broadcast %cst_29 : f32 to vector<1x128xf32>
    %63 = arith.addf %61, %62 : vector<1x128xf32>
    %64 = arith.addf %63, %54 : vector<1x128xf32>
    %65 = math.floor %59 : vector<1x128xf32>
    %66 = math.floor %64 : vector<1x128xf32>
    %67 = arith.subf %59, %65 : vector<1x128xf32>
    %68 = arith.subf %64, %66 : vector<1x128xf32>
    %cst_30 = arith.constant -2.000000e+00 : f32
    %cst_31 = arith.constant 1.700000e+01 : f32
    %69 = vector.broadcast %cst_30 : f32 to vector<1x128xf32>
    %70 = arith.maximumf %69, %65 : vector<1x128xf32>
    %71 = vector.broadcast %cst_31 : f32 to vector<1x128xf32>
    %72 = arith.minimumf %71, %70 : vector<1x128xf32>
    %73 = arith.fptosi %72 : vector<1x128xf32> to vector<1x128xi32>
    %c1_i32 = arith.constant 1 : i32
    %74 = vector.broadcast %c1_i32 : i32 to vector<1x128xi32>
    %75 = arith.addi %73, %74 : vector<1x128xi32>
    %cst_32 = arith.constant -2.000000e+00 : f32
    %cst_33 = arith.constant 1.700000e+01 : f32
    %76 = vector.broadcast %cst_32 : f32 to vector<1x128xf32>
    %77 = arith.maximumf %76, %66 : vector<1x128xf32>
    %78 = vector.broadcast %cst_33 : f32 to vector<1x128xf32>
    %79 = arith.minimumf %78, %77 : vector<1x128xf32>
    %80 = arith.fptosi %79 : vector<1x128xf32> to vector<1x128xi32>
    %c1_i32_34 = arith.constant 1 : i32
    %81 = vector.broadcast %c1_i32_34 : i32 to vector<1x128xi32>
    %82 = arith.addi %80, %81 : vector<1x128xi32>
    %83 = vector.broadcast %75 : vector<1x128xi32> to vector<24x128xi32>
    %84 = arith.cmpi eq, %51, %83 : vector<24x128xi32>
    %cst_35 = arith.constant 1.000000e+00 : f32
    %85 = vector.broadcast %cst_35 : f32 to vector<1x128xf32>
    %86 = arith.subf %85, %67 : vector<1x128xf32>
    %cst_36 = arith.constant 0.000000e+00 : f32
    %87 = vector.shape_cast %86 : vector<1x128xf32> to vector<1x128xf32>
    %88 = vector.broadcast %87 : vector<1x128xf32> to vector<24x128xf32>
    %89 = vector.broadcast %cst_36 : f32 to vector<24x128xf32>
    %90 = arith.select %84, %88, %89 : vector<24x128xi1>, vector<24x128xf32>
    %c1_i32_37 = arith.constant 1 : i32
    %91 = vector.broadcast %c1_i32_37 : i32 to vector<1x128xi32>
    %92 = arith.addi %75, %91 : vector<1x128xi32>
    %93 = vector.broadcast %92 : vector<1x128xi32> to vector<24x128xi32>
    %94 = arith.cmpi eq, %51, %93 : vector<24x128xi32>
    %cst_38 = arith.constant 0.000000e+00 : f32
    %95 = vector.shape_cast %67 : vector<1x128xf32> to vector<1x128xf32>
    %96 = vector.broadcast %95 : vector<1x128xf32> to vector<24x128xf32>
    %97 = vector.broadcast %cst_38 : f32 to vector<24x128xf32>
    %98 = arith.select %94, %96, %97 : vector<24x128xi1>, vector<24x128xf32>
    %99 = arith.addf %90, %98 : vector<24x128xf32>
    %100 = vector.broadcast %82 : vector<1x128xi32> to vector<18x128xi32>
    %101 = arith.cmpi eq, %52, %100 : vector<18x128xi32>
    %cst_39 = arith.constant 1.000000e+00 : f32
    %102 = vector.broadcast %cst_39 : f32 to vector<1x128xf32>
    %103 = arith.subf %102, %68 : vector<1x128xf32>
    %cst_40 = arith.constant 0.000000e+00 : f32
    %104 = vector.shape_cast %103 : vector<1x128xf32> to vector<1x128xf32>
    %105 = vector.broadcast %104 : vector<1x128xf32> to vector<18x128xf32>
    %106 = vector.broadcast %cst_40 : f32 to vector<18x128xf32>
    %107 = arith.select %101, %105, %106 : vector<18x128xi1>, vector<18x128xf32>
    %c1_i32_41 = arith.constant 1 : i32
    %108 = vector.broadcast %c1_i32_41 : i32 to vector<1x128xi32>
    %109 = arith.addi %82, %108 : vector<1x128xi32>
    %110 = vector.broadcast %109 : vector<1x128xi32> to vector<18x128xi32>
    %111 = arith.cmpi eq, %52, %110 : vector<18x128xi32>
    %cst_42 = arith.constant 0.000000e+00 : f32
    %112 = vector.shape_cast %68 : vector<1x128xf32> to vector<1x128xf32>
    %113 = vector.broadcast %112 : vector<1x128xf32> to vector<18x128xf32>
    %114 = vector.broadcast %cst_42 : f32 to vector<18x128xf32>
    %115 = arith.select %111, %113, %114 : vector<18x128xi1>, vector<18x128xf32>
    %116 = arith.addf %107, %115 : vector<18x128xf32>
    %117 = vector.extract_strided_slice %38 {offsets = [2, 0], sizes = [1, 128], strides = [1, 1]} : vector<18x128xf32> to vector<1x128xf32>
    %118 = vector.extract_strided_slice %38 {offsets = [3, 0], sizes = [1, 128], strides = [1, 1]} : vector<18x128xf32> to vector<1x128xf32>
    %cst_43 = arith.constant 1.000000e+00 : f32
    %119 = vector.broadcast %cst_43 : f32 to vector<1x128xf32>
    %120 = arith.subf %47, %119 : vector<1x128xf32>
    %cst_44 = arith.constant 0.000000e+00 : f32
    %121 = vector.broadcast %cst_44 : f32 to vector<1x128xf32>
    %122 = arith.addf %120, %121 : vector<1x128xf32>
    %123 = arith.addf %122, %117 : vector<1x128xf32>
    %cst_45 = arith.constant 1.000000e+00 : f32
    %124 = vector.broadcast %cst_45 : f32 to vector<1x128xf32>
    %125 = arith.subf %48, %124 : vector<1x128xf32>
    %cst_46 = arith.constant 1.000000e+00 : f32
    %126 = vector.broadcast %cst_46 : f32 to vector<1x128xf32>
    %127 = arith.addf %125, %126 : vector<1x128xf32>
    %128 = arith.addf %127, %118 : vector<1x128xf32>
    %129 = math.floor %123 : vector<1x128xf32>
    %130 = math.floor %128 : vector<1x128xf32>
    %131 = arith.subf %123, %129 : vector<1x128xf32>
    %132 = arith.subf %128, %130 : vector<1x128xf32>
    %cst_47 = arith.constant -2.000000e+00 : f32
    %cst_48 = arith.constant 1.700000e+01 : f32
    %133 = vector.broadcast %cst_47 : f32 to vector<1x128xf32>
    %134 = arith.maximumf %133, %129 : vector<1x128xf32>
    %135 = vector.broadcast %cst_48 : f32 to vector<1x128xf32>
    %136 = arith.minimumf %135, %134 : vector<1x128xf32>
    %137 = arith.fptosi %136 : vector<1x128xf32> to vector<1x128xi32>
    %c1_i32_49 = arith.constant 1 : i32
    %138 = vector.broadcast %c1_i32_49 : i32 to vector<1x128xi32>
    %139 = arith.addi %137, %138 : vector<1x128xi32>
    %cst_50 = arith.constant -2.000000e+00 : f32
    %cst_51 = arith.constant 1.700000e+01 : f32
    %140 = vector.broadcast %cst_50 : f32 to vector<1x128xf32>
    %141 = arith.maximumf %140, %130 : vector<1x128xf32>
    %142 = vector.broadcast %cst_51 : f32 to vector<1x128xf32>
    %143 = arith.minimumf %142, %141 : vector<1x128xf32>
    %144 = arith.fptosi %143 : vector<1x128xf32> to vector<1x128xi32>
    %c1_i32_52 = arith.constant 1 : i32
    %145 = vector.broadcast %c1_i32_52 : i32 to vector<1x128xi32>
    %146 = arith.addi %144, %145 : vector<1x128xi32>
    %147 = vector.broadcast %139 : vector<1x128xi32> to vector<24x128xi32>
    %148 = arith.cmpi eq, %51, %147 : vector<24x128xi32>
    %cst_53 = arith.constant 1.000000e+00 : f32
    %149 = vector.broadcast %cst_53 : f32 to vector<1x128xf32>
    %150 = arith.subf %149, %131 : vector<1x128xf32>
    %cst_54 = arith.constant 0.000000e+00 : f32
    %151 = vector.shape_cast %150 : vector<1x128xf32> to vector<1x128xf32>
    %152 = vector.broadcast %151 : vector<1x128xf32> to vector<24x128xf32>
    %153 = vector.broadcast %cst_54 : f32 to vector<24x128xf32>
    %154 = arith.select %148, %152, %153 : vector<24x128xi1>, vector<24x128xf32>
    %c1_i32_55 = arith.constant 1 : i32
    %155 = vector.broadcast %c1_i32_55 : i32 to vector<1x128xi32>
    %156 = arith.addi %139, %155 : vector<1x128xi32>
    %157 = vector.broadcast %156 : vector<1x128xi32> to vector<24x128xi32>
    %158 = arith.cmpi eq, %51, %157 : vector<24x128xi32>
    %cst_56 = arith.constant 0.000000e+00 : f32
    %159 = vector.shape_cast %131 : vector<1x128xf32> to vector<1x128xf32>
    %160 = vector.broadcast %159 : vector<1x128xf32> to vector<24x128xf32>
    %161 = vector.broadcast %cst_56 : f32 to vector<24x128xf32>
    %162 = arith.select %158, %160, %161 : vector<24x128xi1>, vector<24x128xf32>
    %163 = arith.addf %154, %162 : vector<24x128xf32>
    %164 = vector.broadcast %146 : vector<1x128xi32> to vector<18x128xi32>
    %165 = arith.cmpi eq, %52, %164 : vector<18x128xi32>
    %cst_57 = arith.constant 1.000000e+00 : f32
    %166 = vector.broadcast %cst_57 : f32 to vector<1x128xf32>
    %167 = arith.subf %166, %132 : vector<1x128xf32>
    %cst_58 = arith.constant 0.000000e+00 : f32
    %168 = vector.shape_cast %167 : vector<1x128xf32> to vector<1x128xf32>
    %169 = vector.broadcast %168 : vector<1x128xf32> to vector<18x128xf32>
    %170 = vector.broadcast %cst_58 : f32 to vector<18x128xf32>
    %171 = arith.select %165, %169, %170 : vector<18x128xi1>, vector<18x128xf32>
    %c1_i32_59 = arith.constant 1 : i32
    %172 = vector.broadcast %c1_i32_59 : i32 to vector<1x128xi32>
    %173 = arith.addi %146, %172 : vector<1x128xi32>
    %174 = vector.broadcast %173 : vector<1x128xi32> to vector<18x128xi32>
    %175 = arith.cmpi eq, %52, %174 : vector<18x128xi32>
    %cst_60 = arith.constant 0.000000e+00 : f32
    %176 = vector.shape_cast %132 : vector<1x128xf32> to vector<1x128xf32>
    %177 = vector.broadcast %176 : vector<1x128xf32> to vector<18x128xf32>
    %178 = vector.broadcast %cst_60 : f32 to vector<18x128xf32>
    %179 = arith.select %175, %177, %178 : vector<18x128xi1>, vector<18x128xf32>
    %180 = arith.addf %171, %179 : vector<18x128xf32>
    %181 = vector.extract_strided_slice %38 {offsets = [4, 0], sizes = [1, 128], strides = [1, 1]} : vector<18x128xf32> to vector<1x128xf32>
    %182 = vector.extract_strided_slice %38 {offsets = [5, 0], sizes = [1, 128], strides = [1, 1]} : vector<18x128xf32> to vector<1x128xf32>
    %cst_61 = arith.constant 1.000000e+00 : f32
    %183 = vector.broadcast %cst_61 : f32 to vector<1x128xf32>
    %184 = arith.subf %47, %183 : vector<1x128xf32>
    %cst_62 = arith.constant 0.000000e+00 : f32
    %185 = vector.broadcast %cst_62 : f32 to vector<1x128xf32>
    %186 = arith.addf %184, %185 : vector<1x128xf32>
    %187 = arith.addf %186, %181 : vector<1x128xf32>
    %cst_63 = arith.constant 1.000000e+00 : f32
    %188 = vector.broadcast %cst_63 : f32 to vector<1x128xf32>
    %189 = arith.subf %48, %188 : vector<1x128xf32>
    %cst_64 = arith.constant 2.000000e+00 : f32
    %190 = vector.broadcast %cst_64 : f32 to vector<1x128xf32>
    %191 = arith.addf %189, %190 : vector<1x128xf32>
    %192 = arith.addf %191, %182 : vector<1x128xf32>
    %193 = math.floor %187 : vector<1x128xf32>
    %194 = math.floor %192 : vector<1x128xf32>
    %195 = arith.subf %187, %193 : vector<1x128xf32>
    %196 = arith.subf %192, %194 : vector<1x128xf32>
    %cst_65 = arith.constant -2.000000e+00 : f32
    %cst_66 = arith.constant 1.700000e+01 : f32
    %197 = vector.broadcast %cst_65 : f32 to vector<1x128xf32>
    %198 = arith.maximumf %197, %193 : vector<1x128xf32>
    %199 = vector.broadcast %cst_66 : f32 to vector<1x128xf32>
    %200 = arith.minimumf %199, %198 : vector<1x128xf32>
    %201 = arith.fptosi %200 : vector<1x128xf32> to vector<1x128xi32>
    %c1_i32_67 = arith.constant 1 : i32
    %202 = vector.broadcast %c1_i32_67 : i32 to vector<1x128xi32>
    %203 = arith.addi %201, %202 : vector<1x128xi32>
    %cst_68 = arith.constant -2.000000e+00 : f32
    %cst_69 = arith.constant 1.700000e+01 : f32
    %204 = vector.broadcast %cst_68 : f32 to vector<1x128xf32>
    %205 = arith.maximumf %204, %194 : vector<1x128xf32>
    %206 = vector.broadcast %cst_69 : f32 to vector<1x128xf32>
    %207 = arith.minimumf %206, %205 : vector<1x128xf32>
    %208 = arith.fptosi %207 : vector<1x128xf32> to vector<1x128xi32>
    %c1_i32_70 = arith.constant 1 : i32
    %209 = vector.broadcast %c1_i32_70 : i32 to vector<1x128xi32>
    %210 = arith.addi %208, %209 : vector<1x128xi32>
    %211 = vector.broadcast %203 : vector<1x128xi32> to vector<24x128xi32>
    %212 = arith.cmpi eq, %51, %211 : vector<24x128xi32>
    %cst_71 = arith.constant 1.000000e+00 : f32
    %213 = vector.broadcast %cst_71 : f32 to vector<1x128xf32>
    %214 = arith.subf %213, %195 : vector<1x128xf32>
    %cst_72 = arith.constant 0.000000e+00 : f32
    %215 = vector.shape_cast %214 : vector<1x128xf32> to vector<1x128xf32>
    %216 = vector.broadcast %215 : vector<1x128xf32> to vector<24x128xf32>
    %217 = vector.broadcast %cst_72 : f32 to vector<24x128xf32>
    %218 = arith.select %212, %216, %217 : vector<24x128xi1>, vector<24x128xf32>
    %c1_i32_73 = arith.constant 1 : i32
    %219 = vector.broadcast %c1_i32_73 : i32 to vector<1x128xi32>
    %220 = arith.addi %203, %219 : vector<1x128xi32>
    %221 = vector.broadcast %220 : vector<1x128xi32> to vector<24x128xi32>
    %222 = arith.cmpi eq, %51, %221 : vector<24x128xi32>
    %cst_74 = arith.constant 0.000000e+00 : f32
    %223 = vector.shape_cast %195 : vector<1x128xf32> to vector<1x128xf32>
    %224 = vector.broadcast %223 : vector<1x128xf32> to vector<24x128xf32>
    %225 = vector.broadcast %cst_74 : f32 to vector<24x128xf32>
    %226 = arith.select %222, %224, %225 : vector<24x128xi1>, vector<24x128xf32>
    %227 = arith.addf %218, %226 : vector<24x128xf32>
    %228 = vector.broadcast %210 : vector<1x128xi32> to vector<18x128xi32>
    %229 = arith.cmpi eq, %52, %228 : vector<18x128xi32>
    %cst_75 = arith.constant 1.000000e+00 : f32
    %230 = vector.broadcast %cst_75 : f32 to vector<1x128xf32>
    %231 = arith.subf %230, %196 : vector<1x128xf32>
    %cst_76 = arith.constant 0.000000e+00 : f32
    %232 = vector.shape_cast %231 : vector<1x128xf32> to vector<1x128xf32>
    %233 = vector.broadcast %232 : vector<1x128xf32> to vector<18x128xf32>
    %234 = vector.broadcast %cst_76 : f32 to vector<18x128xf32>
    %235 = arith.select %229, %233, %234 : vector<18x128xi1>, vector<18x128xf32>
    %c1_i32_77 = arith.constant 1 : i32
    %236 = vector.broadcast %c1_i32_77 : i32 to vector<1x128xi32>
    %237 = arith.addi %210, %236 : vector<1x128xi32>
    %238 = vector.broadcast %237 : vector<1x128xi32> to vector<18x128xi32>
    %239 = arith.cmpi eq, %52, %238 : vector<18x128xi32>
    %cst_78 = arith.constant 0.000000e+00 : f32
    %240 = vector.shape_cast %196 : vector<1x128xf32> to vector<1x128xf32>
    %241 = vector.broadcast %240 : vector<1x128xf32> to vector<18x128xf32>
    %242 = vector.broadcast %cst_78 : f32 to vector<18x128xf32>
    %243 = arith.select %239, %241, %242 : vector<18x128xi1>, vector<18x128xf32>
    %244 = arith.addf %235, %243 : vector<18x128xf32>
    %245 = tpu.concatenate %116, %180, %244 in 1 : vector<18x128xf32>, vector<18x128xf32>, vector<18x128xf32> -> vector<18x384xf32>
    %246 = tpu.concatenate %99, %163, %227 in 1 : vector<24x128xf32>, vector<24x128xf32>, vector<24x128xf32> -> vector<24x384xf32>
    %247 = arith.truncf %245 : vector<18x384xf32> to vector<18x384xbf16>
    %cst_79 = arith.constant dense<0.000000e+00> : vector<96x384xf32>
    %248 = tpu.matmul %50, %247, %cst_79 {dimension_numbers = #tpu.dot_dimension_numbers<[1], [0], [0], [1], [0, 0, 1, 1], [], []>} : vector<96x18xbf16>, vector<18x384xbf16>, vector<96x384xf32> -> vector<96x384xf32>
    %249 = vector.shape_cast %248 : vector<96x384xf32> to vector<4x24x384xf32>
    %250 = vector.shape_cast %246 : vector<24x384xf32> to vector<1x24x384xf32>
    %251 = vector.broadcast %250 : vector<1x24x384xf32> to vector<4x24x384xf32>
    %252 = arith.mulf %249, %251 : vector<4x24x384xf32>
    %cst_80 = arith.constant dense<0.000000e+00> : vector<4x384xf32>
    %253 = vector.multi_reduction <add>, %252, %cst_80 [1] : vector<4x24x384xf32> to vector<4x384xf32>
    %254 = vector.extract_strided_slice %253 {offsets = [0, 0], sizes = [4, 128], strides = [1, 1]} : vector<4x384xf32> to vector<4x128xf32>
    %255 = vector.extract_strided_slice %46 {offsets = [0, 0], sizes = [1, 128], strides = [1, 1]} : vector<9x128xf32> to vector<1x128xf32>
    %256 = vector.broadcast %255 : vector<1x128xf32> to vector<4x128xf32>
    %257 = arith.mulf %254, %256 : vector<4x128xf32>
    %258 = arith.truncf %257 : vector<4x128xf32> to vector<4x128xbf16>
    %c0_81 = arith.constant 0 : index
    %c0_82 = arith.constant 0 : index
    %259 = vector.load %arg10[%c0_81, %c0_82] : memref<36x128xbf16, #tpu.memory_space<vmem>>, vector<4x128xbf16>
    tpu.vector_store %arg10[%c0_81, %c0_82], %258 {strides = array<i32>} : memref<36x128xbf16, #tpu.memory_space<vmem>>, vector<4x128xbf16>,
    %260 = vector.extract_strided_slice %253 {offsets = [0, 128], sizes = [4, 128], strides = [1, 1]} : vector<4x384xf32> to vector<4x128xf32>
    %261 = vector.extract_strided_slice %46 {offsets = [1, 0], sizes = [1, 128], strides = [1, 1]} : vector<9x128xf32> to vector<1x128xf32>
    %262 = vector.broadcast %261 : vector<1x128xf32> to vector<4x128xf32>
    %263 = arith.mulf %260, %262 : vector<4x128xf32>
    %264 = arith.truncf %263 : vector<4x128xf32> to vector<4x128xbf16>
    %c4_83 = arith.constant 4 : index
    %c0_84 = arith.constant 0 : index
    %265 = vector.load %arg10[%c4_83, %c0_84] : memref<36x128xbf16, #tpu.memory_space<vmem>>, vector<4x128xbf16>
    tpu.vector_store %arg10[%c4_83, %c0_84], %264 {strides = array<i32>} : memref<36x128xbf16, #tpu.memory_space<vmem>>, vector<4x128xbf16>,
    %266 = vector.extract_strided_slice %253 {offsets = [0, 256], sizes = [4, 128], strides = [1, 1]} : vector<4x384xf32> to vector<4x128xf32>
    %267 = vector.extract_strided_slice %46 {offsets = [2, 0], sizes = [1, 128], strides = [1, 1]} : vector<9x128xf32> to vector<1x128xf32>
    %268 = vector.broadcast %267 : vector<1x128xf32> to vector<4x128xf32>
    %269 = arith.mulf %266, %268 : vector<4x128xf32>
    %270 = arith.truncf %269 : vector<4x128xf32> to vector<4x128xbf16>
    %c8_85 = arith.constant 8 : index
    %c0_86 = arith.constant 0 : index
    %271 = vector.load %arg10[%c8_85, %c0_86] : memref<36x128xbf16, #tpu.memory_space<vmem>>, vector<4x128xbf16>
    tpu.vector_store %arg10[%c8_85, %c0_86], %270 {strides = array<i32>} : memref<36x128xbf16, #tpu.memory_space<vmem>>, vector<4x128xbf16>,
    %272 = vector.extract_strided_slice %38 {offsets = [6, 0], sizes = [1, 128], strides = [1, 1]} : vector<18x128xf32> to vector<1x128xf32>
    %273 = vector.extract_strided_slice %38 {offsets = [7, 0], sizes = [1, 128], strides = [1, 1]} : vector<18x128xf32> to vector<1x128xf32>
    %cst_87 = arith.constant 1.000000e+00 : f32
    %274 = vector.broadcast %cst_87 : f32 to vector<1x128xf32>
    %275 = arith.subf %47, %274 : vector<1x128xf32>
    %cst_88 = arith.constant 1.000000e+00 : f32
    %276 = vector.broadcast %cst_88 : f32 to vector<1x128xf32>
    %277 = arith.addf %275, %276 : vector<1x128xf32>
    %278 = arith.addf %277, %272 : vector<1x128xf32>
    %cst_89 = arith.constant 1.000000e+00 : f32
    %279 = vector.broadcast %cst_89 : f32 to vector<1x128xf32>
    %280 = arith.subf %48, %279 : vector<1x128xf32>
    %cst_90 = arith.constant 0.000000e+00 : f32
    %281 = vector.broadcast %cst_90 : f32 to vector<1x128xf32>
    %282 = arith.addf %280, %281 : vector<1x128xf32>
    %283 = arith.addf %282, %273 : vector<1x128xf32>
    %284 = math.floor %278 : vector<1x128xf32>
    %285 = math.floor %283 : vector<1x128xf32>
    %286 = arith.subf %278, %284 : vector<1x128xf32>
    %287 = arith.subf %283, %285 : vector<1x128xf32>
    %cst_91 = arith.constant -2.000000e+00 : f32
    %cst_92 = arith.constant 1.700000e+01 : f32
    %288 = vector.broadcast %cst_91 : f32 to vector<1x128xf32>
    %289 = arith.maximumf %288, %284 : vector<1x128xf32>
    %290 = vector.broadcast %cst_92 : f32 to vector<1x128xf32>
    %291 = arith.minimumf %290, %289 : vector<1x128xf32>
    %292 = arith.fptosi %291 : vector<1x128xf32> to vector<1x128xi32>
    %c1_i32_93 = arith.constant 1 : i32
    %293 = vector.broadcast %c1_i32_93 : i32 to vector<1x128xi32>
    %294 = arith.addi %292, %293 : vector<1x128xi32>
    %cst_94 = arith.constant -2.000000e+00 : f32
    %cst_95 = arith.constant 1.700000e+01 : f32
    %295 = vector.broadcast %cst_94 : f32 to vector<1x128xf32>
    %296 = arith.maximumf %295, %285 : vector<1x128xf32>
    %297 = vector.broadcast %cst_95 : f32 to vector<1x128xf32>
    %298 = arith.minimumf %297, %296 : vector<1x128xf32>
    %299 = arith.fptosi %298 : vector<1x128xf32> to vector<1x128xi32>
    %c1_i32_96 = arith.constant 1 : i32
    %300 = vector.broadcast %c1_i32_96 : i32 to vector<1x128xi32>
    %301 = arith.addi %299, %300 : vector<1x128xi32>
    %302 = vector.broadcast %294 : vector<1x128xi32> to vector<24x128xi32>
    %303 = arith.cmpi eq, %51, %302 : vector<24x128xi32>
    %cst_97 = arith.constant 1.000000e+00 : f32
    %304 = vector.broadcast %cst_97 : f32 to vector<1x128xf32>
    %305 = arith.subf %304, %286 : vector<1x128xf32>
    %cst_98 = arith.constant 0.000000e+00 : f32
    %306 = vector.shape_cast %305 : vector<1x128xf32> to vector<1x128xf32>
    %307 = vector.broadcast %306 : vector<1x128xf32> to vector<24x128xf32>
    %308 = vector.broadcast %cst_98 : f32 to vector<24x128xf32>
    %309 = arith.select %303, %307, %308 : vector<24x128xi1>, vector<24x128xf32>
    %c1_i32_99 = arith.constant 1 : i32
    %310 = vector.broadcast %c1_i32_99 : i32 to vector<1x128xi32>
    %311 = arith.addi %294, %310 : vector<1x128xi32>
    %312 = vector.broadcast %311 : vector<1x128xi32> to vector<24x128xi32>
    %313 = arith.cmpi eq, %51, %312 : vector<24x128xi32>
    %cst_100 = arith.constant 0.000000e+00 : f32
    %314 = vector.shape_cast %286 : vector<1x128xf32> to vector<1x128xf32>
    %315 = vector.broadcast %314 : vector<1x128xf32> to vector<24x128xf32>
    %316 = vector.broadcast %cst_100 : f32 to vector<24x128xf32>
    %317 = arith.select %313, %315, %316 : vector<24x128xi1>, vector<24x128xf32>
    %318 = arith.addf %309, %317 : vector<24x128xf32>
    %319 = vector.broadcast %301 : vector<1x128xi32> to vector<18x128xi32>
    %320 = arith.cmpi eq, %52, %319 : vector<18x128xi32>
    %cst_101 = arith.constant 1.000000e+00 : f32
    %321 = vector.broadcast %cst_101 : f32 to vector<1x128xf32>
    %322 = arith.subf %321, %287 : vector<1x128xf32>
    %cst_102 = arith.constant 0.000000e+00 : f32
    %323 = vector.shape_cast %322 : vector<1x128xf32> to vector<1x128xf32>
    %324 = vector.broadcast %323 : vector<1x128xf32> to vector<18x128xf32>
    %325 = vector.broadcast %cst_102 : f32 to vector<18x128xf32>
    %326 = arith.select %320, %324, %325 : vector<18x128xi1>, vector<18x128xf32>
    %c1_i32_103 = arith.constant 1 : i32
    %327 = vector.broadcast %c1_i32_103 : i32 to vector<1x128xi32>
    %328 = arith.addi %301, %327 : vector<1x128xi32>
    %329 = vector.broadcast %328 : vector<1x128xi32> to vector<18x128xi32>
    %330 = arith.cmpi eq, %52, %329 : vector<18x128xi32>
    %cst_104 = arith.constant 0.000000e+00 : f32
    %331 = vector.shape_cast %287 : vector<1x128xf32> to vector<1x128xf32>
    %332 = vector.broadcast %331 : vector<1x128xf32> to vector<18x128xf32>
    %333 = vector.broadcast %cst_104 : f32 to vector<18x128xf32>
    %334 = arith.select %330, %332, %333 : vector<18x128xi1>, vector<18x128xf32>
    %335 = arith.addf %326, %334 : vector<18x128xf32>
    %336 = vector.extract_strided_slice %38 {offsets = [8, 0], sizes = [1, 128], strides = [1, 1]} : vector<18x128xf32> to vector<1x128xf32>
    %337 = vector.extract_strided_slice %38 {offsets = [9, 0], sizes = [1, 128], strides = [1, 1]} : vector<18x128xf32> to vector<1x128xf32>
    %cst_105 = arith.constant 1.000000e+00 : f32
    %338 = vector.broadcast %cst_105 : f32 to vector<1x128xf32>
    %339 = arith.subf %47, %338 : vector<1x128xf32>
    %cst_106 = arith.constant 1.000000e+00 : f32
    %340 = vector.broadcast %cst_106 : f32 to vector<1x128xf32>
    %341 = arith.addf %339, %340 : vector<1x128xf32>
    %342 = arith.addf %341, %336 : vector<1x128xf32>
    %cst_107 = arith.constant 1.000000e+00 : f32
    %343 = vector.broadcast %cst_107 : f32 to vector<1x128xf32>
    %344 = arith.subf %48, %343 : vector<1x128xf32>
    %cst_108 = arith.constant 1.000000e+00 : f32
    %345 = vector.broadcast %cst_108 : f32 to vector<1x128xf32>
    %346 = arith.addf %344, %345 : vector<1x128xf32>
    %347 = arith.addf %346, %337 : vector<1x128xf32>
    %348 = math.floor %342 : vector<1x128xf32>
    %349 = math.floor %347 : vector<1x128xf32>
    %350 = arith.subf %342, %348 : vector<1x128xf32>
    %351 = arith.subf %347, %349 : vector<1x128xf32>
    %cst_109 = arith.constant -2.000000e+00 : f32
    %cst_110 = arith.constant 1.700000e+01 : f32
    %352 = vector.broadcast %cst_109 : f32 to vector<1x128xf32>
    %353 = arith.maximumf %352, %348 : vector<1x128xf32>
    %354 = vector.broadcast %cst_110 : f32 to vector<1x128xf32>
    %355 = arith.minimumf %354, %353 : vector<1x128xf32>
    %356 = arith.fptosi %355 : vector<1x128xf32> to vector<1x128xi32>
    %c1_i32_111 = arith.constant 1 : i32
    %357 = vector.broadcast %c1_i32_111 : i32 to vector<1x128xi32>
    %358 = arith.addi %356, %357 : vector<1x128xi32>
    %cst_112 = arith.constant -2.000000e+00 : f32
    %cst_113 = arith.constant 1.700000e+01 : f32
    %359 = vector.broadcast %cst_112 : f32 to vector<1x128xf32>
    %360 = arith.maximumf %359, %349 : vector<1x128xf32>
    %361 = vector.broadcast %cst_113 : f32 to vector<1x128xf32>
    %362 = arith.minimumf %361, %360 : vector<1x128xf32>
    %363 = arith.fptosi %362 : vector<1x128xf32> to vector<1x128xi32>
    %c1_i32_114 = arith.constant 1 : i32
    %364 = vector.broadcast %c1_i32_114 : i32 to vector<1x128xi32>
    %365 = arith.addi %363, %364 : vector<1x128xi32>
    %366 = vector.broadcast %358 : vector<1x128xi32> to vector<24x128xi32>
    %367 = arith.cmpi eq, %51, %366 : vector<24x128xi32>
    %cst_115 = arith.constant 1.000000e+00 : f32
    %368 = vector.broadcast %cst_115 : f32 to vector<1x128xf32>
    %369 = arith.subf %368, %350 : vector<1x128xf32>
    %cst_116 = arith.constant 0.000000e+00 : f32
    %370 = vector.shape_cast %369 : vector<1x128xf32> to vector<1x128xf32>
    %371 = vector.broadcast %370 : vector<1x128xf32> to vector<24x128xf32>
    %372 = vector.broadcast %cst_116 : f32 to vector<24x128xf32>
    %373 = arith.select %367, %371, %372 : vector<24x128xi1>, vector<24x128xf32>
    %c1_i32_117 = arith.constant 1 : i32
    %374 = vector.broadcast %c1_i32_117 : i32 to vector<1x128xi32>
    %375 = arith.addi %358, %374 : vector<1x128xi32>
    %376 = vector.broadcast %375 : vector<1x128xi32> to vector<24x128xi32>
    %377 = arith.cmpi eq, %51, %376 : vector<24x128xi32>
    %cst_118 = arith.constant 0.000000e+00 : f32
    %378 = vector.shape_cast %350 : vector<1x128xf32> to vector<1x128xf32>
    %379 = vector.broadcast %378 : vector<1x128xf32> to vector<24x128xf32>
    %380 = vector.broadcast %cst_118 : f32 to vector<24x128xf32>
    %381 = arith.select %377, %379, %380 : vector<24x128xi1>, vector<24x128xf32>
    %382 = arith.addf %373, %381 : vector<24x128xf32>
    %383 = vector.broadcast %365 : vector<1x128xi32> to vector<18x128xi32>
    %384 = arith.cmpi eq, %52, %383 : vector<18x128xi32>
    %cst_119 = arith.constant 1.000000e+00 : f32
    %385 = vector.broadcast %cst_119 : f32 to vector<1x128xf32>
    %386 = arith.subf %385, %351 : vector<1x128xf32>
    %cst_120 = arith.constant 0.000000e+00 : f32
    %387 = vector.shape_cast %386 : vector<1x128xf32> to vector<1x128xf32>
    %388 = vector.broadcast %387 : vector<1x128xf32> to vector<18x128xf32>
    %389 = vector.broadcast %cst_120 : f32 to vector<18x128xf32>
    %390 = arith.select %384, %388, %389 : vector<18x128xi1>, vector<18x128xf32>
    %c1_i32_121 = arith.constant 1 : i32
    %391 = vector.broadcast %c1_i32_121 : i32 to vector<1x128xi32>
    %392 = arith.addi %365, %391 : vector<1x128xi32>
    %393 = vector.broadcast %392 : vector<1x128xi32> to vector<18x128xi32>
    %394 = arith.cmpi eq, %52, %393 : vector<18x128xi32>
    %cst_122 = arith.constant 0.000000e+00 : f32
    %395 = vector.shape_cast %351 : vector<1x128xf32> to vector<1x128xf32>
    %396 = vector.broadcast %395 : vector<1x128xf32> to vector<18x128xf32>
    %397 = vector.broadcast %cst_122 : f32 to vector<18x128xf32>
    %398 = arith.select %394, %396, %397 : vector<18x128xi1>, vector<18x128xf32>
    %399 = arith.addf %390, %398 : vector<18x128xf32>
    %400 = vector.extract_strided_slice %38 {offsets = [10, 0], sizes = [1, 128], strides = [1, 1]} : vector<18x128xf32> to vector<1x128xf32>
    %401 = vector.extract_strided_slice %38 {offsets = [11, 0], sizes = [1, 128], strides = [1, 1]} : vector<18x128xf32> to vector<1x128xf32>
    %cst_123 = arith.constant 1.000000e+00 : f32
    %402 = vector.broadcast %cst_123 : f32 to vector<1x128xf32>
    %403 = arith.subf %47, %402 : vector<1x128xf32>
    %cst_124 = arith.constant 1.000000e+00 : f32
    %404 = vector.broadcast %cst_124 : f32 to vector<1x128xf32>
    %405 = arith.addf %403, %404 : vector<1x128xf32>
    %406 = arith.addf %405, %400 : vector<1x128xf32>
    %cst_125 = arith.constant 1.000000e+00 : f32
    %407 = vector.broadcast %cst_125 : f32 to vector<1x128xf32>
    %408 = arith.subf %48, %407 : vector<1x128xf32>
    %cst_126 = arith.constant 2.000000e+00 : f32
    %409 = vector.broadcast %cst_126 : f32 to vector<1x128xf32>
    %410 = arith.addf %408, %409 : vector<1x128xf32>
    %411 = arith.addf %410, %401 : vector<1x128xf32>
    %412 = math.floor %406 : vector<1x128xf32>
    %413 = math.floor %411 : vector<1x128xf32>
    %414 = arith.subf %406, %412 : vector<1x128xf32>
    %415 = arith.subf %411, %413 : vector<1x128xf32>
    %cst_127 = arith.constant -2.000000e+00 : f32
    %cst_128 = arith.constant 1.700000e+01 : f32
    %416 = vector.broadcast %cst_127 : f32 to vector<1x128xf32>
    %417 = arith.maximumf %416, %412 : vector<1x128xf32>
    %418 = vector.broadcast %cst_128 : f32 to vector<1x128xf32>
    %419 = arith.minimumf %418, %417 : vector<1x128xf32>
    %420 = arith.fptosi %419 : vector<1x128xf32> to vector<1x128xi32>
    %c1_i32_129 = arith.constant 1 : i32
    %421 = vector.broadcast %c1_i32_129 : i32 to vector<1x128xi32>
    %422 = arith.addi %420, %421 : vector<1x128xi32>
    %cst_130 = arith.constant -2.000000e+00 : f32
    %cst_131 = arith.constant 1.700000e+01 : f32
    %423 = vector.broadcast %cst_130 : f32 to vector<1x128xf32>
    %424 = arith.maximumf %423, %413 : vector<1x128xf32>
    %425 = vector.broadcast %cst_131 : f32 to vector<1x128xf32>
    %426 = arith.minimumf %425, %424 : vector<1x128xf32>
    %427 = arith.fptosi %426 : vector<1x128xf32> to vector<1x128xi32>
    %c1_i32_132 = arith.constant 1 : i32
    %428 = vector.broadcast %c1_i32_132 : i32 to vector<1x128xi32>
    %429 = arith.addi %427, %428 : vector<1x128xi32>
    %430 = vector.broadcast %422 : vector<1x128xi32> to vector<24x128xi32>
    %431 = arith.cmpi eq, %51, %430 : vector<24x128xi32>
    %cst_133 = arith.constant 1.000000e+00 : f32
    %432 = vector.broadcast %cst_133 : f32 to vector<1x128xf32>
    %433 = arith.subf %432, %414 : vector<1x128xf32>
    %cst_134 = arith.constant 0.000000e+00 : f32
    %434 = vector.shape_cast %433 : vector<1x128xf32> to vector<1x128xf32>
    %435 = vector.broadcast %434 : vector<1x128xf32> to vector<24x128xf32>
    %436 = vector.broadcast %cst_134 : f32 to vector<24x128xf32>
    %437 = arith.select %431, %435, %436 : vector<24x128xi1>, vector<24x128xf32>
    %c1_i32_135 = arith.constant 1 : i32
    %438 = vector.broadcast %c1_i32_135 : i32 to vector<1x128xi32>
    %439 = arith.addi %422, %438 : vector<1x128xi32>
    %440 = vector.broadcast %439 : vector<1x128xi32> to vector<24x128xi32>
    %441 = arith.cmpi eq, %51, %440 : vector<24x128xi32>
    %cst_136 = arith.constant 0.000000e+00 : f32
    %442 = vector.shape_cast %414 : vector<1x128xf32> to vector<1x128xf32>
    %443 = vector.broadcast %442 : vector<1x128xf32> to vector<24x128xf32>
    %444 = vector.broadcast %cst_136 : f32 to vector<24x128xf32>
    %445 = arith.select %441, %443, %444 : vector<24x128xi1>, vector<24x128xf32>
    %446 = arith.addf %437, %445 : vector<24x128xf32>
    %447 = vector.broadcast %429 : vector<1x128xi32> to vector<18x128xi32>
    %448 = arith.cmpi eq, %52, %447 : vector<18x128xi32>
    %cst_137 = arith.constant 1.000000e+00 : f32
    %449 = vector.broadcast %cst_137 : f32 to vector<1x128xf32>
    %450 = arith.subf %449, %415 : vector<1x128xf32>
    %cst_138 = arith.constant 0.000000e+00 : f32
    %451 = vector.shape_cast %450 : vector<1x128xf32> to vector<1x128xf32>
    %452 = vector.broadcast %451 : vector<1x128xf32> to vector<18x128xf32>
    %453 = vector.broadcast %cst_138 : f32 to vector<18x128xf32>
    %454 = arith.select %448, %452, %453 : vector<18x128xi1>, vector<18x128xf32>
    %c1_i32_139 = arith.constant 1 : i32
    %455 = vector.broadcast %c1_i32_139 : i32 to vector<1x128xi32>
    %456 = arith.addi %429, %455 : vector<1x128xi32>
    %457 = vector.broadcast %456 : vector<1x128xi32> to vector<18x128xi32>
    %458 = arith.cmpi eq, %52, %457 : vector<18x128xi32>
    %cst_140 = arith.constant 0.000000e+00 : f32
    %459 = vector.shape_cast %415 : vector<1x128xf32> to vector<1x128xf32>
    %460 = vector.broadcast %459 : vector<1x128xf32> to vector<18x128xf32>
    %461 = vector.broadcast %cst_140 : f32 to vector<18x128xf32>
    %462 = arith.select %458, %460, %461 : vector<18x128xi1>, vector<18x128xf32>
    %463 = arith.addf %454, %462 : vector<18x128xf32>
    %464 = tpu.concatenate %335, %399, %463 in 1 : vector<18x128xf32>, vector<18x128xf32>, vector<18x128xf32> -> vector<18x384xf32>
    %465 = tpu.concatenate %318, %382, %446 in 1 : vector<24x128xf32>, vector<24x128xf32>, vector<24x128xf32> -> vector<24x384xf32>
    %466 = arith.truncf %464 : vector<18x384xf32> to vector<18x384xbf16>
    %cst_141 = arith.constant dense<0.000000e+00> : vector<96x384xf32>
    %467 = tpu.matmul %50, %466, %cst_141 {dimension_numbers = #tpu.dot_dimension_numbers<[1], [0], [0], [1], [0, 0, 1, 1], [], []>} : vector<96x18xbf16>, vector<18x384xbf16>, vector<96x384xf32> -> vector<96x384xf32>
    %468 = vector.shape_cast %467 : vector<96x384xf32> to vector<4x24x384xf32>
    %469 = vector.shape_cast %465 : vector<24x384xf32> to vector<1x24x384xf32>
    %470 = vector.broadcast %469 : vector<1x24x384xf32> to vector<4x24x384xf32>
    %471 = arith.mulf %468, %470 : vector<4x24x384xf32>
    %cst_142 = arith.constant dense<0.000000e+00> : vector<4x384xf32>
    %472 = vector.multi_reduction <add>, %471, %cst_142 [1] : vector<4x24x384xf32> to vector<4x384xf32>
    %473 = vector.extract_strided_slice %472 {offsets = [0, 0], sizes = [4, 128], strides = [1, 1]} : vector<4x384xf32> to vector<4x128xf32>
    %474 = vector.extract_strided_slice %46 {offsets = [3, 0], sizes = [1, 128], strides = [1, 1]} : vector<9x128xf32> to vector<1x128xf32>
    %475 = vector.broadcast %474 : vector<1x128xf32> to vector<4x128xf32>
    %476 = arith.mulf %473, %475 : vector<4x128xf32>
    %477 = arith.truncf %476 : vector<4x128xf32> to vector<4x128xbf16>
    %c12_143 = arith.constant 12 : index
    %c0_144 = arith.constant 0 : index
    %478 = vector.load %arg10[%c12_143, %c0_144] : memref<36x128xbf16, #tpu.memory_space<vmem>>, vector<4x128xbf16>
    tpu.vector_store %arg10[%c12_143, %c0_144], %477 {strides = array<i32>} : memref<36x128xbf16, #tpu.memory_space<vmem>>, vector<4x128xbf16>,
    %479 = vector.extract_strided_slice %472 {offsets = [0, 128], sizes = [4, 128], strides = [1, 1]} : vector<4x384xf32> to vector<4x128xf32>
    %480 = vector.extract_strided_slice %46 {offsets = [4, 0], sizes = [1, 128], strides = [1, 1]} : vector<9x128xf32> to vector<1x128xf32>
    %481 = vector.broadcast %480 : vector<1x128xf32> to vector<4x128xf32>
    %482 = arith.mulf %479, %481 : vector<4x128xf32>
    %483 = arith.truncf %482 : vector<4x128xf32> to vector<4x128xbf16>
    %c16_145 = arith.constant 16 : index
    %c0_146 = arith.constant 0 : index
    %484 = vector.load %arg10[%c16_145, %c0_146] : memref<36x128xbf16, #tpu.memory_space<vmem>>, vector<4x128xbf16>
    tpu.vector_store %arg10[%c16_145, %c0_146], %483 {strides = array<i32>} : memref<36x128xbf16, #tpu.memory_space<vmem>>, vector<4x128xbf16>,
    %485 = vector.extract_strided_slice %472 {offsets = [0, 256], sizes = [4, 128], strides = [1, 1]} : vector<4x384xf32> to vector<4x128xf32>
    %486 = vector.extract_strided_slice %46 {offsets = [5, 0], sizes = [1, 128], strides = [1, 1]} : vector<9x128xf32> to vector<1x128xf32>
    %487 = vector.broadcast %486 : vector<1x128xf32> to vector<4x128xf32>
    %488 = arith.mulf %485, %487 : vector<4x128xf32>
    %489 = arith.truncf %488 : vector<4x128xf32> to vector<4x128xbf16>
    %c20_147 = arith.constant 20 : index
    %c0_148 = arith.constant 0 : index
    %490 = vector.load %arg10[%c20_147, %c0_148] : memref<36x128xbf16, #tpu.memory_space<vmem>>, vector<4x128xbf16>
    tpu.vector_store %arg10[%c20_147, %c0_148], %489 {strides = array<i32>} : memref<36x128xbf16, #tpu.memory_space<vmem>>, vector<4x128xbf16>,
    %491 = vector.extract_strided_slice %38 {offsets = [12, 0], sizes = [1, 128], strides = [1, 1]} : vector<18x128xf32> to vector<1x128xf32>
    %492 = vector.extract_strided_slice %38 {offsets = [13, 0], sizes = [1, 128], strides = [1, 1]} : vector<18x128xf32> to vector<1x128xf32>
    %cst_149 = arith.constant 1.000000e+00 : f32
    %493 = vector.broadcast %cst_149 : f32 to vector<1x128xf32>
    %494 = arith.subf %47, %493 : vector<1x128xf32>
    %cst_150 = arith.constant 2.000000e+00 : f32
    %495 = vector.broadcast %cst_150 : f32 to vector<1x128xf32>
    %496 = arith.addf %494, %495 : vector<1x128xf32>
    %497 = arith.addf %496, %491 : vector<1x128xf32>
    %cst_151 = arith.constant 1.000000e+00 : f32
    %498 = vector.broadcast %cst_151 : f32 to vector<1x128xf32>
    %499 = arith.subf %48, %498 : vector<1x128xf32>
    %cst_152 = arith.constant 0.000000e+00 : f32
    %500 = vector.broadcast %cst_152 : f32 to vector<1x128xf32>
    %501 = arith.addf %499, %500 : vector<1x128xf32>
    %502 = arith.addf %501, %492 : vector<1x128xf32>
    %503 = math.floor %497 : vector<1x128xf32>
    %504 = math.floor %502 : vector<1x128xf32>
    %505 = arith.subf %497, %503 : vector<1x128xf32>
    %506 = arith.subf %502, %504 : vector<1x128xf32>
    %cst_153 = arith.constant -2.000000e+00 : f32
    %cst_154 = arith.constant 1.700000e+01 : f32
    %507 = vector.broadcast %cst_153 : f32 to vector<1x128xf32>
    %508 = arith.maximumf %507, %503 : vector<1x128xf32>
    %509 = vector.broadcast %cst_154 : f32 to vector<1x128xf32>
    %510 = arith.minimumf %509, %508 : vector<1x128xf32>
    %511 = arith.fptosi %510 : vector<1x128xf32> to vector<1x128xi32>
    %c1_i32_155 = arith.constant 1 : i32
    %512 = vector.broadcast %c1_i32_155 : i32 to vector<1x128xi32>
    %513 = arith.addi %511, %512 : vector<1x128xi32>
    %cst_156 = arith.constant -2.000000e+00 : f32
    %cst_157 = arith.constant 1.700000e+01 : f32
    %514 = vector.broadcast %cst_156 : f32 to vector<1x128xf32>
    %515 = arith.maximumf %514, %504 : vector<1x128xf32>
    %516 = vector.broadcast %cst_157 : f32 to vector<1x128xf32>
    %517 = arith.minimumf %516, %515 : vector<1x128xf32>
    %518 = arith.fptosi %517 : vector<1x128xf32> to vector<1x128xi32>
    %c1_i32_158 = arith.constant 1 : i32
    %519 = vector.broadcast %c1_i32_158 : i32 to vector<1x128xi32>
    %520 = arith.addi %518, %519 : vector<1x128xi32>
    %521 = vector.broadcast %513 : vector<1x128xi32> to vector<24x128xi32>
    %522 = arith.cmpi eq, %51, %521 : vector<24x128xi32>
    %cst_159 = arith.constant 1.000000e+00 : f32
    %523 = vector.broadcast %cst_159 : f32 to vector<1x128xf32>
    %524 = arith.subf %523, %505 : vector<1x128xf32>
    %cst_160 = arith.constant 0.000000e+00 : f32
    %525 = vector.shape_cast %524 : vector<1x128xf32> to vector<1x128xf32>
    %526 = vector.broadcast %525 : vector<1x128xf32> to vector<24x128xf32>
    %527 = vector.broadcast %cst_160 : f32 to vector<24x128xf32>
    %528 = arith.select %522, %526, %527 : vector<24x128xi1>, vector<24x128xf32>
    %c1_i32_161 = arith.constant 1 : i32
    %529 = vector.broadcast %c1_i32_161 : i32 to vector<1x128xi32>
    %530 = arith.addi %513, %529 : vector<1x128xi32>
    %531 = vector.broadcast %530 : vector<1x128xi32> to vector<24x128xi32>
    %532 = arith.cmpi eq, %51, %531 : vector<24x128xi32>
    %cst_162 = arith.constant 0.000000e+00 : f32
    %533 = vector.shape_cast %505 : vector<1x128xf32> to vector<1x128xf32>
    %534 = vector.broadcast %533 : vector<1x128xf32> to vector<24x128xf32>
    %535 = vector.broadcast %cst_162 : f32 to vector<24x128xf32>
    %536 = arith.select %532, %534, %535 : vector<24x128xi1>, vector<24x128xf32>
    %537 = arith.addf %528, %536 : vector<24x128xf32>
    %538 = vector.broadcast %520 : vector<1x128xi32> to vector<18x128xi32>
    %539 = arith.cmpi eq, %52, %538 : vector<18x128xi32>
    %cst_163 = arith.constant 1.000000e+00 : f32
    %540 = vector.broadcast %cst_163 : f32 to vector<1x128xf32>
    %541 = arith.subf %540, %506 : vector<1x128xf32>
    %cst_164 = arith.constant 0.000000e+00 : f32
    %542 = vector.shape_cast %541 : vector<1x128xf32> to vector<1x128xf32>
    %543 = vector.broadcast %542 : vector<1x128xf32> to vector<18x128xf32>
    %544 = vector.broadcast %cst_164 : f32 to vector<18x128xf32>
    %545 = arith.select %539, %543, %544 : vector<18x128xi1>, vector<18x128xf32>
    %c1_i32_165 = arith.constant 1 : i32
    %546 = vector.broadcast %c1_i32_165 : i32 to vector<1x128xi32>
    %547 = arith.addi %520, %546 : vector<1x128xi32>
    %548 = vector.broadcast %547 : vector<1x128xi32> to vector<18x128xi32>
    %549 = arith.cmpi eq, %52, %548 : vector<18x128xi32>
    %cst_166 = arith.constant 0.000000e+00 : f32
    %550 = vector.shape_cast %506 : vector<1x128xf32> to vector<1x128xf32>
    %551 = vector.broadcast %550 : vector<1x128xf32> to vector<18x128xf32>
    %552 = vector.broadcast %cst_166 : f32 to vector<18x128xf32>
    %553 = arith.select %549, %551, %552 : vector<18x128xi1>, vector<18x128xf32>
    %554 = arith.addf %545, %553 : vector<18x128xf32>
    %555 = vector.extract_strided_slice %38 {offsets = [14, 0], sizes = [1, 128], strides = [1, 1]} : vector<18x128xf32> to vector<1x128xf32>
    %556 = vector.extract_strided_slice %38 {offsets = [15, 0], sizes = [1, 128], strides = [1, 1]} : vector<18x128xf32> to vector<1x128xf32>
    %cst_167 = arith.constant 1.000000e+00 : f32
    %557 = vector.broadcast %cst_167 : f32 to vector<1x128xf32>
    %558 = arith.subf %47, %557 : vector<1x128xf32>
    %cst_168 = arith.constant 2.000000e+00 : f32
    %559 = vector.broadcast %cst_168 : f32 to vector<1x128xf32>
    %560 = arith.addf %558, %559 : vector<1x128xf32>
    %561 = arith.addf %560, %555 : vector<1x128xf32>
    %cst_169 = arith.constant 1.000000e+00 : f32
    %562 = vector.broadcast %cst_169 : f32 to vector<1x128xf32>
    %563 = arith.subf %48, %562 : vector<1x128xf32>
    %cst_170 = arith.constant 1.000000e+00 : f32
    %564 = vector.broadcast %cst_170 : f32 to vector<1x128xf32>
    %565 = arith.addf %563, %564 : vector<1x128xf32>
    %566 = arith.addf %565, %556 : vector<1x128xf32>
    %567 = math.floor %561 : vector<1x128xf32>
    %568 = math.floor %566 : vector<1x128xf32>
    %569 = arith.subf %561, %567 : vector<1x128xf32>
    %570 = arith.subf %566, %568 : vector<1x128xf32>
    %cst_171 = arith.constant -2.000000e+00 : f32
    %cst_172 = arith.constant 1.700000e+01 : f32
    %571 = vector.broadcast %cst_171 : f32 to vector<1x128xf32>
    %572 = arith.maximumf %571, %567 : vector<1x128xf32>
    %573 = vector.broadcast %cst_172 : f32 to vector<1x128xf32>
    %574 = arith.minimumf %573, %572 : vector<1x128xf32>
    %575 = arith.fptosi %574 : vector<1x128xf32> to vector<1x128xi32>
    %c1_i32_173 = arith.constant 1 : i32
    %576 = vector.broadcast %c1_i32_173 : i32 to vector<1x128xi32>
    %577 = arith.addi %575, %576 : vector<1x128xi32>
    %cst_174 = arith.constant -2.000000e+00 : f32
    %cst_175 = arith.constant 1.700000e+01 : f32
    %578 = vector.broadcast %cst_174 : f32 to vector<1x128xf32>
    %579 = arith.maximumf %578, %568 : vector<1x128xf32>
    %580 = vector.broadcast %cst_175 : f32 to vector<1x128xf32>
    %581 = arith.minimumf %580, %579 : vector<1x128xf32>
    %582 = arith.fptosi %581 : vector<1x128xf32> to vector<1x128xi32>
    %c1_i32_176 = arith.constant 1 : i32
    %583 = vector.broadcast %c1_i32_176 : i32 to vector<1x128xi32>
    %584 = arith.addi %582, %583 : vector<1x128xi32>
    %585 = vector.broadcast %577 : vector<1x128xi32> to vector<24x128xi32>
    %586 = arith.cmpi eq, %51, %585 : vector<24x128xi32>
    %cst_177 = arith.constant 1.000000e+00 : f32
    %587 = vector.broadcast %cst_177 : f32 to vector<1x128xf32>
    %588 = arith.subf %587, %569 : vector<1x128xf32>
    %cst_178 = arith.constant 0.000000e+00 : f32
    %589 = vector.shape_cast %588 : vector<1x128xf32> to vector<1x128xf32>
    %590 = vector.broadcast %589 : vector<1x128xf32> to vector<24x128xf32>
    %591 = vector.broadcast %cst_178 : f32 to vector<24x128xf32>
    %592 = arith.select %586, %590, %591 : vector<24x128xi1>, vector<24x128xf32>
    %c1_i32_179 = arith.constant 1 : i32
    %593 = vector.broadcast %c1_i32_179 : i32 to vector<1x128xi32>
    %594 = arith.addi %577, %593 : vector<1x128xi32>
    %595 = vector.broadcast %594 : vector<1x128xi32> to vector<24x128xi32>
    %596 = arith.cmpi eq, %51, %595 : vector<24x128xi32>
    %cst_180 = arith.constant 0.000000e+00 : f32
    %597 = vector.shape_cast %569 : vector<1x128xf32> to vector<1x128xf32>
    %598 = vector.broadcast %597 : vector<1x128xf32> to vector<24x128xf32>
    %599 = vector.broadcast %cst_180 : f32 to vector<24x128xf32>
    %600 = arith.select %596, %598, %599 : vector<24x128xi1>, vector<24x128xf32>
    %601 = arith.addf %592, %600 : vector<24x128xf32>
    %602 = vector.broadcast %584 : vector<1x128xi32> to vector<18x128xi32>
    %603 = arith.cmpi eq, %52, %602 : vector<18x128xi32>
    %cst_181 = arith.constant 1.000000e+00 : f32
    %604 = vector.broadcast %cst_181 : f32 to vector<1x128xf32>
    %605 = arith.subf %604, %570 : vector<1x128xf32>
    %cst_182 = arith.constant 0.000000e+00 : f32
    %606 = vector.shape_cast %605 : vector<1x128xf32> to vector<1x128xf32>
    %607 = vector.broadcast %606 : vector<1x128xf32> to vector<18x128xf32>
    %608 = vector.broadcast %cst_182 : f32 to vector<18x128xf32>
    %609 = arith.select %603, %607, %608 : vector<18x128xi1>, vector<18x128xf32>
    %c1_i32_183 = arith.constant 1 : i32
    %610 = vector.broadcast %c1_i32_183 : i32 to vector<1x128xi32>
    %611 = arith.addi %584, %610 : vector<1x128xi32>
    %612 = vector.broadcast %611 : vector<1x128xi32> to vector<18x128xi32>
    %613 = arith.cmpi eq, %52, %612 : vector<18x128xi32>
    %cst_184 = arith.constant 0.000000e+00 : f32
    %614 = vector.shape_cast %570 : vector<1x128xf32> to vector<1x128xf32>
    %615 = vector.broadcast %614 : vector<1x128xf32> to vector<18x128xf32>
    %616 = vector.broadcast %cst_184 : f32 to vector<18x128xf32>
    %617 = arith.select %613, %615, %616 : vector<18x128xi1>, vector<18x128xf32>
    %618 = arith.addf %609, %617 : vector<18x128xf32>
    %619 = vector.extract_strided_slice %38 {offsets = [16, 0], sizes = [1, 128], strides = [1, 1]} : vector<18x128xf32> to vector<1x128xf32>
    %620 = vector.extract_strided_slice %38 {offsets = [17, 0], sizes = [1, 128], strides = [1, 1]} : vector<18x128xf32> to vector<1x128xf32>
    %cst_185 = arith.constant 1.000000e+00 : f32
    %621 = vector.broadcast %cst_185 : f32 to vector<1x128xf32>
    %622 = arith.subf %47, %621 : vector<1x128xf32>
    %cst_186 = arith.constant 2.000000e+00 : f32
    %623 = vector.broadcast %cst_186 : f32 to vector<1x128xf32>
    %624 = arith.addf %622, %623 : vector<1x128xf32>
    %625 = arith.addf %624, %619 : vector<1x128xf32>
    %cst_187 = arith.constant 1.000000e+00 : f32
    %626 = vector.broadcast %cst_187 : f32 to vector<1x128xf32>
    %627 = arith.subf %48, %626 : vector<1x128xf32>
    %cst_188 = arith.constant 2.000000e+00 : f32
    %628 = vector.broadcast %cst_188 : f32 to vector<1x128xf32>
    %629 = arith.addf %627, %628 : vector<1x128xf32>
    %630 = arith.addf %629, %620 : vector<1x128xf32>
    %631 = math.floor %625 : vector<1x128xf32>
    %632 = math.floor %630 : vector<1x128xf32>
    %633 = arith.subf %625, %631 : vector<1x128xf32>
    %634 = arith.subf %630, %632 : vector<1x128xf32>
    %cst_189 = arith.constant -2.000000e+00 : f32
    %cst_190 = arith.constant 1.700000e+01 : f32
    %635 = vector.broadcast %cst_189 : f32 to vector<1x128xf32>
    %636 = arith.maximumf %635, %631 : vector<1x128xf32>
    %637 = vector.broadcast %cst_190 : f32 to vector<1x128xf32>
    %638 = arith.minimumf %637, %636 : vector<1x128xf32>
    %639 = arith.fptosi %638 : vector<1x128xf32> to vector<1x128xi32>
    %c1_i32_191 = arith.constant 1 : i32
    %640 = vector.broadcast %c1_i32_191 : i32 to vector<1x128xi32>
    %641 = arith.addi %639, %640 : vector<1x128xi32>
    %cst_192 = arith.constant -2.000000e+00 : f32
    %cst_193 = arith.constant 1.700000e+01 : f32
    %642 = vector.broadcast %cst_192 : f32 to vector<1x128xf32>
    %643 = arith.maximumf %642, %632 : vector<1x128xf32>
    %644 = vector.broadcast %cst_193 : f32 to vector<1x128xf32>
    %645 = arith.minimumf %644, %643 : vector<1x128xf32>
    %646 = arith.fptosi %645 : vector<1x128xf32> to vector<1x128xi32>
    %c1_i32_194 = arith.constant 1 : i32
    %647 = vector.broadcast %c1_i32_194 : i32 to vector<1x128xi32>
    %648 = arith.addi %646, %647 : vector<1x128xi32>
    %649 = vector.broadcast %641 : vector<1x128xi32> to vector<24x128xi32>
    %650 = arith.cmpi eq, %51, %649 : vector<24x128xi32>
    %cst_195 = arith.constant 1.000000e+00 : f32
    %651 = vector.broadcast %cst_195 : f32 to vector<1x128xf32>
    %652 = arith.subf %651, %633 : vector<1x128xf32>
    %cst_196 = arith.constant 0.000000e+00 : f32
    %653 = vector.shape_cast %652 : vector<1x128xf32> to vector<1x128xf32>
    %654 = vector.broadcast %653 : vector<1x128xf32> to vector<24x128xf32>
    %655 = vector.broadcast %cst_196 : f32 to vector<24x128xf32>
    %656 = arith.select %650, %654, %655 : vector<24x128xi1>, vector<24x128xf32>
    %c1_i32_197 = arith.constant 1 : i32
    %657 = vector.broadcast %c1_i32_197 : i32 to vector<1x128xi32>
    %658 = arith.addi %641, %657 : vector<1x128xi32>
    %659 = vector.broadcast %658 : vector<1x128xi32> to vector<24x128xi32>
    %660 = arith.cmpi eq, %51, %659 : vector<24x128xi32>
    %cst_198 = arith.constant 0.000000e+00 : f32
    %661 = vector.shape_cast %633 : vector<1x128xf32> to vector<1x128xf32>
    %662 = vector.broadcast %661 : vector<1x128xf32> to vector<24x128xf32>
    %663 = vector.broadcast %cst_198 : f32 to vector<24x128xf32>
    %664 = arith.select %660, %662, %663 : vector<24x128xi1>, vector<24x128xf32>
    %665 = arith.addf %656, %664 : vector<24x128xf32>
    %666 = vector.broadcast %648 : vector<1x128xi32> to vector<18x128xi32>
    %667 = arith.cmpi eq, %52, %666 : vector<18x128xi32>
    %cst_199 = arith.constant 1.000000e+00 : f32
    %668 = vector.broadcast %cst_199 : f32 to vector<1x128xf32>
    %669 = arith.subf %668, %634 : vector<1x128xf32>
    %cst_200 = arith.constant 0.000000e+00 : f32
    %670 = vector.shape_cast %669 : vector<1x128xf32> to vector<1x128xf32>
    %671 = vector.broadcast %670 : vector<1x128xf32> to vector<18x128xf32>
    %672 = vector.broadcast %cst_200 : f32 to vector<18x128xf32>
    %673 = arith.select %667, %671, %672 : vector<18x128xi1>, vector<18x128xf32>
    %c1_i32_201 = arith.constant 1 : i32
    %674 = vector.broadcast %c1_i32_201 : i32 to vector<1x128xi32>
    %675 = arith.addi %648, %674 : vector<1x128xi32>
    %676 = vector.broadcast %675 : vector<1x128xi32> to vector<18x128xi32>
    %677 = arith.cmpi eq, %52, %676 : vector<18x128xi32>
    %cst_202 = arith.constant 0.000000e+00 : f32
    %678 = vector.shape_cast %634 : vector<1x128xf32> to vector<1x128xf32>
    %679 = vector.broadcast %678 : vector<1x128xf32> to vector<18x128xf32>
    %680 = vector.broadcast %cst_202 : f32 to vector<18x128xf32>
    %681 = arith.select %677, %679, %680 : vector<18x128xi1>, vector<18x128xf32>
    %682 = arith.addf %673, %681 : vector<18x128xf32>
    %683 = tpu.concatenate %554, %618, %682 in 1 : vector<18x128xf32>, vector<18x128xf32>, vector<18x128xf32> -> vector<18x384xf32>
    %684 = tpu.concatenate %537, %601, %665 in 1 : vector<24x128xf32>, vector<24x128xf32>, vector<24x128xf32> -> vector<24x384xf32>
    %685 = arith.truncf %683 : vector<18x384xf32> to vector<18x384xbf16>
    %cst_203 = arith.constant dense<0.000000e+00> : vector<96x384xf32>
    %686 = tpu.matmul %50, %685, %cst_203 {dimension_numbers = #tpu.dot_dimension_numbers<[1], [0], [0], [1], [0, 0, 1, 1], [], []>} : vector<96x18xbf16>, vector<18x384xbf16>, vector<96x384xf32> -> vector<96x384xf32>
    %687 = vector.shape_cast %686 : vector<96x384xf32> to vector<4x24x384xf32>
    %688 = vector.shape_cast %684 : vector<24x384xf32> to vector<1x24x384xf32>
    %689 = vector.broadcast %688 : vector<1x24x384xf32> to vector<4x24x384xf32>
    %690 = arith.mulf %687, %689 : vector<4x24x384xf32>
    %cst_204 = arith.constant dense<0.000000e+00> : vector<4x384xf32>
    %691 = vector.multi_reduction <add>, %690, %cst_204 [1] : vector<4x24x384xf32> to vector<4x384xf32>
    %692 = vector.extract_strided_slice %691 {offsets = [0, 0], sizes = [4, 128], strides = [1, 1]} : vector<4x384xf32> to vector<4x128xf32>
    %693 = vector.extract_strided_slice %46 {offsets = [6, 0], sizes = [1, 128], strides = [1, 1]} : vector<9x128xf32> to vector<1x128xf32>
    %694 = vector.broadcast %693 : vector<1x128xf32> to vector<4x128xf32>
    %695 = arith.mulf %692, %694 : vector<4x128xf32>
    %696 = arith.truncf %695 : vector<4x128xf32> to vector<4x128xbf16>
    %c24_205 = arith.constant 24 : index
    %c0_206 = arith.constant 0 : index
    %697 = vector.load %arg10[%c24_205, %c0_206] : memref<36x128xbf16, #tpu.memory_space<vmem>>, vector<4x128xbf16>
    tpu.vector_store %arg10[%c24_205, %c0_206], %696 {strides = array<i32>} : memref<36x128xbf16, #tpu.memory_space<vmem>>, vector<4x128xbf16>,
    %698 = vector.extract_strided_slice %691 {offsets = [0, 128], sizes = [4, 128], strides = [1, 1]} : vector<4x384xf32> to vector<4x128xf32>
    %699 = vector.extract_strided_slice %46 {offsets = [7, 0], sizes = [1, 128], strides = [1, 1]} : vector<9x128xf32> to vector<1x128xf32>
    %700 = vector.broadcast %699 : vector<1x128xf32> to vector<4x128xf32>
    %701 = arith.mulf %698, %700 : vector<4x128xf32>
    %702 = arith.truncf %701 : vector<4x128xf32> to vector<4x128xbf16>
    %c28_207 = arith.constant 28 : index
    %c0_208 = arith.constant 0 : index
    %703 = vector.load %arg10[%c28_207, %c0_208] : memref<36x128xbf16, #tpu.memory_space<vmem>>, vector<4x128xbf16>
    tpu.vector_store %arg10[%c28_207, %c0_208], %702 {strides = array<i32>} : memref<36x128xbf16, #tpu.memory_space<vmem>>, vector<4x128xbf16>,
    %704 = vector.extract_strided_slice %691 {offsets = [0, 256], sizes = [4, 128], strides = [1, 1]} : vector<4x384xf32> to vector<4x128xf32>
    %705 = vector.extract_strided_slice %46 {offsets = [8, 0], sizes = [1, 128], strides = [1, 1]} : vector<9x128xf32> to vector<1x128xf32>
    %706 = vector.broadcast %705 : vector<1x128xf32> to vector<4x128xf32>
    %707 = arith.mulf %704, %706 : vector<4x128xf32>
    %708 = arith.truncf %707 : vector<4x128xf32> to vector<4x128xbf16>
    %c32_209 = arith.constant 32 : index
    %c0_210 = arith.constant 0 : index
    %709 = vector.load %arg10[%c32_209, %c0_210] : memref<36x128xbf16, #tpu.memory_space<vmem>>, vector<4x128xbf16>
    tpu.vector_store %arg10[%c32_209, %c0_210], %708 {strides = array<i32>} : memref<36x128xbf16, #tpu.memory_space<vmem>>, vector<4x128xbf16>,
    %c0_211 = arith.constant 0 : index
    %c0_212 = arith.constant 0 : index
    %710 = vector.load %arg7[%c0_211, %c0_212] : memref<8x36xbf16, #tpu.memory_space<vmem>>, vector<8x36xbf16>
    %c0_213 = arith.constant 0 : index
    %c0_214 = arith.constant 0 : index
    %711 = vector.load %arg10[%c0_213, %c0_214] : memref<36x128xbf16, #tpu.memory_space<vmem>>, vector<36x128xbf16>
    %cst_215 = arith.constant dense<0.000000e+00> : vector<8x128xf32>
    %712 = tpu.matmul %710, %711, %cst_215 {dimension_numbers = #tpu.dot_dimension_numbers<[1], [0], [0], [1], [0, 0, 1, 1], [], []>} : vector<8x36xbf16>, vector<36x128xbf16>, vector<8x128xf32> -> vector<8x128xf32>
    %c0_216 = arith.constant 0 : index
    %c0_217 = arith.constant 0 : index
    %713 = vector.load %arg8[%c0_216, %c0_217] : memref<8x1xf32, #tpu.memory_space<vmem>>, vector<8x1xf32>
    %714 = vector.broadcast %713 : vector<8x1xf32> to vector<8x128xf32>
    %715 = arith.addf %712, %714 : vector<8x128xf32>
    %c0_218 = arith.constant 0 : index
    %c0_219 = arith.constant 0 : index
    %c0_220 = arith.constant 0 : index
    %716 = vector.load %arg9[%c0_218, %c0_219, %c0_220] : memref<1x8x128xf32, #tpu.memory_space<vmem>>, vector<1x8x128xf32>
    %717 = vector.shape_cast %716 : vector<1x8x128xf32> to vector<8x128xf32>
    %718 = vector.shape_cast %715 : vector<8x128xf32> to vector<1x8x128xf32>
    tpu.vector_store %arg9[%c0_218, %c0_219, %c0_220], %718 {strides = array<i32>} : memref<1x8x128xf32, #tpu.memory_space<vmem>>, vector<1x8x128xf32>,
    return
  }
  func.func @transform_0(%arg0: i32, %arg1: i32) -> (i32, i32, i32) {
    %c0_i32 = arith.constant 0 : i32
    %c0_i32_0 = arith.constant 0 : i32
    %c0_i32_1 = arith.constant 0 : i32
    return %arg0, %c0_i32, %c0_i32_0 : i32, i32, i32
  }
  func.func @transform_1(%arg0: i32, %arg1: i32) -> (i32, i32, i32, i32) {
    %c0_i32 = arith.constant 0 : i32
    %c0_i32_0 = arith.constant 0 : i32
    %c0_i32_1 = arith.constant 0 : i32
    %c0_i32_2 = arith.constant 0 : i32
    return %arg0, %c0_i32, %c0_i32_0, %c0_i32_1 : i32, i32, i32, i32
  }
  func.func @transform_2(%arg0: i32, %arg1: i32) -> (i32, i32) {
    %c0_i32 = arith.constant 0 : i32
    %c0_i32_0 = arith.constant 0 : i32
    return %c0_i32, %arg1 : i32, i32
  }
  func.func @transform_3(%arg0: i32, %arg1: i32) -> (i32, i32) {
    %c0_i32 = arith.constant 0 : i32
    %c0_i32_0 = arith.constant 0 : i32
    %c0_i32_1 = arith.constant 0 : i32
    return %c0_i32, %c0_i32_0 : i32, i32
  }
  func.func @transform_4(%arg0: i32, %arg1: i32) -> (i32, i32) {
    %c0_i32 = arith.constant 0 : i32
    %c0_i32_0 = arith.constant 0 : i32
    %c0_i32_1 = arith.constant 0 : i32
    return %c0_i32, %c0_i32_0 : i32, i32
  }
  func.func @transform_5(%arg0: i32, %arg1: i32) -> (i32, i32) {
    %c0_i32 = arith.constant 0 : i32
    %c0_i32_0 = arith.constant 0 : i32
    %c0_i32_1 = arith.constant 0 : i32
    return %c0_i32, %c0_i32_0 : i32, i32
  }
  func.func @transform_6(%arg0: i32, %arg1: i32) -> (i32, i32) {
    %c0_i32 = arith.constant 0 : i32
    %c0_i32_0 = arith.constant 0 : i32
    %c0_i32_1 = arith.constant 0 : i32
    return %c0_i32, %c0_i32_0 : i32, i32
  }
  func.func @transform_7(%arg0: i32, %arg1: i32) -> (i32, i32, i32) {
    %c0_i32 = arith.constant 0 : i32
    %c0_i32_0 = arith.constant 0 : i32
    return %arg0, %c0_i32, %arg1 : i32, i32, i32
  }
}

</mosaic_0001>

<llo_original>
// kernel: tpu_custom_call.1
$region0: #{tpu_custom_call.1}
  #allocation0 [shape = 'u32[]', space=smem, size = 0x4, offset = 0x4, fixed_abs, tag = 'smem constant byte address 0x4 - core index']
  #allocation1 [shape = 'u32[72,128]{1,0:T(1,128)}', space=vmem, size = 0x9000, scoped, tag = 'internal scratch']
  #allocation2 [shape = 'bf16[36,128]{1,0:T(8,128)(2,1)}', space=vmem, size = 0x2800, scoped, tag = 'scratch operand']
  %s0 = inlined_call_operand.vmem [shape: bf16[2,96,18], index: 0, kind: input, shape index: {}]
  %s1 = inlined_call_operand.vmem [shape: bf16[2,4,24,18], index: 1, kind: input, shape index: {}]
  %s2 = inlined_call_operand.vmem [shape: f32[2,256], index: 2, kind: input, shape index: {}]
  %s3 = inlined_call_operand.vmem [shape: bf16[27,36], index: 3, kind: input, shape index: {}]
  %s4 = inlined_call_operand.vmem [shape: f32[27,1], index: 4, kind: input, shape index: {}]
  %s5 = inlined_call_operand.vmem [shape: bf16[8,36], index: 5, kind: input, shape index: {}]
  %s6 = inlined_call_operand.vmem [shape: f32[8,1], index: 6, kind: input, shape index: {}]
  %s7 = inlined_call_operand.hbm [shape: f32[2,8,256], index: 7, kind: output, shape index: {}]
  %s8 = sld [smem:[#allocation0]]
  $region61: #{tpu_custom_call.1} parent=0
    _
  %s10 = ssub.s32 1, %s8
  %s11 = scalar_select 0, %s10, %s8
  $region1: #{tpu_custom_call.1} parent=0
    #allocation3 [shape = 'u8[8192]{0}', space=vmem, size = 0x2000, scoped, tag = 'output window, operand 0']
    #allocation4 [shape = 's32[2]{0}', space=sflag, size = 0x8, scoped, tag = 'scoped memory for tpu_custom_call.1']
    %12 = vsyncpa [#allocation4], 0
    %s13 = scalar_lea.sflag [#allocation4], 1
    %14 = vsyncpa %s13, 0
    loop: start=0, step=1, limit=6
    $region2: #{tpu_custom_call.1} parent=1 // loop_pre_header
      _
    $region3: #{tpu_custom_call.1} parent=1 // loop_header
      %s16 = sphi 0, %s20
      %p17 = scmp.ge.s32.totalorder %s16, 6
      %s23 = sphi 0, %s35
      %s24 = sphi 0, %s31
      %s25 = sphi 0, %s23
      %s26 = sphi 0, %s24
      %s27 = sphi 0, %s25
      %s28 = sphi 0, %s26
      %s38 = sphi 0, %s40
      %s41 = sphi 0, %s38
      %s42 = sphi 0, %s41
      %s58 = sphi 0, %s42
      %s64 = sphi 0, %s66
      %s67 = sphi 0, %s64
      %s68 = sphi 0, %s67
      %s84 = sphi 0, %s68
      %s90 = sphi 0, %s92
      %s93 = sphi 0, %s90
      %s94 = sphi 0, %s93
      %s110 = sphi 0, %s94
      %s114 = sphi 0, %s114
      %s116 = sphi 0, %s114
      %s117 = sphi 0, %s116
      %s131 = sphi 0, %s117
      %s135 = sphi 0, %s135
      %s137 = sphi 0, %s135
      %s138 = sphi 0, %s137
      %s152 = sphi 0, %s138
      %s156 = sphi 0, %s156
      %s158 = sphi 0, %s156
      %s159 = sphi 0, %s158
      %s173 = sphi 0, %s159
      %s177 = sphi 0, %s177
      %s179 = sphi 0, %s177
      %s180 = sphi 0, %s179
      %s194 = sphi 0, %s180
      %s202 = sphi 0, %s204
      %s205 = sphi 0, %s202
      %s206 = sphi 0, %s205
      %s222 = sphi 0, %s206
    $region4: #{tpu_custom_call.1} parent=1 // loop_header_branch
      %19 = sbr.rel (%p17) target = $region8
    $region5: #{tpu_custom_call.1} parent=1 // loop_body
      %s21 = ssub.s32 %s16, 1
      %s22 = ssub.s32 %s16, 2
      %s29 = sadd.s32 1, %s24
      %p30 = scmp.ge.s32.totalorder %s29, 2
      %s31 = scalar_select %p30, 0, %s29
      %s32 = sadd.s32 1, %s23
      %s33 = scalar_select %p30, %s32, %s23
      %p34 = scmp.ge.s32.totalorder %s33, 2
      %s35 = scalar_select %p34, 0, %s33
      %s36 = ssub.s32 %s23, %s35
      %p37 = scmp.eq.s32.totalorder %s36, 0
      %s39 = sadd.s32 %s38, 1
      %s40 = scalar_select %p37, %s38, %s39
      %p43 = pneg %p37
      %p44 = scmp.eq.s32.totalorder %s16, 3
      %p45 = por %p43, %p44
      %p46 = scmp.ne.s32.totalorder %s38, %s41
      %p47 = scmp.eq.s32.totalorder %s16, 0
      %p48 = por %p46, %p47
      %p49 = scmp.ne.s32.totalorder %s38, %s41
      %p50 = scmp.eq.s32.totalorder %s21, 3
      %p51 = por %p49, %p50
      %p52 = scmp.ne.s32.totalorder %s41, %s42
      %p53 = scmp.eq.s32.totalorder %s21, 0
      %p54 = por %p52, %p53
      %p55 = scmp.ne.s32.totalorder %s41, %s42
      %p56 = scmp.eq.s32.totalorder %s22, 3
      %p57 = por %p55, %p56
      %p59 = scmp.ne.s32.totalorder %s42, %s58
      %p60 = scmp.eq.s32.totalorder %s22, 0
      %p61 = por %p59, %p60
      %s62 = ssub.s32 %s23, %s35
      %p63 = scmp.eq.s32.totalorder %s62, 0
      %s65 = sadd.s32 %s64, 1
      %s66 = scalar_select %p63, %s64, %s65
      %p69 = pneg %p63
      %p70 = scmp.eq.s32.totalorder %s16, 3
      %p71 = por %p69, %p70
      %p72 = scmp.ne.s32.totalorder %s64, %s67
      %p73 = scmp.eq.s32.totalorder %s16, 0
      %p74 = por %p72, %p73
      %p75 = scmp.ne.s32.totalorder %s64, %s67
      %p76 = scmp.eq.s32.totalorder %s21, 3
      %p77 = por %p75, %p76
      %p78 = scmp.ne.s32.totalorder %s67, %s68
      %p79 = scmp.eq.s32.totalorder %s21, 0
      %p80 = por %p78, %p79
      %p81 = scmp.ne.s32.totalorder %s67, %s68
      %p82 = scmp.eq.s32.totalorder %s22, 3
      %p83 = por %p81, %p82
      %p85 = scmp.ne.s32.totalorder %s68, %s84
      %p86 = scmp.eq.s32.totalorder %s22, 0
      %p87 = por %p85, %p86
      %s88 = ssub.s32 %s24, %s31
      %p89 = scmp.eq.s32.totalorder %s88, 0
      %s91 = sadd.s32 %s90, 1
      %s92 = scalar_select %p89, %s90, %s91
      %p95 = pneg %p89
      %p96 = scmp.eq.s32.totalorder %s16, 3
      %p97 = por %p95, %p96
      %p98 = scmp.ne.s32.totalorder %s90, %s93
      %p99 = scmp.eq.s32.totalorder %s16, 0
      %p100 = por %p98, %p99
      %p101 = scmp.ne.s32.totalorder %s90, %s93
      %p102 = scmp.eq.s32.totalorder %s21, 3
      %p103 = por %p101, %p102
      %p104 = scmp.ne.s32.totalorder %s93, %s94
      %p105 = scmp.eq.s32.totalorder %s21, 0
      %p106 = por %p104, %p105
      %p107 = scmp.ne.s32.totalorder %s93, %s94
      %p108 = scmp.eq.s32.totalorder %s22, 3
      %p109 = por %p107, %p108
      %p111 = scmp.ne.s32.totalorder %s94, %s110
      %p112 = scmp.eq.s32.totalorder %s22, 0
      %p113 = por %p111, %p112
      %s115 = sadd.s32 %s114, 1
      %p118 = scmp.eq.s32.totalorder %s16, 3
      %p119 = scmp.ne.s32.totalorder %s114, %s116
      %p120 = scmp.eq.s32.totalorder %s16, 0
      %p121 = por %p119, %p120
      %p122 = scmp.ne.s32.totalorder %s114, %s116
      %p123 = scmp.eq.s32.totalorder %s21, 3
      %p124 = por %p122, %p123
      %p125 = scmp.ne.s32.totalorder %s116, %s117
      %p126 = scmp.eq.s32.totalorder %s21, 0
      %p127 = por %p125, %p126
      %p128 = scmp.ne.s32.totalorder %s116, %s117
      %p129 = scmp.eq.s32.totalorder %s22, 3
      %p130 = por %p128, %p129
      %p132 = scmp.ne.s32.totalorder %s117, %s131
      %p133 = scmp.eq.s32.totalorder %s22, 0
      %p134 = por %p132, %p133
      %s136 = sadd.s32 %s135, 1
      %p139 = scmp.eq.s32.totalorder %s16, 3
      %p140 = scmp.ne.s32.totalorder %s135, %s137
      %p141 = scmp.eq.s32.totalorder %s16, 0
      %p142 = por %p140, %p141
      %p143 = scmp.ne.s32.totalorder %s135, %s137
      %p144 = scmp.eq.s32.totalorder %s21, 3
      %p145 = por %p143, %p144
      %p146 = scmp.ne.s32.totalorder %s137, %s138
      %p147 = scmp.eq.s32.totalorder %s21, 0
      %p148 = por %p146, %p147
      %p149 = scmp.ne.s32.totalorder %s137, %s138
      %p150 = scmp.eq.s32.totalorder %s22, 3
      %p151 = por %p149, %p150
      %p153 = scmp.ne.s32.totalorder %s138, %s152
      %p154 = scmp.eq.s32.totalorder %s22, 0
      %p155 = por %p153, %p154
      %s157 = sadd.s32 %s156, 1
      %p160 = scmp.eq.s32.totalorder %s16, 3
      %p161 = scmp.ne.s32.totalorder %s156, %s158
      %p162 = scmp.eq.s32.totalorder %s16, 0
      %p163 = por %p161, %p162
      %p164 = scmp.ne.s32.totalorder %s156, %s158
      %p165 = scmp.eq.s32.totalorder %s21, 3
      %p166 = por %p164, %p165
      %p167 = scmp.ne.s32.totalorder %s158, %s159
      %p168 = scmp.eq.s32.totalorder %s21, 0
      %p169 = por %p167, %p168
      %p170 = scmp.ne.s32.totalorder %s158, %s159
      %p171 = scmp.eq.s32.totalorder %s22, 3
      %p172 = por %p170, %p171
      %p174 = scmp.ne.s32.totalorder %s159, %s173
      %p175 = scmp.eq.s32.totalorder %s22, 0
      %p176 = por %p174, %p175
      %s178 = sadd.s32 %s177, 1
      %p181 = scmp.eq.s32.totalorder %s16, 3
      %p182 = scmp.ne.s32.totalorder %s177, %s179
      %p183 = scmp.eq.s32.totalorder %s16, 0
      %p184 = por %p182, %p183
      %p185 = scmp.ne.s32.totalorder %s177, %s179
      %p186 = scmp.eq.s32.totalorder %s21, 3
      %p187 = por %p185, %p186
      %p188 = scmp.ne.s32.totalorder %s179, %s180
      %p189 = scmp.eq.s32.totalorder %s21, 0
      %p190 = por %p188, %p189
      %p191 = scmp.ne.s32.totalorder %s179, %s180
      %p192 = scmp.eq.s32.totalorder %s22, 3
      %p193 = por %p191, %p192
      %p195 = scmp.ne.s32.totalorder %s180, %s194
      %p196 = scmp.eq.s32.totalorder %s22, 0
      %p197 = por %p195, %p196
      %s198 = ssub.s32 %s23, %s35
      %s199 = ssub.s32 %s24, %s31
      %s200 = sor.u32 %s198, %s199
      %p201 = scmp.eq.s32.totalorder %s200, 0
      %s203 = sadd.s32 %s202, 1
      %s204 = scalar_select %p201, %s202, %s203
      %p207 = pneg %p201
      %p208 = scmp.eq.s32.totalorder %s16, 3
      %p209 = por %p207, %p208
      %p210 = scmp.ne.s32.totalorder %s202, %s205
      %p211 = scmp.eq.s32.totalorder %s16, 0
      %p212 = por %p210, %p211
      %p213 = scmp.ne.s32.totalorder %s202, %s205
      %p214 = scmp.eq.s32.totalorder %s21, 3
      %p215 = por %p213, %p214
      %p216 = scmp.ne.s32.totalorder %s205, %s206
      %p217 = scmp.eq.s32.totalorder %s21, 0
      %p218 = por %p216, %p217
      %p219 = scmp.ne.s32.totalorder %s205, %s206
      %p220 = scmp.eq.s32.totalorder %s22, 3
      %p221 = por %p219, %p220
      %p223 = scmp.ne.s32.totalorder %s206, %s222
      %p224 = scmp.eq.s32.totalorder %s22, 0
      %p225 = por %p223, %p224
      %p226 = scmp.le.s32.totalorder 1, %s16
      %p227 = scmp.lt.s32.totalorder %s16, 5
      %p228 = pnand %p226, %p227
      %p229 = pneg %p228
      // Predicated region
      $region9: #{tpu_custom_call.1} parent=5 // pred_check
        _
      $region10: #{tpu_custom_call.1} parent=5 // pred_check_branch
        %231 = sbr.rel (%p228) target = $region12
      $region11: #{tpu_custom_call.1} parent=5 // pred_region
        %s232 = ssub.s32 %s16, 1
        // Predicated region
        $region13: #{tpu_custom_call.1} parent=11 // pred_check
          %p233 = pneg %p127
        $region14: #{tpu_custom_call.1} parent=11 // pred_check_branch
          %235 = sbr.rel (%p233) target = $region16
        $region15: #{tpu_custom_call.1} parent=11 // pred_region
          _
        $region16: #{tpu_custom_call.1} parent=11 // pred_fallthru
          _
        // Predicated region
        $region17: #{tpu_custom_call.1} parent=11 // pred_check
          %p236 = pneg %p148
        $region18: #{tpu_custom_call.1} parent=11 // pred_check_branch
          %238 = sbr.rel (%p236) target = $region20
        $region19: #{tpu_custom_call.1} parent=11 // pred_region
          _
        $region20: #{tpu_custom_call.1} parent=11 // pred_fallthru
          _
        // Predicated region
        $region21: #{tpu_custom_call.1} parent=11 // pred_check
          %p239 = pneg %p169
        $region22: #{tpu_custom_call.1} parent=11 // pred_check_branch
          %241 = sbr.rel (%p239) target = $region24
        $region23: #{tpu_custom_call.1} parent=11 // pred_region
          _
        $region24: #{tpu_custom_call.1} parent=11 // pred_fallthru
          _
        // Predicated region
        $region25: #{tpu_custom_call.1} parent=11 // pred_check
          %p242 = pneg %p190
        $region26: #{tpu_custom_call.1} parent=11 // pred_check_branch
          %244 = sbr.rel (%p242) target = $region28
        $region27: #{tpu_custom_call.1} parent=11 // pred_region
          _
        $region28: #{tpu_custom_call.1} parent=11 // pred_fallthru
          _
      $region12: #{tpu_custom_call.1} parent=5 // pred_fallthru
        _
      %p245 = scmp.lt.s32.totalorder %s16, 4
      // Predicated region
      $region29: #{tpu_custom_call.1} parent=5 // pred_check
        %p246 = pneg %p245
      $region30: #{tpu_custom_call.1} parent=5 // pred_check_branch
        %248 = sbr.rel (%p246) target = $region32
      $region31: #{tpu_custom_call.1} parent=5 // pred_region
        // Predicated region
        $region33: #{tpu_custom_call.1} parent=31 // pred_check
          %p249 = pneg %p48
        $region34: #{tpu_custom_call.1} parent=31 // pred_check_branch
          %251 = sbr.rel (%p249) target = $region36
        $region35: #{tpu_custom_call.1} parent=31 // pred_region
          %p252 = scmp.lt.s32.totalorder %s23, 1
          %s253 = scalar_select %p252, %s23, 1
          %s254 = smul.addr %s253, 12
          %s255 = smul.addr %s254, 4
          %s256 = scalar_lea.vmem %s0, %s255
        $region36: #{tpu_custom_call.1} parent=31 // pred_fallthru
          _
        // Predicated region
        $region37: #{tpu_custom_call.1} parent=31 // pred_check
          %p257 = pneg %p74
        $region38: #{tpu_custom_call.1} parent=31 // pred_check_branch
          %259 = sbr.rel (%p257) target = $region40
        $region39: #{tpu_custom_call.1} parent=31 // pred_region
          %p260 = scmp.lt.s32.totalorder %s23, 1
          %s261 = scalar_select %p260, %s23, 1
          %s262 = smul.addr %s261, 12
          %s263 = smul.addr %s262, 4
          %s264 = scalar_lea.vmem %s1, %s263
        $region40: #{tpu_custom_call.1} parent=31 // pred_fallthru
          _
        // Predicated region
        $region41: #{tpu_custom_call.1} parent=31 // pred_check
          %p265 = pneg %p100
        $region42: #{tpu_custom_call.1} parent=31 // pred_check_branch
          %267 = sbr.rel (%p265) target = $region44
        $region43: #{tpu_custom_call.1} parent=31 // pred_region
          %p268 = scmp.lt.s32.totalorder %s24, 1
          %s269 = scalar_select %p268, %s24, 1
          %s270 = smul.addr %s269, 2
          %s271 = scalar_lea.vmem %s2, %s270
        $region44: #{tpu_custom_call.1} parent=31 // pred_fallthru
          _
      $region32: #{tpu_custom_call.1} parent=5 // pred_fallthru
        _
      %p272 = scmp.le.s32.totalorder 1, %s16
      %p273 = scmp.lt.s32.totalorder %s16, 5
      %p274 = pnand %p272, %p273
      %p275 = pneg %p274
      // Predicated region
      $region45: #{tpu_custom_call.1} parent=5 // pred_check
        _
      $region46: #{tpu_custom_call.1} parent=5 // pred_check_branch
        %277 = sbr.rel (%p274) target = $region48
      $region47: #{tpu_custom_call.1} parent=5 // pred_region
        %s278 = ssub.s32 %s16, 1
        %p279 = scmp.lt.s32.totalorder %s25, 1
        %s280 = scalar_select %p279, %s25, 1
        %s281 = smul.addr %s280, 12
        %s282 = smul.addr %s281, 4
        %s283 = scalar_lea.vmem %s0, %s282
        %p284 = pneg %p54
        %p285 = pneg %p51
        %p286 = scmp.lt.s32.totalorder %s25, 1
        %s287 = scalar_select %p286, %s25, 1
        %s288 = smul.addr %s287, 12
        %s289 = smul.addr %s288, 4
        %s290 = scalar_lea.vmem %s1, %s289
        %p291 = pneg %p80
        %p292 = pneg %p77
        %p293 = scmp.lt.s32.totalorder %s26, 1
        %s294 = scalar_select %p293, %s26, 1
        %s295 = smul.addr %s294, 2
        %s296 = scalar_lea.vmem %s2, %s295
        %p297 = pneg %p106
        %p298 = pneg %p103
        %p299 = pneg %p127
        %p300 = pneg %p124
        %p301 = pneg %p148
        %p302 = pneg %p145
        %p303 = pneg %p169
        %p304 = pneg %p166
        %p305 = pneg %p190
        %p306 = pneg %p187
        %p307 = pneg %p218
        %p308 = pneg %p215
        %s309 = sand.u32 %s205, 1
        %s310 = scalar_lea.sflag [#allocation4], %s309
        %s311 = sand.u32 %s205, 1
        %s312 = smul.addr %s311, 8
        %s313 = scalar_lea.vmem [#allocation3], %s312
        %p314 = scmp.lt.s32.totalorder %s25, 1
        %s315 = scalar_select %p314, %s25, 1
        %s316 = smul.addr %s315, 12
        %s317 = smul.addr %s316, 4
        %s318 = scalar_lea.vmem %s0, %s317
        %p319 = scmp.lt.s32.totalorder %s25, 1
        %s320 = scalar_select %p319, %s25, 1
        %s321 = smul.addr %s320, 12
        %s322 = smul.addr %s321, 4
        %s323 = scalar_lea.vmem %s1, %s322
        %p324 = scmp.lt.s32.totalorder %s26, 1
        %s325 = scalar_select %p324, %s26, 1
        %s326 = smul.addr %s325, 2
        %s327 = scalar_lea.vmem %s2, %s326
        %s329 = smul.u32 %s26, 8
        %s330 = sshra.s32 %s329, 3
        %s331 = sand.u32 %s329, 7
        %s332 = smul.addr %s330, 4
        %s333 = scalar_lea.vmem %s323, %s332
        %v334 = vld [vmem:[%s333] sm:$0xf]
        %v335 = vld [vmem:[%s333 + $0x4] sm:$0x1]
        %v336 = vld [vmem:[%s333 + $0xc] sm:$0xf]
        %v337 = vld [vmem:[%s333 + $0x10] sm:$0x1]
        %v338 = vld [vmem:[%s333 + $0x18] sm:$0xf]
        %v339 = vld [vmem:[%s333 + $0x1c] sm:$0x1]
        %v340 = vld [vmem:[%s333 + $0x24] sm:$0xf]
        %v341 = vld [vmem:[%s333 + $0x28] sm:$0x1]
        %v344 = vpack.i.b16 %v336, %v334
        %v345 = vshrl.u32 %v334, 16
        %v346 = vshrl.u32 %v336, 16
        %v347 = vpack.i.b16 %v346, %v345
        %v350 = vpack.i.b16 %v340, %v338
        %v351 = vshrl.u32 %v338, 16
        %v352 = vshrl.u32 %v340, 16
        %v353 = vpack.i.b16 %v352, %v351
        %v356 = vunpack.c.l.s4 1983009808
        %v357 = vunpack.c.0.s8 %v356
        %v358 = vperm.slane %v344, %v357
        %v361 = vunpack.c.l.s4 1983009808
        %v362 = vunpack.c.0.s8 %v361
        %v363 = vperm.slane %v350, %v362
        %v364 = vrot.slane %v363, 4
        %vm365 = vcmask 1047556
        %v366 = vsel %vm365, %v364, %v358
        %v367 = vrot.slane %v358, 4
        %v368 = vsel %vm365, %v363, %v367
        %v370 = vunpack.c.l.s4 1934713408
        %v371 = vunpack.c.0.s8 %v370
        %v372 = vperm.slane %v366, %v371
        %v374 = vunpack.c.l.s4 1934713408
        %v375 = vunpack.c.0.s8 %v374
        %v376 = vperm.slane %v368, %v375
        %v377 = vrot.slane %v372, 4
        %v378 = vsel %vm365, 0, %v377
        %v379 = vrot.slane %v376, 4
        %v380 = vsel %vm365, 0, %v379
        %v383 = vunpack.c.l.s4 1983009808
        %v384 = vunpack.c.0.s8 %v383
        %v385 = vperm.slane %v347, %v384
        %v388 = vunpack.c.l.s4 1983009808
        %v389 = vunpack.c.0.s8 %v388
        %v390 = vperm.slane %v353, %v389
        %v391 = vrot.slane %v390, 4
        %v392 = vsel %vm365, %v391, %v385
        %v393 = vrot.slane %v385, 4
        %v394 = vsel %vm365, %v390, %v393
        %v396 = vunpack.c.l.s4 1934713408
        %v397 = vunpack.c.0.s8 %v396
        %v398 = vperm.slane %v392, %v397
        %v400 = vunpack.c.l.s4 1934713408
        %v401 = vunpack.c.0.s8 %v400
        %v402 = vperm.slane %v394, %v401
        %v403 = vrot.slane %v398, 4
        %v404 = vsel %vm365, 0, %v403
        %v405 = vrot.slane %v402, 4
        %v406 = vsel %vm365, 0, %v405
        %v408 = vunpack.c.l.b16 %v398
        %v409 = vpack.c.b16 %v408, %v408
        %410 = vrot.lane.b32.xlu0 %v409, 16
        %v411 = vpop.permute.xlu0 %410
        %v413 = vunpack.c.l.b16 %v378
        %v414 = vpack.c.b16 %v413, %v413
        %415 = vrot.lane.b32.xlu0 %v414, 32
        %v416 = vpop.permute.xlu0 %415
        %v418 = vunpack.c.l.b16 %v404
        %v419 = vpack.c.b16 %v418, %v418
        %420 = vrot.lane.b32.xlu0 %v419, 48
        %v421 = vpop.permute.xlu0 %420
        %v423 = vunpack.c.l.b16 %v376
        %v424 = vpack.c.b16 %v423, %v423
        %425 = vrot.lane.b32.xlu0 %v424, 64
        %v426 = vpop.permute.xlu0 %425
        %v428 = vunpack.c.l.b16 %v402
        %v429 = vpack.c.b16 %v428, %v428
        %430 = vrot.lane.b32.xlu0 %v429, 80
        %v431 = vpop.permute.xlu0 %430
        %v433 = vunpack.c.l.b16 %v380
        %v434 = vpack.c.b16 %v433, %v433
        %435 = vrot.lane.b32.xlu0 %v434, 96
        %v436 = vpop.permute.xlu0 %435
        %v438 = vunpack.c.l.b16 %v406
        %v439 = vpack.c.b16 %v438, %v438
        %440 = vrot.lane.b32.xlu0 %v439, 112
        %v441 = vpop.permute.xlu0 %440
        %vm442 = vcmask 130048
        %v445 = vsel %vm442, %v372, %v411
        %vm446 = vcmask 261120
        %v448 = vsel %vm446, %v445, %v416
        %vm449 = vcmask 392192
        %v451 = vsel %vm449, %v448, %v421
        %vm452 = vcmask 523264
        %v454 = vsel %vm452, %v451, %v426
        %vm455 = vcmask 654336
        %v457 = vsel %vm455, %v454, %v431
        %vm458 = vcmask 785408
        %v460 = vsel %vm458, %v457, %v436
        %vm461 = vcmask 916480
        %v463 = vsel %vm461, %v460, %v441
        %465 = vst [vmem:[#allocation2] sm:$0x3] %v463
        %470 = vrot.lane.b32.xlu0 %v334, 127
        %v471 = vpop.permute.xlu0 %470
        %472 = vrot.lane.b32.xlu0 %v336, 127
        %v473 = vpop.permute.xlu0 %472
        %474 = vrot.lane.b32.xlu0 %v338, 127
        %v475 = vpop.permute.xlu0 %474
        %476 = vrot.lane.b32.xlu0 %v340, 127
        %v477 = vpop.permute.xlu0 %476
        %v480 = vpack.i.b16 %v473, %v471
        %v481 = vshrl.u32 %v471, 16
        %v482 = vshrl.u32 %v473, 16
        %v483 = vpack.i.b16 %v482, %v481
        %v486 = vpack.i.b16 %v477, %v475
        %v487 = vshrl.u32 %v475, 16
        %v488 = vshrl.u32 %v477, 16
        %v489 = vpack.i.b16 %v488, %v487
        %v492 = vunpack.c.l.s4 1983009808
        %v493 = vunpack.c.0.s8 %v492
        %v494 = vperm.slane %v480, %v493
        %v497 = vunpack.c.l.s4 1983009808
        %v498 = vunpack.c.0.s8 %v497
        %v499 = vperm.slane %v486, %v498
        %v500 = vrot.slane %v499, 4
        %v501 = vsel %vm365, %v500, %v494
        %v502 = vrot.slane %v494, 4
        %v503 = vsel %vm365, %v499, %v502
        %v505 = vunpack.c.l.s4 1934713408
        %v506 = vunpack.c.0.s8 %v505
        %v507 = vperm.slane %v501, %v506
        %v509 = vunpack.c.l.s4 1934713408
        %v510 = vunpack.c.0.s8 %v509
        %v511 = vperm.slane %v503, %v510
        %v512 = vrot.slane %v507, 4
        %v513 = vsel %vm365, 0, %v512
        %v514 = vrot.slane %v511, 4
        %v515 = vsel %vm365, 0, %v514
        %v518 = vunpack.c.l.s4 1983009808
        %v519 = vunpack.c.0.s8 %v518
        %v520 = vperm.slane %v483, %v519
        %v523 = vunpack.c.l.s4 1983009808
        %v524 = vunpack.c.0.s8 %v523
        %v525 = vperm.slane %v489, %v524
        %v526 = vrot.slane %v525, 4
        %v527 = vsel %vm365, %v526, %v520
        %v528 = vrot.slane %v520, 4
        %v529 = vsel %vm365, %v525, %v528
        %v531 = vunpack.c.l.s4 1934713408
        %v532 = vunpack.c.0.s8 %v531
        %v533 = vperm.slane %v527, %v532
        %v535 = vunpack.c.l.s4 1934713408
        %v536 = vunpack.c.0.s8 %v535
        %v537 = vperm.slane %v529, %v536
        %v538 = vrot.slane %v533, 4
        %v539 = vsel %vm365, 0, %v538
        %v540 = vrot.slane %v537, 4
        %v541 = vsel %vm365, 0, %v540
        %v543 = vunpack.c.l.b16 %v533
        %v544 = vpack.c.b16 %v543, %v543
        %545 = vrot.lane.b32.xlu0 %v544, 16
        %v546 = vpop.permute.xlu0 %545
        %v548 = vunpack.c.l.b16 %v513
        %v549 = vpack.c.b16 %v548, %v548
        %550 = vrot.lane.b32.xlu0 %v549, 32
        %v551 = vpop.permute.xlu0 %550
        %v553 = vunpack.c.l.b16 %v539
        %v554 = vpack.c.b16 %v553, %v553
        %555 = vrot.lane.b32.xlu0 %v554, 48
        %v556 = vpop.permute.xlu0 %555
        %v558 = vunpack.c.l.b16 %v511
        %v559 = vpack.c.b16 %v558, %v558
        %560 = vrot.lane.b32.xlu0 %v559, 64
        %v561 = vpop.permute.xlu0 %560
        %v563 = vunpack.c.l.b16 %v537
        %v564 = vpack.c.b16 %v563, %v563
        %565 = vrot.lane.b32.xlu0 %v564, 80
        %v566 = vpop.permute.xlu0 %565
        %v568 = vunpack.c.l.b16 %v515
        %v569 = vpack.c.b16 %v568, %v568
        %570 = vrot.lane.b32.xlu0 %v569, 96
        %v571 = vpop.permute.xlu0 %570
        %v573 = vunpack.c.l.b16 %v541
        %v574 = vpack.c.b16 %v573, %v573
        %575 = vrot.lane.b32.xlu0 %v574, 112
        %v576 = vpop.permute.xlu0 %575
        %v579 = vsel %vm442, %v507, %v546
        %v581 = vsel %vm446, %v579, %v551
        %v583 = vsel %vm449, %v581, %v556
        %v585 = vsel %vm452, %v583, %v561
        %v587 = vsel %vm455, %v585, %v566
        %v589 = vsel %vm458, %v587, %v571
        %v591 = vsel %vm461, %v589, %v576
        %v593 = vunpack.c.l.b16 %v591
        %v594 = vpack.c.b16 %v593, %v593
        %v595 = vrot.slane %v594, 6
        %597 = vst [vmem:[#allocation2] sm:$0xc] %v595
        %598 = vrot.lane.b32.xlu0 %v334, 126
        %v599 = vpop.permute.xlu0 %598
        %600 = vrot.lane.b32.xlu0 %v336, 126
        %v601 = vpop.permute.xlu0 %600
        %602 = vrot.lane.b32.xlu0 %v338, 126
        %v603 = vpop.permute.xlu0 %602
        %604 = vrot.lane.b32.xlu0 %v340, 126
        %v605 = vpop.permute.xlu0 %604
        %v608 = vpack.i.b16 %v601, %v599
        %v609 = vshrl.u32 %v599, 16
        %v610 = vshrl.u32 %v601, 16
        %v611 = vpack.i.b16 %v610, %v609
        %v614 = vpack.i.b16 %v605, %v603
        %v615 = vshrl.u32 %v603, 16
        %v616 = vshrl.u32 %v605, 16
        %v617 = vpack.i.b16 %v616, %v615
        %v620 = vunpack.c.l.s4 1983009808
        %v621 = vunpack.c.0.s8 %v620
        %v622 = vperm.slane %v608, %v621
        %v625 = vunpack.c.l.s4 1983009808
        %v626 = vunpack.c.0.s8 %v625
        %v627 = vperm.slane %v614, %v626
        %v628 = vrot.slane %v627, 4
        %v629 = vsel %vm365, %v628, %v622
        %v630 = vrot.slane %v622, 4
        %v631 = vsel %vm365, %v627, %v630
        %v633 = vunpack.c.l.s4 1934713408
        %v634 = vunpack.c.0.s8 %v633
        %v635 = vperm.slane %v629, %v634
        %v637 = vunpack.c.l.s4 1934713408
        %v638 = vunpack.c.0.s8 %v637
        %v639 = vperm.slane %v631, %v638
        %v640 = vrot.slane %v635, 4
        %v641 = vsel %vm365, 0, %v640
        %v642 = vrot.slane %v639, 4
        %v643 = vsel %vm365, 0, %v642
        %v646 = vunpack.c.l.s4 1983009808
        %v647 = vunpack.c.0.s8 %v646
        %v648 = vperm.slane %v611, %v647
        %v651 = vunpack.c.l.s4 1983009808
        %v652 = vunpack.c.0.s8 %v651
        %v653 = vperm.slane %v617, %v652
        %v654 = vrot.slane %v653, 4
        %v655 = vsel %vm365, %v654, %v648
        %v656 = vrot.slane %v648, 4
        %v657 = vsel %vm365, %v653, %v656
        %v659 = vunpack.c.l.s4 1934713408
        %v660 = vunpack.c.0.s8 %v659
        %v661 = vperm.slane %v655, %v660
        %v663 = vunpack.c.l.s4 1934713408
        %v664 = vunpack.c.0.s8 %v663
        %v665 = vperm.slane %v657, %v664
        %v666 = vrot.slane %v661, 4
        %v667 = vsel %vm365, 0, %v666
        %v668 = vrot.slane %v665, 4
        %v669 = vsel %vm365, 0, %v668
        %v671 = vunpack.c.l.b16 %v661
        %v672 = vpack.c.b16 %v671, %v671
        %673 = vrot.lane.b32.xlu0 %v672, 16
        %v674 = vpop.permute.xlu0 %673
        %v676 = vunpack.c.l.b16 %v641
        %v677 = vpack.c.b16 %v676, %v676
        %678 = vrot.lane.b32.xlu0 %v677, 32
        %v679 = vpop.permute.xlu0 %678
        %v681 = vunpack.c.l.b16 %v667
        %v682 = vpack.c.b16 %v681, %v681
        %683 = vrot.lane.b32.xlu0 %v682, 48
        %v684 = vpop.permute.xlu0 %683
        %v686 = vunpack.c.l.b16 %v639
        %v687 = vpack.c.b16 %v686, %v686
        %688 = vrot.lane.b32.xlu0 %v687, 64
        %v689 = vpop.permute.xlu0 %688
        %v691 = vunpack.c.l.b16 %v665
        %v692 = vpack.c.b16 %v691, %v691
        %693 = vrot.lane.b32.xlu0 %v692, 80
        %v694 = vpop.permute.xlu0 %693
        %v696 = vunpack.c.l.b16 %v643
        %v697 = vpack.c.b16 %v696, %v696
        %698 = vrot.lane.b32.xlu0 %v697, 96
        %v699 = vpop.permute.xlu0 %698
        %v701 = vunpack.c.l.b16 %v669
        %v702 = vpack.c.b16 %v701, %v701
        %703 = vrot.lane.b32.xlu0 %v702, 112
        %v704 = vpop.permute.xlu0 %703
        %v707 = vsel %vm442, %v635, %v674
        %v709 = vsel %vm446, %v707, %v679
        %v711 = vsel %vm449, %v709, %v684
        %v713 = vsel %vm452, %v711, %v689
        %v715 = vsel %vm455, %v713, %v694
        %v717 = vsel %vm458, %v715, %v699
        %v719 = vsel %vm461, %v717, %v704
        %721 = vst [vmem:[#allocation2 + $0x4] sm:$0x3] %v719
        %vm722 = vsmask.f32 3328
        %vm723 = vsmask.f32 7440
        %vm724 = vmor %vm722, %vm723
        %v726 = vrot.slane %v345, 4
        %v727 = vshll.u32 %v334, 16
        %v729 = vrot.slane %v727, 5
        %v730 = vor.u32 %v726, %v729
        %v731 = vrot.slane %v730, 4
        %v733 = vshll.u32 %v335, 16
        %v735 = vrot.slane %v733, 5
        %v736 = vsel %vm724, %v731, %v735
        %v738 = vrot.slane %v346, 4
        %v739 = vshll.u32 %v336, 16
        %v741 = vrot.slane %v739, 5
        %v742 = vor.u32 %v738, %v741
        %v743 = vrot.slane %v742, 4
        %v745 = vshll.u32 %v337, 16
        %v747 = vrot.slane %v745, 5
        %v748 = vsel %vm724, %v743, %v747
        %v750 = vrot.slane %v351, 4
        %v751 = vshll.u32 %v338, 16
        %v753 = vrot.slane %v751, 5
        %v754 = vor.u32 %v750, %v753
        %v755 = vrot.slane %v754, 4
        %v757 = vshll.u32 %v339, 16
        %v759 = vrot.slane %v757, 5
        %v760 = vsel %vm724, %v755, %v759
        %v762 = vrot.slane %v352, 4
        %v763 = vshll.u32 %v340, 16
        %v765 = vrot.slane %v763, 5
        %v766 = vor.u32 %v762, %v765
        %v767 = vrot.slane %v766, 4
        %v769 = vshll.u32 %v341, 16
        %v771 = vrot.slane %v769, 5
        %v772 = vsel %vm724, %v767, %v771
        %v775 = vpack.i.b16 %v748, %v736
        %v776 = vshrl.u32 %v736, 16
        %v777 = vshrl.u32 %v748, 16
        %v778 = vpack.i.b16 %v777, %v776
        %v781 = vpack.i.b16 %v772, %v760
        %v782 = vshrl.u32 %v760, 16
        %v783 = vshrl.u32 %v772, 16
        %v784 = vpack.i.b16 %v783, %v782
        %v787 = vunpack.c.l.s4 1983009808
        %v788 = vunpack.c.0.s8 %v787
        %v789 = vperm.slane %v775, %v788
        %v792 = vunpack.c.l.s4 1983009808
        %v793 = vunpack.c.0.s8 %v792
        %v794 = vperm.slane %v781, %v793
        %v795 = vrot.slane %v794, 4
        %v796 = vsel %vm365, %v795, %v789
        %v797 = vrot.slane %v789, 4
        %v798 = vsel %vm365, %v794, %v797
        %v800 = vunpack.c.l.s4 1934713408
        %v801 = vunpack.c.0.s8 %v800
        %v802 = vperm.slane %v796, %v801
        %v804 = vunpack.c.l.s4 1934713408
        %v805 = vunpack.c.0.s8 %v804
        %v806 = vperm.slane %v798, %v805
        %v807 = vrot.slane %v802, 4
        %v808 = vsel %vm365, 0, %v807
        %v809 = vrot.slane %v806, 4
        %v810 = vsel %vm365, 0, %v809
        %v813 = vunpack.c.l.s4 1983009808
        %v814 = vunpack.c.0.s8 %v813
        %v815 = vperm.slane %v778, %v814
        %v818 = vunpack.c.l.s4 1983009808
        %v819 = vunpack.c.0.s8 %v818
        %v820 = vperm.slane %v784, %v819
        %v821 = vrot.slane %v820, 4
        %v822 = vsel %vm365, %v821, %v815
        %v823 = vrot.slane %v815, 4
        %v824 = vsel %vm365, %v820, %v823
        %v826 = vunpack.c.l.s4 1934713408
        %v827 = vunpack.c.0.s8 %v826
        %v828 = vperm.slane %v822, %v827
        %v830 = vunpack.c.l.s4 1934713408
        %v831 = vunpack.c.0.s8 %v830
        %v832 = vperm.slane %v824, %v831
        %v833 = vrot.slane %v828, 4
        %v834 = vsel %vm365, 0, %v833
        %v835 = vrot.slane %v832, 4
        %v836 = vsel %vm365, 0, %v835
        %v838 = vunpack.c.l.b16 %v828
        %v839 = vpack.c.b16 %v838, %v838
        %840 = vrot.lane.b32.xlu0 %v839, 16
        %v841 = vpop.permute.xlu0 %840
        %v843 = vunpack.c.l.b16 %v808
        %v844 = vpack.c.b16 %v843, %v843
        %845 = vrot.lane.b32.xlu0 %v844, 32
        %v846 = vpop.permute.xlu0 %845
        %v848 = vunpack.c.l.b16 %v834
        %v849 = vpack.c.b16 %v848, %v848
        %850 = vrot.lane.b32.xlu0 %v849, 48
        %v851 = vpop.permute.xlu0 %850
        %v853 = vunpack.c.l.b16 %v806
        %v854 = vpack.c.b16 %v853, %v853
        %855 = vrot.lane.b32.xlu0 %v854, 64
        %v856 = vpop.permute.xlu0 %855
        %v858 = vunpack.c.l.b16 %v832
        %v859 = vpack.c.b16 %v858, %v858
        %860 = vrot.lane.b32.xlu0 %v859, 80
        %v861 = vpop.permute.xlu0 %860
        %v863 = vunpack.c.l.b16 %v810
        %v864 = vpack.c.b16 %v863, %v863
        %865 = vrot.lane.b32.xlu0 %v864, 96
        %v866 = vpop.permute.xlu0 %865
        %v868 = vunpack.c.l.b16 %v836
        %v869 = vpack.c.b16 %v868, %v868
        %870 = vrot.lane.b32.xlu0 %v869, 112
        %v871 = vpop.permute.xlu0 %870
        %v874 = vsel %vm442, %v802, %v841
        %v876 = vsel %vm446, %v874, %v846
        %v878 = vsel %vm449, %v876, %v851
        %v880 = vsel %vm452, %v878, %v856
        %v882 = vsel %vm455, %v880, %v861
        %v884 = vsel %vm458, %v882, %v866
        %v886 = vsel %vm461, %v884, %v871
        %v888 = vunpack.c.l.b16 %v886
        %v889 = vpack.c.b16 %v888, %v888
        %v890 = vrot.slane %v889, 6
        %892 = vst [vmem:[#allocation2 + $0x4] sm:$0xc] %v890
        %893 = vrot.lane.b32.xlu0 %v736, 127
        %v894 = vpop.permute.xlu0 %893
        %895 = vrot.lane.b32.xlu0 %v748, 127
        %v896 = vpop.permute.xlu0 %895
        %897 = vrot.lane.b32.xlu0 %v760, 127
        %v898 = vpop.permute.xlu0 %897
        %899 = vrot.lane.b32.xlu0 %v772, 127
        %v900 = vpop.permute.xlu0 %899
        %v903 = vpack.i.b16 %v896, %v894
        %v904 = vshrl.u32 %v894, 16
        %v905 = vshrl.u32 %v896, 16
        %v906 = vpack.i.b16 %v905, %v904
        %v909 = vpack.i.b16 %v900, %v898
        %v910 = vshrl.u32 %v898, 16
        %v911 = vshrl.u32 %v900, 16
        %v912 = vpack.i.b16 %v911, %v910
        %v915 = vunpack.c.l.s4 1983009808
        %v916 = vunpack.c.0.s8 %v915
        %v917 = vperm.slane %v903, %v916
        %v920 = vunpack.c.l.s4 1983009808
        %v921 = vunpack.c.0.s8 %v920
        %v922 = vperm.slane %v909, %v921
        %v923 = vrot.slane %v922, 4
        %v924 = vsel %vm365, %v923, %v917
        %v925 = vrot.slane %v917, 4
        %v926 = vsel %vm365, %v922, %v925
        %v928 = vunpack.c.l.s4 1934713408
        %v929 = vunpack.c.0.s8 %v928
        %v930 = vperm.slane %v924, %v929
        %v932 = vunpack.c.l.s4 1934713408
        %v933 = vunpack.c.0.s8 %v932
        %v934 = vperm.slane %v926, %v933
        %v935 = vrot.slane %v930, 4
        %v936 = vsel %vm365, 0, %v935
        %v937 = vrot.slane %v934, 4
        %v938 = vsel %vm365, 0, %v937
        %v941 = vunpack.c.l.s4 1983009808
        %v942 = vunpack.c.0.s8 %v941
        %v943 = vperm.slane %v906, %v942
        %v946 = vunpack.c.l.s4 1983009808
        %v947 = vunpack.c.0.s8 %v946
        %v948 = vperm.slane %v912, %v947
        %v949 = vrot.slane %v948, 4
        %v950 = vsel %vm365, %v949, %v943
        %v951 = vrot.slane %v943, 4
        %v952 = vsel %vm365, %v948, %v951
        %v954 = vunpack.c.l.s4 1934713408
        %v955 = vunpack.c.0.s8 %v954
        %v956 = vperm.slane %v950, %v955
        %v958 = vunpack.c.l.s4 1934713408
        %v959 = vunpack.c.0.s8 %v958
        %v960 = vperm.slane %v952, %v959
        %v961 = vrot.slane %v956, 4
        %v962 = vsel %vm365, 0, %v961
        %v963 = vrot.slane %v960, 4
        %v964 = vsel %vm365, 0, %v963
        %v966 = vunpack.c.l.b16 %v956
        %v967 = vpack.c.b16 %v966, %v966
        %968 = vrot.lane.b32.xlu0 %v967, 16
        %v969 = vpop.permute.xlu0 %968
        %v971 = vunpack.c.l.b16 %v936
        %v972 = vpack.c.b16 %v971, %v971
        %973 = vrot.lane.b32.xlu0 %v972, 32
        %v974 = vpop.permute.xlu0 %973
        %v976 = vunpack.c.l.b16 %v962
        %v977 = vpack.c.b16 %v976, %v976
        %978 = vrot.lane.b32.xlu0 %v977, 48
        %v979 = vpop.permute.xlu0 %978
        %v981 = vunpack.c.l.b16 %v934
        %v982 = vpack.c.b16 %v981, %v981
        %983 = vrot.lane.b32.xlu0 %v982, 64
        %v984 = vpop.permute.xlu0 %983
        %v986 = vunpack.c.l.b16 %v960
        %v987 = vpack.c.b16 %v986, %v986
        %988 = vrot.lane.b32.xlu0 %v987, 80
        %v989 = vpop.permute.xlu0 %988
        %v991 = vunpack.c.l.b16 %v938
        %v992 = vpack.c.b16 %v991, %v991
        %993 = vrot.lane.b32.xlu0 %v992, 96
        %v994 = vpop.permute.xlu0 %993
        %v996 = vunpack.c.l.b16 %v964
        %v997 = vpack.c.b16 %v996, %v996
        %998 = vrot.lane.b32.xlu0 %v997, 112
        %v999 = vpop.permute.xlu0 %998
        %v1002 = vsel %vm442, %v930, %v969
        %v1004 = vsel %vm446, %v1002, %v974
        %v1006 = vsel %vm449, %v1004, %v979
        %v1008 = vsel %vm452, %v1006, %v984
        %v1010 = vsel %vm455, %v1008, %v989
        %v1012 = vsel %vm458, %v1010, %v994
        %v1014 = vsel %vm461, %v1012, %v999
        %1016 = vst [vmem:[#allocation2 + $0x8] sm:$0x3] %v1014
        %1017 = vrot.lane.b32.xlu0 %v736, 126
        %v1018 = vpop.permute.xlu0 %1017
        %1019 = vrot.lane.b32.xlu0 %v748, 126
        %v1020 = vpop.permute.xlu0 %1019
        %1021 = vrot.lane.b32.xlu0 %v760, 126
        %v1022 = vpop.permute.xlu0 %1021
        %1023 = vrot.lane.b32.xlu0 %v772, 126
        %v1024 = vpop.permute.xlu0 %1023
        %v1027 = vpack.i.b16 %v1020, %v1018
        %v1028 = vshrl.u32 %v1018, 16
        %v1029 = vshrl.u32 %v1020, 16
        %v1030 = vpack.i.b16 %v1029, %v1028
        %v1033 = vpack.i.b16 %v1024, %v1022
        %v1034 = vshrl.u32 %v1022, 16
        %v1035 = vshrl.u32 %v1024, 16
        %v1036 = vpack.i.b16 %v1035, %v1034
        %v1039 = vunpack.c.l.s4 1983009808
        %v1040 = vunpack.c.0.s8 %v1039
        %v1041 = vperm.slane %v1027, %v1040
        %v1044 = vunpack.c.l.s4 1983009808
        %v1045 = vunpack.c.0.s8 %v1044
        %v1046 = vperm.slane %v1033, %v1045
        %v1047 = vrot.slane %v1046, 4
        %v1048 = vsel %vm365, %v1047, %v1041
        %v1049 = vrot.slane %v1041, 4
        %v1050 = vsel %vm365, %v1046, %v1049
        %v1052 = vunpack.c.l.s4 1934713408
        %v1053 = vunpack.c.0.s8 %v1052
        %v1054 = vperm.slane %v1048, %v1053
        %v1056 = vunpack.c.l.s4 1934713408
        %v1057 = vunpack.c.0.s8 %v1056
        %v1058 = vperm.slane %v1050, %v1057
        %v1059 = vrot.slane %v1054, 4
        %v1060 = vsel %vm365, 0, %v1059
        %v1061 = vrot.slane %v1058, 4
        %v1062 = vsel %vm365, 0, %v1061
        %v1065 = vunpack.c.l.s4 1983009808
        %v1066 = vunpack.c.0.s8 %v1065
        %v1067 = vperm.slane %v1030, %v1066
        %v1070 = vunpack.c.l.s4 1983009808
        %v1071 = vunpack.c.0.s8 %v1070
        %v1072 = vperm.slane %v1036, %v1071
        %v1073 = vrot.slane %v1072, 4
        %v1074 = vsel %vm365, %v1073, %v1067
        %v1075 = vrot.slane %v1067, 4
        %v1076 = vsel %vm365, %v1072, %v1075
        %v1078 = vunpack.c.l.s4 1934713408
        %v1079 = vunpack.c.0.s8 %v1078
        %v1080 = vperm.slane %v1074, %v1079
        %v1082 = vunpack.c.l.s4 1934713408
        %v1083 = vunpack.c.0.s8 %v1082
        %v1084 = vperm.slane %v1076, %v1083
        %v1085 = vrot.slane %v1080, 4
        %v1086 = vsel %vm365, 0, %v1085
        %v1087 = vrot.slane %v1084, 4
        %v1088 = vsel %vm365, 0, %v1087
        %v1090 = vunpack.c.l.b16 %v1080
        %v1091 = vpack.c.b16 %v1090, %v1090
        %1092 = vrot.lane.b32.xlu0 %v1091, 16
        %v1093 = vpop.permute.xlu0 %1092
        %v1095 = vunpack.c.l.b16 %v1060
        %v1096 = vpack.c.b16 %v1095, %v1095
        %1097 = vrot.lane.b32.xlu0 %v1096, 32
        %v1098 = vpop.permute.xlu0 %1097
        %v1100 = vunpack.c.l.b16 %v1086
        %v1101 = vpack.c.b16 %v1100, %v1100
        %1102 = vrot.lane.b32.xlu0 %v1101, 48
        %v1103 = vpop.permute.xlu0 %1102
        %v1105 = vunpack.c.l.b16 %v1058
        %v1106 = vpack.c.b16 %v1105, %v1105
        %1107 = vrot.lane.b32.xlu0 %v1106, 64
        %v1108 = vpop.permute.xlu0 %1107
        %v1110 = vunpack.c.l.b16 %v1084
        %v1111 = vpack.c.b16 %v1110, %v1110
        %1112 = vrot.lane.b32.xlu0 %v1111, 80
        %v1113 = vpop.permute.xlu0 %1112
        %v1115 = vunpack.c.l.b16 %v1062
        %v1116 = vpack.c.b16 %v1115, %v1115
        %1117 = vrot.lane.b32.xlu0 %v1116, 96
        %v1118 = vpop.permute.xlu0 %1117
        %v1120 = vunpack.c.l.b16 %v1088
        %v1121 = vpack.c.b16 %v1120, %v1120
        %1122 = vrot.lane.b32.xlu0 %v1121, 112
        %v1123 = vpop.permute.xlu0 %1122
        %v1126 = vsel %vm442, %v1054, %v1093
        %v1128 = vsel %vm446, %v1126, %v1098
        %v1130 = vsel %vm449, %v1128, %v1103
        %v1132 = vsel %vm452, %v1130, %v1108
        %v1134 = vsel %vm455, %v1132, %v1113
        %v1136 = vsel %vm458, %v1134, %v1118
        %v1138 = vsel %vm461, %v1136, %v1123
        %v1140 = vunpack.c.l.b16 %v1138
        %v1141 = vpack.c.b16 %v1140, %v1140
        %v1142 = vrot.slane %v1141, 6
        %1144 = vst [vmem:[#allocation2 + $0x8] sm:$0xc] %v1142
        %vm1149 = vcmask 1042432
        %vm1150 = vcmask 1046532
        %vm1151 = vmor %vm1149, %vm1150
        %v1152 = vrot.slane %v334, 5
        %v1153 = vrot.slane %v1152, 4
        %v1154 = vrot.slane %v335, 5
        %v1155 = vsel %vm1151, %v1153, %v1154
        %v1156 = vrot.slane %v336, 5
        %v1157 = vrot.slane %v1156, 4
        %v1158 = vrot.slane %v337, 5
        %v1159 = vsel %vm1151, %v1157, %v1158
        %v1160 = vrot.slane %v338, 5
        %v1161 = vrot.slane %v1160, 4
        %v1162 = vrot.slane %v339, 5
        %v1163 = vsel %vm1151, %v1161, %v1162
        %v1164 = vrot.slane %v340, 5
        %v1165 = vrot.slane %v1164, 4
        %v1166 = vrot.slane %v341, 5
        %v1167 = vsel %vm1151, %v1165, %v1166
        %v1170 = vpack.i.b16 %v1159, %v1155
        %v1171 = vshrl.u32 %v1155, 16
        %v1172 = vshrl.u32 %v1159, 16
        %v1173 = vpack.i.b16 %v1172, %v1171
        %v1176 = vpack.i.b16 %v1167, %v1163
        %v1177 = vshrl.u32 %v1163, 16
        %v1178 = vshrl.u32 %v1167, 16
        %v1179 = vpack.i.b16 %v1178, %v1177
        %v1182 = vunpack.c.l.s4 1983009808
        %v1183 = vunpack.c.0.s8 %v1182
        %v1184 = vperm.slane %v1170, %v1183
        %v1187 = vunpack.c.l.s4 1983009808
        %v1188 = vunpack.c.0.s8 %v1187
        %v1189 = vperm.slane %v1176, %v1188
        %v1190 = vrot.slane %v1189, 4
        %v1191 = vsel %vm365, %v1190, %v1184
        %v1192 = vrot.slane %v1184, 4
        %v1193 = vsel %vm365, %v1189, %v1192
        %v1195 = vunpack.c.l.s4 1934713408
        %v1196 = vunpack.c.0.s8 %v1195
        %v1197 = vperm.slane %v1191, %v1196
        %v1199 = vunpack.c.l.s4 1934713408
        %v1200 = vunpack.c.0.s8 %v1199
        %v1201 = vperm.slane %v1193, %v1200
        %v1202 = vrot.slane %v1197, 4
        %v1203 = vsel %vm365, 0, %v1202
        %v1204 = vrot.slane %v1201, 4
        %v1205 = vsel %vm365, 0, %v1204
        %v1208 = vunpack.c.l.s4 1983009808
        %v1209 = vunpack.c.0.s8 %v1208
        %v1210 = vperm.slane %v1173, %v1209
        %v1213 = vunpack.c.l.s4 1983009808
        %v1214 = vunpack.c.0.s8 %v1213
        %v1215 = vperm.slane %v1179, %v1214
        %v1216 = vrot.slane %v1215, 4
        %v1217 = vsel %vm365, %v1216, %v1210
        %v1218 = vrot.slane %v1210, 4
        %v1219 = vsel %vm365, %v1215, %v1218
        %v1221 = vunpack.c.l.s4 1934713408
        %v1222 = vunpack.c.0.s8 %v1221
        %v1223 = vperm.slane %v1217, %v1222
        %v1225 = vunpack.c.l.s4 1934713408
        %v1226 = vunpack.c.0.s8 %v1225
        %v1227 = vperm.slane %v1219, %v1226
        %v1228 = vrot.slane %v1223, 4
        %v1229 = vsel %vm365, 0, %v1228
        %v1230 = vrot.slane %v1227, 4
        %v1231 = vsel %vm365, 0, %v1230
        %v1233 = vunpack.c.l.b16 %v1223
        %v1234 = vpack.c.b16 %v1233, %v1233
        %1235 = vrot.lane.b32.xlu0 %v1234, 16
        %v1236 = vpop.permute.xlu0 %1235
        %v1238 = vunpack.c.l.b16 %v1203
        %v1239 = vpack.c.b16 %v1238, %v1238
        %1240 = vrot.lane.b32.xlu0 %v1239, 32
        %v1241 = vpop.permute.xlu0 %1240
        %v1243 = vunpack.c.l.b16 %v1229
        %v1244 = vpack.c.b16 %v1243, %v1243
        %1245 = vrot.lane.b32.xlu0 %v1244, 48
        %v1246 = vpop.permute.xlu0 %1245
        %v1248 = vunpack.c.l.b16 %v1201
        %v1249 = vpack.c.b16 %v1248, %v1248
        %1250 = vrot.lane.b32.xlu0 %v1249, 64
        %v1251 = vpop.permute.xlu0 %1250
        %v1253 = vunpack.c.l.b16 %v1227
        %v1254 = vpack.c.b16 %v1253, %v1253
        %1255 = vrot.lane.b32.xlu0 %v1254, 80
        %v1256 = vpop.permute.xlu0 %1255
        %v1258 = vunpack.c.l.b16 %v1205
        %v1259 = vpack.c.b16 %v1258, %v1258
        %1260 = vrot.lane.b32.xlu0 %v1259, 96
        %v1261 = vpop.permute.xlu0 %1260
        %v1263 = vunpack.c.l.b16 %v1231
        %v1264 = vpack.c.b16 %v1263, %v1263
        %1265 = vrot.lane.b32.xlu0 %v1264, 112
        %v1266 = vpop.permute.xlu0 %1265
        %v1269 = vsel %vm442, %v1197, %v1236
        %v1271 = vsel %vm446, %v1269, %v1241
        %v1273 = vsel %vm449, %v1271, %v1246
        %v1275 = vsel %vm452, %v1273, %v1251
        %v1277 = vsel %vm455, %v1275, %v1256
        %v1279 = vsel %vm458, %v1277, %v1261
        %v1281 = vsel %vm461, %v1279, %v1266
        %1283 = vst [vmem:[#allocation2 + $0xc] sm:$0x3] %v1281
        %1284 = vrot.lane.b32.xlu0 %v1155, 127
        %v1285 = vpop.permute.xlu0 %1284
        %1286 = vrot.lane.b32.xlu0 %v1159, 127
        %v1287 = vpop.permute.xlu0 %1286
        %1288 = vrot.lane.b32.xlu0 %v1163, 127
        %v1289 = vpop.permute.xlu0 %1288
        %1290 = vrot.lane.b32.xlu0 %v1167, 127
        %v1291 = vpop.permute.xlu0 %1290
        %v1294 = vpack.i.b16 %v1287, %v1285
        %v1295 = vshrl.u32 %v1285, 16
        %v1296 = vshrl.u32 %v1287, 16
        %v1297 = vpack.i.b16 %v1296, %v1295
        %v1300 = vpack.i.b16 %v1291, %v1289
        %v1301 = vshrl.u32 %v1289, 16
        %v1302 = vshrl.u32 %v1291, 16
        %v1303 = vpack.i.b16 %v1302, %v1301
        %v1306 = vunpack.c.l.s4 1983009808
        %v1307 = vunpack.c.0.s8 %v1306
        %v1308 = vperm.slane %v1294, %v1307
        %v1311 = vunpack.c.l.s4 1983009808
        %v1312 = vunpack.c.0.s8 %v1311
        %v1313 = vperm.slane %v1300, %v1312
        %v1314 = vrot.slane %v1313, 4
        %v1315 = vsel %vm365, %v1314, %v1308
        %v1316 = vrot.slane %v1308, 4
        %v1317 = vsel %vm365, %v1313, %v1316
        %v1319 = vunpack.c.l.s4 1934713408
        %v1320 = vunpack.c.0.s8 %v1319
        %v1321 = vperm.slane %v1315, %v1320
        %v1323 = vunpack.c.l.s4 1934713408
        %v1324 = vunpack.c.0.s8 %v1323
        %v1325 = vperm.slane %v1317, %v1324
        %v1326 = vrot.slane %v1321, 4
        %v1327 = vsel %vm365, 0, %v1326
        %v1328 = vrot.slane %v1325, 4
        %v1329 = vsel %vm365, 0, %v1328
        %v1332 = vunpack.c.l.s4 1983009808
        %v1333 = vunpack.c.0.s8 %v1332
        %v1334 = vperm.slane %v1297, %v1333
        %v1337 = vunpack.c.l.s4 1983009808
        %v1338 = vunpack.c.0.s8 %v1337
        %v1339 = vperm.slane %v1303, %v1338
        %v1340 = vrot.slane %v1339, 4
        %v1341 = vsel %vm365, %v1340, %v1334
        %v1342 = vrot.slane %v1334, 4
        %v1343 = vsel %vm365, %v1339, %v1342
        %v1345 = vunpack.c.l.s4 1934713408
        %v1346 = vunpack.c.0.s8 %v1345
        %v1347 = vperm.slane %v1341, %v1346
        %v1349 = vunpack.c.l.s4 1934713408
        %v1350 = vunpack.c.0.s8 %v1349
        %v1351 = vperm.slane %v1343, %v1350
        %v1352 = vrot.slane %v1347, 4
        %v1353 = vsel %vm365, 0, %v1352
        %v1354 = vrot.slane %v1351, 4
        %v1355 = vsel %vm365, 0, %v1354
        %v1357 = vunpack.c.l.b16 %v1347
        %v1358 = vpack.c.b16 %v1357, %v1357
        %1359 = vrot.lane.b32.xlu0 %v1358, 16
        %v1360 = vpop.permute.xlu0 %1359
        %v1362 = vunpack.c.l.b16 %v1327
        %v1363 = vpack.c.b16 %v1362, %v1362
        %1364 = vrot.lane.b32.xlu0 %v1363, 32
        %v1365 = vpop.permute.xlu0 %1364
        %v1367 = vunpack.c.l.b16 %v1353
        %v1368 = vpack.c.b16 %v1367, %v1367
        %1369 = vrot.lane.b32.xlu0 %v1368, 48
        %v1370 = vpop.permute.xlu0 %1369
        %v1372 = vunpack.c.l.b16 %v1325
        %v1373 = vpack.c.b16 %v1372, %v1372
        %1374 = vrot.lane.b32.xlu0 %v1373, 64
        %v1375 = vpop.permute.xlu0 %1374
        %v1377 = vunpack.c.l.b16 %v1351
        %v1378 = vpack.c.b16 %v1377, %v1377
        %1379 = vrot.lane.b32.xlu0 %v1378, 80
        %v1380 = vpop.permute.xlu0 %1379
        %v1382 = vunpack.c.l.b16 %v1329
        %v1383 = vpack.c.b16 %v1382, %v1382
        %1384 = vrot.lane.b32.xlu0 %v1383, 96
        %v1385 = vpop.permute.xlu0 %1384
        %v1387 = vunpack.c.l.b16 %v1355
        %v1388 = vpack.c.b16 %v1387, %v1387
        %1389 = vrot.lane.b32.xlu0 %v1388, 112
        %v1390 = vpop.permute.xlu0 %1389
        %v1393 = vsel %vm442, %v1321, %v1360
        %v1395 = vsel %vm446, %v1393, %v1365
        %v1397 = vsel %vm449, %v1395, %v1370
        %v1399 = vsel %vm452, %v1397, %v1375
        %v1401 = vsel %vm455, %v1399, %v1380
        %v1403 = vsel %vm458, %v1401, %v1385
        %v1405 = vsel %vm461, %v1403, %v1390
        %v1407 = vunpack.c.l.b16 %v1405
        %v1408 = vpack.c.b16 %v1407, %v1407
        %v1409 = vrot.slane %v1408, 6
        %1411 = vst [vmem:[#allocation2 + $0xc] sm:$0xc] %v1409
        %1412 = vrot.lane.b32.xlu0 %v1155, 126
        %v1413 = vpop.permute.xlu0 %1412
        %1414 = vrot.lane.b32.xlu0 %v1159, 126
        %v1415 = vpop.permute.xlu0 %1414
        %1416 = vrot.lane.b32.xlu0 %v1163, 126
        %v1417 = vpop.permute.xlu0 %1416
        %1418 = vrot.lane.b32.xlu0 %v1167, 126
        %v1419 = vpop.permute.xlu0 %1418
        %v1422 = vpack.i.b16 %v1415, %v1413
        %v1423 = vshrl.u32 %v1413, 16
        %v1424 = vshrl.u32 %v1415, 16
        %v1425 = vpack.i.b16 %v1424, %v1423
        %v1428 = vpack.i.b16 %v1419, %v1417
        %v1429 = vshrl.u32 %v1417, 16
        %v1430 = vshrl.u32 %v1419, 16
        %v1431 = vpack.i.b16 %v1430, %v1429
        %v1434 = vunpack.c.l.s4 1983009808
        %v1435 = vunpack.c.0.s8 %v1434
        %v1436 = vperm.slane %v1422, %v1435
        %v1439 = vunpack.c.l.s4 1983009808
        %v1440 = vunpack.c.0.s8 %v1439
        %v1441 = vperm.slane %v1428, %v1440
        %v1442 = vrot.slane %v1441, 4
        %v1443 = vsel %vm365, %v1442, %v1436
        %v1444 = vrot.slane %v1436, 4
        %v1445 = vsel %vm365, %v1441, %v1444
        %v1447 = vunpack.c.l.s4 1934713408
        %v1448 = vunpack.c.0.s8 %v1447
        %v1449 = vperm.slane %v1443, %v1448
        %v1451 = vunpack.c.l.s4 1934713408
        %v1452 = vunpack.c.0.s8 %v1451
        %v1453 = vperm.slane %v1445, %v1452
        %v1454 = vrot.slane %v1449, 4
        %v1455 = vsel %vm365, 0, %v1454
        %v1456 = vrot.slane %v1453, 4
        %v1457 = vsel %vm365, 0, %v1456
        %v1460 = vunpack.c.l.s4 1983009808
        %v1461 = vunpack.c.0.s8 %v1460
        %v1462 = vperm.slane %v1425, %v1461
        %v1465 = vunpack.c.l.s4 1983009808
        %v1466 = vunpack.c.0.s8 %v1465
        %v1467 = vperm.slane %v1431, %v1466
        %v1468 = vrot.slane %v1467, 4
        %v1469 = vsel %vm365, %v1468, %v1462
        %v1470 = vrot.slane %v1462, 4
        %v1471 = vsel %vm365, %v1467, %v1470
        %v1473 = vunpack.c.l.s4 1934713408
        %v1474 = vunpack.c.0.s8 %v1473
        %v1475 = vperm.slane %v1469, %v1474
        %v1477 = vunpack.c.l.s4 1934713408
        %v1478 = vunpack.c.0.s8 %v1477
        %v1479 = vperm.slane %v1471, %v1478
        %v1480 = vrot.slane %v1475, 4
        %v1481 = vsel %vm365, 0, %v1480
        %v1482 = vrot.slane %v1479, 4
        %v1483 = vsel %vm365, 0, %v1482
        %v1485 = vunpack.c.l.b16 %v1475
        %v1486 = vpack.c.b16 %v1485, %v1485
        %1487 = vrot.lane.b32.xlu0 %v1486, 16
        %v1488 = vpop.permute.xlu0 %1487
        %v1490 = vunpack.c.l.b16 %v1455
        %v1491 = vpack.c.b16 %v1490, %v1490
        %1492 = vrot.lane.b32.xlu0 %v1491, 32
        %v1493 = vpop.permute.xlu0 %1492
        %v1495 = vunpack.c.l.b16 %v1481
        %v1496 = vpack.c.b16 %v1495, %v1495
        %1497 = vrot.lane.b32.xlu0 %v1496, 48
        %v1498 = vpop.permute.xlu0 %1497
        %v1500 = vunpack.c.l.b16 %v1453
        %v1501 = vpack.c.b16 %v1500, %v1500
        %1502 = vrot.lane.b32.xlu0 %v1501, 64
        %v1503 = vpop.permute.xlu0 %1502
        %v1505 = vunpack.c.l.b16 %v1479
        %v1506 = vpack.c.b16 %v1505, %v1505
        %1507 = vrot.lane.b32.xlu0 %v1506, 80
        %v1508 = vpop.permute.xlu0 %1507
        %v1510 = vunpack.c.l.b16 %v1457
        %v1511 = vpack.c.b16 %v1510, %v1510
        %1512 = vrot.lane.b32.xlu0 %v1511, 96
        %v1513 = vpop.permute.xlu0 %1512
        %v1515 = vunpack.c.l.b16 %v1483
        %v1516 = vpack.c.b16 %v1515, %v1515
        %1517 = vrot.lane.b32.xlu0 %v1516, 112
        %v1518 = vpop.permute.xlu0 %1517
        %v1521 = vsel %vm442, %v1449, %v1488
        %v1523 = vsel %vm446, %v1521, %v1493
        %v1525 = vsel %vm449, %v1523, %v1498
        %v1527 = vsel %vm452, %v1525, %v1503
        %v1529 = vsel %vm455, %v1527, %v1508
        %v1531 = vsel %vm458, %v1529, %v1513
        %v1533 = vsel %vm461, %v1531, %v1518
        %1535 = vst [vmem:[#allocation2 + $0x10] sm:$0x3] %v1533
        %v1536 = vld [vmem:[%s3] sm:$0xf]
        %v1537 = vld [vmem:[%s3 + $0x4] sm:$0xf]
        %v1538 = vld [vmem:[%s3 + $0x8] sm:$0xf]
        %v1539 = vld [vmem:[%s3 + $0xc] sm:$0x3]
        %v1540 = vld [vmem:[#allocation2] sm:$0xf]
        %v1541 = vld [vmem:[#allocation2 + $0x4] sm:$0xf]
        %v1542 = vld [vmem:[#allocation2 + $0x8] sm:$0xf]
        %v1543 = vld [vmem:[#allocation2 + $0xc] sm:$0xf]
        %v1544 = vld [vmem:[#allocation2 + $0x10] sm:$0x3]
        %v1545 = vld [vmem:[%s4] sm:$0xff]
        %v1546 = vld [vmem:[%s4 + $0x8] sm:$0xff]
        %v1547 = vld [vmem:[%s4 + $0x10] sm:$0xff]
        %v1548 = vld [vmem:[%s4 + $0x18] sm:$0x7]
        %1550 = vset.pattern.permute.xlu0 0
        %1551 = vperm.xlu0 %1550, %v1545
        %v1552 = vpop.permute.xlu0 %1551
        %1555 = vset.pattern.permute.xlu0 0
        %1556 = vperm.xlu0 %1555, %v1546
        %v1557 = vpop.permute.xlu0 %1556
        %1560 = vset.pattern.permute.xlu0 0
        %1561 = vperm.xlu0 %1560, %v1547
        %v1562 = vpop.permute.xlu0 %1561
        %1565 = vset.pattern.permute.xlu0 0
        %1566 = vperm.xlu0 %1565, %v1548
        %v1567 = vpop.permute.xlu0 %1566
        %v1573 = vunpack.c.l.b16 %v1536
        %v1574 = vunpack.c.l.b16 %v1537
        %v1575 = vunpack.c.l.b16 %v1538
        %v1576 = vunpack.c.l.b16 %v1539
        %v1577 = vpack.c.b16 %v1574, %v1573
        %v1578 = vpack.c.b16 %v1576, %v1575
        %v1584 = vunpack.c.l.b16 %v1540
        %v1585 = vunpack.c.l.b16 %v1541
        %v1586 = vunpack.c.l.b16 %v1542
        %v1587 = vunpack.c.l.b16 %v1543
        %v1588 = vunpack.c.l.b16 %v1544
        %v1589 = vpack.c.b16 %v1585, %v1584
        %v1590 = vpack.c.b16 %v1587, %v1586
        %v1591 = vpack.c.b16 %v1588, %v1588
        %vm1594 = vcmask 293888
        %v1596 = vsel %vm1594, %v1577, 0
        %v1599 = vsel %vm1594, %v1578, 0
        %vm1601 = vcmask 1041408
        %v1603 = vsel %vm1601, %v1591, 0
        %1605 = vmatpush.bf16.msra.mxu0 0
        %1606 = vmatpush.bf16.msra.mxu0 0
        %1607 = vmatpush.bf16.msra.mxu0 0
        %1608 = vmatpush.bf16.msra.mxu0 0
        %1609 = vmatpush.bf16.msra.mxu0 0
        %1610 = vmatpush.bf16.msra.mxu0 %v1603
        %1611 = vmatpush.bf16.msra.mxu0 %v1590
        %1612 = vmatpush.bf16.msra.mxu0 %v1589
        %1613 = vmatmul.bf16.gmra.mxu0 %v1596
        %v1614 = vpop.f32.mrf.mxu0
        %v1615 = vadd.f32 %v1552, %v1614
        %v1616 = vpop.f32.mrf.mxu0
        %v1617 = vadd.f32 %v1557, %v1616
        %1618 = vmatmul.bf16.gmra.mxu0 %v1599
        %v1619 = vpop.f32.mrf.mxu0
        %v1620 = vadd.f32 %v1562, %v1619
        %v1621 = vpop.f32.mrf.mxu0
        %v1622 = vadd.f32 %v1567, %v1621
        %1623 = vdwg.mxu0
        %v1624 = vxor.u32 %v1620, 2147483648
        %v1625 = vxor.u32 %v1622, 2147483648
        %v1626 = vmul.f32 %v1624, 1.442695
        %v1627 = vpow.pop %v1626
        %v1628 = vmul.f32 %v1625, 1.442695
        %v1629 = vpow.pop %v1628
        %v1630 = vadd.f32 %v1627, 1.0
        %v1631 = vadd.f32 %v1629, 1.0
        %v1632 = vrcp.pop %v1630
        %v1633 = vmul.f32 %v1630, %v1632
        %v1634 = vsub.f32 1.0, %v1633
        %v1635 = vmul.f32 %v1632, %v1634
        %v1636 = vadd.f32 %v1632, %v1635
        %vm1637 = vweird.f32 %v1630
        %vm1638 = vweird.f32 %v1632
        %vm1639 = vmor %vm1637, %vm1638
        %v1640 = vsel %vm1639, %v1632, %v1636
        %v1641 = vand.u32 2147483647, %v1630
        %vm1642 = vcmp.eq.f32.partialorder %v1641, 8.507059e+37
        %v1643 = vand.u32 %v1630, 2147483648
        %v1644 = vor.u32 1.1754944e-38, %v1643
        %v1645 = vsel %vm1642, %v1644, %v1640
        %v1646 = vmul.f32 1.0, %v1645
        %v1647 = vrcp.pop %v1631
        %v1648 = vmul.f32 %v1631, %v1647
        %v1649 = vsub.f32 1.0, %v1648
        %v1650 = vmul.f32 %v1647, %v1649
        %v1651 = vadd.f32 %v1647, %v1650
        %vm1652 = vweird.f32 %v1631
        %vm1653 = vweird.f32 %v1647
        %vm1654 = vmor %vm1652, %vm1653
        %v1655 = vsel %vm1654, %v1647, %v1651
        %v1656 = vand.u32 2147483647, %v1631
        %vm1657 = vcmp.eq.f32.partialorder %v1656, 8.507059e+37
        %v1658 = vand.u32 %v1631, 2147483648
        %v1659 = vor.u32 1.1754944e-38, %v1658
        %v1660 = vsel %vm1657, %v1659, %v1655
        %v1661 = vmul.f32 1.0, %v1660
        %v1662 = vmul.f32 %v1646, 2.0
        %v1663 = vmul.f32 %v1661, 2.0
        %v1664 = vld [vmem:[%s327] sm:$0x1]
        %v1665 = vld [vmem:[%s327 + $0x1] sm:$0x1]
        %v1666 = vld [vmem:[%s318] sm:$0xf]
        %v1667 = vld [vmem:[%s318 + $0x4] sm:$0xf]
        %v1668 = vld [vmem:[%s318 + $0x8] sm:$0xf]
        %v1669 = vld [vmem:[%s318 + $0xc] sm:$0xf]
        %v1670 = vld [vmem:[%s318 + $0x10] sm:$0xf]
        %v1671 = vld [vmem:[%s318 + $0x14] sm:$0xf]
        %v1672 = vld [vmem:[%s318 + $0x18] sm:$0xf]
        %v1673 = vld [vmem:[%s318 + $0x1c] sm:$0xf]
        %v1674 = vld [vmem:[%s318 + $0x20] sm:$0xf]
        %v1675 = vld [vmem:[%s318 + $0x24] sm:$0xf]
        %v1676 = vld [vmem:[%s318 + $0x28] sm:$0xf]
        %v1677 = vld [vmem:[%s318 + $0x2c] sm:$0xf]
        %v1678 = vlaneseq
        %v1679 = vshrl.u32 %v1678, 7
        %v1680 = vadd.s32 %v1679, 8
        %v1681 = vadd.s32 %v1679, 16
        %v1682 = vsub.f32 %v1664, 1.0
        %v1683 = vadd.f32 %v1682, 0.0
        %v1684 = vadd.f32 %v1683, %v1615
        %v1685 = vsub.f32 %v1665, 1.0
        %v1686 = vadd.f32 %v1685, 0.0
        %v1688 = vrot.slane %v1615, 1
        %v1690 = vadd.f32 %v1686, %v1688
        %v1691 = vfloor.f32 %v1684
        %v1692 = vfloor.f32 %v1690
        %v1693 = vsub.f32 %v1684, %v1691
        %v1694 = vsub.f32 %v1690, %v1692
        %v1695 = vmax.f32 %v1691, -2.0
        %v1696 = vmin.f32 %v1695, 17.0
        %v1697 = vcvt.f32.s32.to.zero.pseudo %v1696
        %v1698 = vadd.s32 %v1697, 1
        %v1699 = vmax.f32 %v1692, -2.0
        %v1700 = vmin.f32 %v1699, 17.0
        %v1701 = vcvt.f32.s32.to.zero.pseudo %v1700
        %v1702 = vadd.s32 %v1701, 1
        %v1703 = vperm.slane %v1698, 0
        %vm1704 = vcmp.eq.s32.totalorder %v1679, %v1703
        %vm1705 = vcmp.eq.s32.totalorder %v1680, %v1703
        %vm1706 = vcmp.eq.s32.totalorder %v1681, %v1703
        %v1707 = vsub.f32 1.0, %v1693
        %v1708 = vperm.slane %v1707, 0
        %v1709 = vsel %vm1704, %v1708, 0.0
        %v1710 = vsel %vm1705, %v1708, 0.0
        %v1711 = vsel %vm1706, %v1708, 0.0
        %v1712 = vadd.s32 %v1698, 1
        %v1713 = vperm.slane %v1712, 0
        %vm1714 = vcmp.eq.s32.totalorder %v1679, %v1713
        %vm1715 = vcmp.eq.s32.totalorder %v1680, %v1713
        %vm1716 = vcmp.eq.s32.totalorder %v1681, %v1713
        %v1717 = vperm.slane %v1693, 0
        %v1718 = vsel %vm1714, %v1717, 0.0
        %v1719 = vsel %vm1715, %v1717, 0.0
        %v1720 = vsel %vm1716, %v1717, 0.0
        %v1721 = vadd.f32 %v1709, %v1718
        %v1722 = vadd.f32 %v1710, %v1719
        %v1723 = vadd.f32 %v1711, %v1720
        %v1724 = vperm.slane %v1702, 0
        %vm1725 = vcmp.eq.s32.totalorder %v1679, %v1724
        %vm1726 = vcmp.eq.s32.totalorder %v1680, %v1724
        %vm1727 = vcmp.eq.s32.totalorder %v1681, %v1724
        %v1728 = vsub.f32 1.0, %v1694
        %v1729 = vperm.slane %v1728, 0
        %v1730 = vsel %vm1725, %v1729, 0.0
        %v1731 = vsel %vm1726, %v1729, 0.0
        %v1732 = vsel %vm1727, %v1729, 0.0
        %v1733 = vadd.s32 %v1702, 1
        %v1734 = vperm.slane %v1733, 0
        %vm1735 = vcmp.eq.s32.totalorder %v1679, %v1734
        %vm1736 = vcmp.eq.s32.totalorder %v1680, %v1734
        %vm1737 = vcmp.eq.s32.totalorder %v1681, %v1734
        %v1738 = vperm.slane %v1694, 0
        %v1739 = vsel %vm1735, %v1738, 0.0
        %v1740 = vsel %vm1736, %v1738, 0.0
        %v1741 = vsel %vm1737, %v1738, 0.0
        %v1742 = vadd.f32 %v1730, %v1739
        %v1743 = vadd.f32 %v1731, %v1740
        %v1744 = vadd.f32 %v1732, %v1741
        %v1745 = vrot.slane %v1615, 2
        %v1747 = vadd.f32 %v1683, %v1745
        %v1748 = vadd.f32 %v1685, 1.0
        %v1749 = vrot.slane %v1615, 3
        %v1751 = vadd.f32 %v1748, %v1749
        %v1752 = vfloor.f32 %v1747
        %v1753 = vfloor.f32 %v1751
        %v1754 = vsub.f32 %v1747, %v1752
        %v1755 = vsub.f32 %v1751, %v1753
        %v1756 = vmax.f32 %v1752, -2.0
        %v1757 = vmin.f32 %v1756, 17.0
        %v1758 = vcvt.f32.s32.to.zero.pseudo %v1757
        %v1759 = vadd.s32 %v1758, 1
        %v1760 = vmax.f32 %v1753, -2.0
        %v1761 = vmin.f32 %v1760, 17.0
        %v1762 = vcvt.f32.s32.to.zero.pseudo %v1761
        %v1763 = vadd.s32 %v1762, 1
        %v1764 = vperm.slane %v1759, 0
        %vm1765 = vcmp.eq.s32.totalorder %v1679, %v1764
        %vm1766 = vcmp.eq.s32.totalorder %v1680, %v1764
        %vm1767 = vcmp.eq.s32.totalorder %v1681, %v1764
        %v1768 = vsub.f32 1.0, %v1754
        %v1769 = vperm.slane %v1768, 0
        %v1770 = vsel %vm1765, %v1769, 0.0
        %v1771 = vsel %vm1766, %v1769, 0.0
        %v1772 = vsel %vm1767, %v1769, 0.0
        %v1773 = vadd.s32 %v1759, 1
        %v1774 = vperm.slane %v1773, 0
        %vm1775 = vcmp.eq.s32.totalorder %v1679, %v1774
        %vm1776 = vcmp.eq.s32.totalorder %v1680, %v1774
        %vm1777 = vcmp.eq.s32.totalorder %v1681, %v1774
        %v1778 = vperm.slane %v1754, 0
        %v1779 = vsel %vm1775, %v1778, 0.0
        %v1780 = vsel %vm1776, %v1778, 0.0
        %v1781 = vsel %vm1777, %v1778, 0.0
        %v1782 = vadd.f32 %v1770, %v1779
        %v1783 = vadd.f32 %v1771, %v1780
        %v1784 = vadd.f32 %v1772, %v1781
        %v1785 = vperm.slane %v1763, 0
        %vm1786 = vcmp.eq.s32.totalorder %v1679, %v1785
        %vm1787 = vcmp.eq.s32.totalorder %v1680, %v1785
        %vm1788 = vcmp.eq.s32.totalorder %v1681, %v1785
        %v1789 = vsub.f32 1.0, %v1755
        %v1790 = vperm.slane %v1789, 0
        %v1791 = vsel %vm1786, %v1790, 0.0
        %v1792 = vsel %vm1787, %v1790, 0.0
        %v1793 = vsel %vm1788, %v1790, 0.0
        %v1794 = vadd.s32 %v1763, 1
        %v1795 = vperm.slane %v1794, 0
        %vm1796 = vcmp.eq.s32.totalorder %v1679, %v1795
        %vm1797 = vcmp.eq.s32.totalorder %v1680, %v1795
        %vm1798 = vcmp.eq.s32.totalorder %v1681, %v1795
        %v1799 = vperm.slane %v1755, 0
        %v1800 = vsel %vm1796, %v1799, 0.0
        %v1801 = vsel %vm1797, %v1799, 0.0
        %v1802 = vsel %vm1798, %v1799, 0.0
        %v1803 = vadd.f32 %v1791, %v1800
        %v1804 = vadd.f32 %v1792, %v1801
        %v1805 = vadd.f32 %v1793, %v1802
        %v1806 = vrot.slane %v1615, 4
        %v1808 = vadd.f32 %v1683, %v1806
        %v1809 = vadd.f32 %v1685, 2.0
        %v1810 = vrot.slane %v1615, 5
        %v1812 = vadd.f32 %v1809, %v1810
        %v1813 = vfloor.f32 %v1808
        %v1814 = vfloor.f32 %v1812
        %v1815 = vsub.f32 %v1808, %v1813
        %v1816 = vsub.f32 %v1812, %v1814
        %v1817 = vmax.f32 %v1813, -2.0
        %v1818 = vmin.f32 %v1817, 17.0
        %v1819 = vcvt.f32.s32.to.zero.pseudo %v1818
        %v1820 = vadd.s32 %v1819, 1
        %v1821 = vmax.f32 %v1814, -2.0
        %v1822 = vmin.f32 %v1821, 17.0
        %v1823 = vcvt.f32.s32.to.zero.pseudo %v1822
        %v1824 = vadd.s32 %v1823, 1
        %v1825 = vperm.slane %v1820, 0
        %vm1826 = vcmp.eq.s32.totalorder %v1679, %v1825
        %vm1827 = vcmp.eq.s32.totalorder %v1680, %v1825
        %vm1828 = vcmp.eq.s32.totalorder %v1681, %v1825
        %v1829 = vsub.f32 1.0, %v1815
        %v1830 = vperm.slane %v1829, 0
        %v1831 = vsel %vm1826, %v1830, 0.0
        %v1832 = vsel %vm1827, %v1830, 0.0
        %v1833 = vsel %vm1828, %v1830, 0.0
        %v1834 = vadd.s32 %v1820, 1
        %v1835 = vperm.slane %v1834, 0
        %vm1836 = vcmp.eq.s32.totalorder %v1679, %v1835
        %vm1837 = vcmp.eq.s32.totalorder %v1680, %v1835
        %vm1838 = vcmp.eq.s32.totalorder %v1681, %v1835
        %v1839 = vperm.slane %v1815, 0
        %v1840 = vsel %vm1836, %v1839, 0.0
        %v1841 = vsel %vm1837, %v1839, 0.0
        %v1842 = vsel %vm1838, %v1839, 0.0
        %v1843 = vadd.f32 %v1831, %v1840
        %v1844 = vadd.f32 %v1832, %v1841
        %v1845 = vadd.f32 %v1833, %v1842
        %v1846 = vperm.slane %v1824, 0
        %vm1847 = vcmp.eq.s32.totalorder %v1679, %v1846
        %vm1848 = vcmp.eq.s32.totalorder %v1680, %v1846
        %vm1849 = vcmp.eq.s32.totalorder %v1681, %v1846
        %v1850 = vsub.f32 1.0, %v1816
        %v1851 = vperm.slane %v1850, 0
        %v1852 = vsel %vm1847, %v1851, 0.0
        %v1853 = vsel %vm1848, %v1851, 0.0
        %v1854 = vsel %vm1849, %v1851, 0.0
        %v1855 = vadd.s32 %v1824, 1
        %v1856 = vperm.slane %v1855, 0
        %vm1857 = vcmp.eq.s32.totalorder %v1679, %v1856
        %vm1858 = vcmp.eq.s32.totalorder %v1680, %v1856
        %vm1859 = vcmp.eq.s32.totalorder %v1681, %v1856
        %v1860 = vperm.slane %v1816, 0
        %v1861 = vsel %vm1857, %v1860, 0.0
        %v1862 = vsel %vm1858, %v1860, 0.0
        %v1863 = vsel %vm1859, %v1860, 0.0
        %v1864 = vadd.f32 %v1852, %v1861
        %v1865 = vadd.f32 %v1853, %v1862
        %v1866 = vadd.f32 %v1854, %v1863
        %v1867 = vpack.c.bf16 %v1743, %v1742
        %v1868 = vpack.c.bf16 %v1804, %v1803
        %v1869 = vpack.c.bf16 %v1865, %v1864
        %v1870 = vpack.c.bf16 %v1744, %v1744
        %v1871 = vpack.c.bf16 %v1805, %v1805
        %v1872 = vpack.c.bf16 %v1866, %v1866
        %v1885 = vunpack.c.l.b16 %v1666
        %v1886 = vunpack.c.l.b16 %v1667
        %v1887 = vunpack.c.l.b16 %v1668
        %v1888 = vunpack.c.l.b16 %v1669
        %v1889 = vunpack.c.l.b16 %v1670
        %v1890 = vunpack.c.l.b16 %v1671
        %v1891 = vunpack.c.l.b16 %v1672
        %v1892 = vunpack.c.l.b16 %v1673
        %v1893 = vunpack.c.l.b16 %v1674
        %v1894 = vunpack.c.l.b16 %v1675
        %v1895 = vunpack.c.l.b16 %v1676
        %v1896 = vunpack.c.l.b16 %v1677
        %v1897 = vpack.c.b16 %v1886, %v1885
        %v1898 = vpack.c.b16 %v1888, %v1887
        %v1899 = vpack.c.b16 %v1890, %v1889
        %v1900 = vpack.c.b16 %v1892, %v1891
        %v1901 = vpack.c.b16 %v1894, %v1893
        %v1902 = vpack.c.b16 %v1896, %v1895
        %vm1903 = vcmask 146432
        %v1905 = vsel %vm1903, %v1897, 0
        %v1908 = vsel %vm1903, %v1898, 0
        %v1911 = vsel %vm1903, %v1899, 0
        %v1914 = vsel %vm1903, %v1900, 0
        %v1917 = vsel %vm1903, %v1901, 0
        %v1920 = vsel %vm1903, %v1902, 0
        %vm1922 = vcmask 1040384
        %v1924 = vsel %vm1922, %v1870, 0
        %v1927 = vsel %vm1922, %v1871, 0
        %v1930 = vsel %vm1922, %v1872, 0
        %1932 = vmatpush.bf16.msra.mxu0 0
        %1933 = vmatpush.bf16.msra.mxu0 0
        %1934 = vmatpush.bf16.msra.mxu0 0
        %1935 = vmatpush.bf16.msra.mxu0 0
        %1936 = vmatpush.bf16.msra.mxu0 0
        %1937 = vmatpush.bf16.msra.mxu0 0
        %1938 = vmatpush.bf16.msra.mxu0 %v1924
        %1939 = vmatpush.bf16.msra.mxu0 %v1867
        %1940 = vmatmul.bf16.gmra.mxu0 %v1905
        %v1941 = vpop.f32.mrf.mxu0
        %v1942 = vadd.f32 0.0, %v1941
        %v1943 = vpop.f32.mrf.mxu0
        %v1944 = vadd.f32 0.0, %v1943
        %1945 = vmatmul.bf16.gmra.mxu0 %v1908
        %v1946 = vpop.f32.mrf.mxu0
        %v1947 = vadd.f32 0.0, %v1946
        %v1948 = vpop.f32.mrf.mxu0
        %v1949 = vadd.f32 0.0, %v1948
        %1950 = vmatmul.bf16.gmra.mxu0 %v1911
        %v1951 = vpop.f32.mrf.mxu0
        %v1952 = vadd.f32 0.0, %v1951
        %v1953 = vpop.f32.mrf.mxu0
        %v1954 = vadd.f32 0.0, %v1953
        %1955 = vmatmul.bf16.gmra.mxu0 %v1914
        %v1956 = vpop.f32.mrf.mxu0
        %v1957 = vadd.f32 0.0, %v1956
        %v1958 = vpop.f32.mrf.mxu0
        %v1959 = vadd.f32 0.0, %v1958
        %1960 = vmatmul.bf16.gmra.mxu0 %v1917
        %v1961 = vpop.f32.mrf.mxu0
        %v1962 = vadd.f32 0.0, %v1961
        %v1963 = vpop.f32.mrf.mxu0
        %v1964 = vadd.f32 0.0, %v1963
        %1965 = vmatmul.bf16.gmra.mxu0 %v1920
        %v1966 = vpop.f32.mrf.mxu0
        %v1967 = vadd.f32 0.0, %v1966
        %v1968 = vpop.f32.mrf.mxu0
        %v1969 = vadd.f32 0.0, %v1968
        %1970 = vdwg.mxu0
        %1971 = vmatpush.bf16.msra.mxu0 0
        %1972 = vmatpush.bf16.msra.mxu0 0
        %1973 = vmatpush.bf16.msra.mxu0 0
        %1974 = vmatpush.bf16.msra.mxu0 0
        %1975 = vmatpush.bf16.msra.mxu0 0
        %1976 = vmatpush.bf16.msra.mxu0 0
        %1977 = vmatpush.bf16.msra.mxu0 %v1927
        %1978 = vmatpush.bf16.msra.mxu0 %v1868
        %1979 = vmatmul.bf16.gmra.mxu0 %v1905
        %v1980 = vpop.f32.mrf.mxu0
        %v1981 = vadd.f32 0.0, %v1980
        %v1982 = vpop.f32.mrf.mxu0
        %v1983 = vadd.f32 0.0, %v1982
        %1984 = vmatmul.bf16.gmra.mxu0 %v1908
        %v1985 = vpop.f32.mrf.mxu0
        %v1986 = vadd.f32 0.0, %v1985
        %v1987 = vpop.f32.mrf.mxu0
        %v1988 = vadd.f32 0.0, %v1987
        %1989 = vmatmul.bf16.gmra.mxu0 %v1911
        %v1990 = vpop.f32.mrf.mxu0
        %v1991 = vadd.f32 0.0, %v1990
        %v1992 = vpop.f32.mrf.mxu0
        %v1993 = vadd.f32 0.0, %v1992
        %1994 = vmatmul.bf16.gmra.mxu0 %v1914
        %v1995 = vpop.f32.mrf.mxu0
        %v1996 = vadd.f32 0.0, %v1995
        %v1997 = vpop.f32.mrf.mxu0
        %v1998 = vadd.f32 0.0, %v1997
        %1999 = vmatmul.bf16.gmra.mxu0 %v1917
        %v2000 = vpop.f32.mrf.mxu0
        %v2001 = vadd.f32 0.0, %v2000
        %v2002 = vpop.f32.mrf.mxu0
        %v2003 = vadd.f32 0.0, %v2002
        %2004 = vmatmul.bf16.gmra.mxu0 %v1920
        %v2005 = vpop.f32.mrf.mxu0
        %v2006 = vadd.f32 0.0, %v2005
        %v2007 = vpop.f32.mrf.mxu0
        %v2008 = vadd.f32 0.0, %v2007
        %2009 = vdwg.mxu0
        %2010 = vmatpush.bf16.msra.mxu0 0
        %2011 = vmatpush.bf16.msra.mxu0 0
        %2012 = vmatpush.bf16.msra.mxu0 0
        %2013 = vmatpush.bf16.msra.mxu0 0
        %2014 = vmatpush.bf16.msra.mxu0 0
        %2015 = vmatpush.bf16.msra.mxu0 0
        %2016 = vmatpush.bf16.msra.mxu0 %v1930
        %2017 = vmatpush.bf16.msra.mxu0 %v1869
        %2018 = vmatmul.bf16.gmra.mxu0 %v1905
        %v2019 = vpop.f32.mrf.mxu0
        %v2020 = vadd.f32 0.0, %v2019
        %v2021 = vpop.f32.mrf.mxu0
        %v2022 = vadd.f32 0.0, %v2021
        %2023 = vmatmul.bf16.gmra.mxu0 %v1908
        %v2024 = vpop.f32.mrf.mxu0
        %v2025 = vadd.f32 0.0, %v2024
        %v2026 = vpop.f32.mrf.mxu0
        %v2027 = vadd.f32 0.0, %v2026
        %2028 = vmatmul.bf16.gmra.mxu0 %v1911
        %v2029 = vpop.f32.mrf.mxu0
        %v2030 = vadd.f32 0.0, %v2029
        %v2031 = vpop.f32.mrf.mxu0
        %v2032 = vadd.f32 0.0, %v2031
        %2033 = vmatmul.bf16.gmra.mxu0 %v1914
        %v2034 = vpop.f32.mrf.mxu0
        %v2035 = vadd.f32 0.0, %v2034
        %v2036 = vpop.f32.mrf.mxu0
        %v2037 = vadd.f32 0.0, %v2036
        %2038 = vmatmul.bf16.gmra.mxu0 %v1917
        %v2039 = vpop.f32.mrf.mxu0
        %v2040 = vadd.f32 0.0, %v2039
        %v2041 = vpop.f32.mrf.mxu0
        %v2042 = vadd.f32 0.0, %v2041
        %2043 = vmatmul.bf16.gmra.mxu0 %v1920
        %v2044 = vpop.f32.mrf.mxu0
        %v2045 = vadd.f32 0.0, %v2044
        %v2046 = vpop.f32.mrf.mxu0
        %v2047 = vadd.f32 0.0, %v2046
        %2048 = vdwg.mxu0
        %v2049 = vmul.f32 %v1942, %v1721
        %v2050 = vmul.f32 %v1981, %v1782
        %v2051 = vmul.f32 %v2020, %v1843
        %v2052 = vmul.f32 %v1944, %v1722
        %v2053 = vmul.f32 %v1983, %v1783
        %v2054 = vmul.f32 %v2022, %v1844
        %v2055 = vmul.f32 %v1947, %v1723
        %v2056 = vmul.f32 %v1986, %v1784
        %v2057 = vmul.f32 %v2025, %v1845
        %v2058 = vmul.f32 %v1949, %v1721
        %v2059 = vmul.f32 %v1988, %v1782
        %v2060 = vmul.f32 %v2027, %v1843
        %v2061 = vmul.f32 %v1952, %v1722
        %v2062 = vmul.f32 %v1991, %v1783
        %v2063 = vmul.f32 %v2030, %v1844
        %v2064 = vmul.f32 %v1954, %v1723
        %v2065 = vmul.f32 %v1993, %v1784
        %v2066 = vmul.f32 %v2032, %v1845
        %v2067 = vmul.f32 %v1957, %v1721
        %v2068 = vmul.f32 %v1996, %v1782
        %v2069 = vmul.f32 %v2035, %v1843
        %v2070 = vmul.f32 %v1959, %v1722
        %v2071 = vmul.f32 %v1998, %v1783
        %v2072 = vmul.f32 %v2037, %v1844
        %v2073 = vmul.f32 %v1962, %v1723
        %v2074 = vmul.f32 %v2001, %v1784
        %v2075 = vmul.f32 %v2040, %v1845
        %v2076 = vmul.f32 %v1964, %v1721
        %v2077 = vmul.f32 %v2003, %v1782
        %v2078 = vmul.f32 %v2042, %v1843
        %v2079 = vmul.f32 %v1967, %v1722
        %v2080 = vmul.f32 %v2006, %v1783
        %v2081 = vmul.f32 %v2045, %v1844
        %v2082 = vmul.f32 %v1969, %v1723
        %v2083 = vmul.f32 %v2008, %v1784
        %v2084 = vmul.f32 %v2047, %v1845
        %v2085 = vadd.f32 %v2049, %v2052
        %v2086 = vadd.f32 %v2085, %v2055
        %v2087 = vrot.slane %v2086, 4
        %v2088 = vadd.f32 %v2086, %v2087
        %v2089 = vrot.slane %v2088, 2
        %v2090 = vadd.f32 %v2088, %v2089
        %v2091 = vrot.slane %v2090, 1
        %v2092 = vadd.f32 %v2090, %v2091
        %v2093 = vadd.f32 %v2050, %v2053
        %v2094 = vadd.f32 %v2093, %v2056
        %v2095 = vrot.slane %v2094, 4
        %v2096 = vadd.f32 %v2094, %v2095
        %v2097 = vrot.slane %v2096, 2
        %v2098 = vadd.f32 %v2096, %v2097
        %v2099 = vrot.slane %v2098, 1
        %v2100 = vadd.f32 %v2098, %v2099
        %v2101 = vadd.f32 %v2051, %v2054
        %v2102 = vadd.f32 %v2101, %v2057
        %v2103 = vrot.slane %v2102, 4
        %v2104 = vadd.f32 %v2102, %v2103
        %v2105 = vrot.slane %v2104, 2
        %v2106 = vadd.f32 %v2104, %v2105
        %v2107 = vrot.slane %v2106, 1
        %v2108 = vadd.f32 %v2106, %v2107
        %v2109 = vadd.f32 %v2058, %v2061
        %v2110 = vadd.f32 %v2109, %v2064
        %v2111 = vrot.slane %v2110, 4
        %v2112 = vadd.f32 %v2110, %v2111
        %v2113 = vrot.slane %v2112, 2
        %v2114 = vadd.f32 %v2112, %v2113
        %v2115 = vrot.slane %v2114, 1
        %v2116 = vadd.f32 %v2114, %v2115
        %v2117 = vadd.f32 %v2059, %v2062
        %v2118 = vadd.f32 %v2117, %v2065
        %v2119 = vrot.slane %v2118, 4
        %v2120 = vadd.f32 %v2118, %v2119
        %v2121 = vrot.slane %v2120, 2
        %v2122 = vadd.f32 %v2120, %v2121
        %v2123 = vrot.slane %v2122, 1
        %v2124 = vadd.f32 %v2122, %v2123
        %v2125 = vadd.f32 %v2060, %v2063
        %v2126 = vadd.f32 %v2125, %v2066
        %v2127 = vrot.slane %v2126, 4
        %v2128 = vadd.f32 %v2126, %v2127
        %v2129 = vrot.slane %v2128, 2
        %v2130 = vadd.f32 %v2128, %v2129
        %v2131 = vrot.slane %v2130, 1
        %v2132 = vadd.f32 %v2130, %v2131
        %v2133 = vadd.f32 %v2067, %v2070
        %v2134 = vadd.f32 %v2133, %v2073
        %v2135 = vrot.slane %v2134, 4
        %v2136 = vadd.f32 %v2134, %v2135
        %v2137 = vrot.slane %v2136, 2
        %v2138 = vadd.f32 %v2136, %v2137
        %v2139 = vrot.slane %v2138, 1
        %v2140 = vadd.f32 %v2138, %v2139
        %v2141 = vadd.f32 %v2068, %v2071
        %v2142 = vadd.f32 %v2141, %v2074
        %v2143 = vrot.slane %v2142, 4
        %v2144 = vadd.f32 %v2142, %v2143
        %v2145 = vrot.slane %v2144, 2
        %v2146 = vadd.f32 %v2144, %v2145
        %v2147 = vrot.slane %v2146, 1
        %v2148 = vadd.f32 %v2146, %v2147
        %v2149 = vadd.f32 %v2069, %v2072
        %v2150 = vadd.f32 %v2149, %v2075
        %v2151 = vrot.slane %v2150, 4
        %v2152 = vadd.f32 %v2150, %v2151
        %v2153 = vrot.slane %v2152, 2
        %v2154 = vadd.f32 %v2152, %v2153
        %v2155 = vrot.slane %v2154, 1
        %v2156 = vadd.f32 %v2154, %v2155
        %v2157 = vadd.f32 %v2076, %v2079
        %v2158 = vadd.f32 %v2157, %v2082
        %v2159 = vrot.slane %v2158, 4
        %v2160 = vadd.f32 %v2158, %v2159
        %v2161 = vrot.slane %v2160, 2
        %v2162 = vadd.f32 %v2160, %v2161
        %v2163 = vrot.slane %v2162, 1
        %v2164 = vadd.f32 %v2162, %v2163
        %v2165 = vadd.f32 %v2077, %v2080
        %v2166 = vadd.f32 %v2165, %v2083
        %v2167 = vrot.slane %v2166, 4
        %v2168 = vadd.f32 %v2166, %v2167
        %v2169 = vrot.slane %v2168, 2
        %v2170 = vadd.f32 %v2168, %v2169
        %v2171 = vrot.slane %v2170, 1
        %v2172 = vadd.f32 %v2170, %v2171
        %v2173 = vadd.f32 %v2078, %v2081
        %v2174 = vadd.f32 %v2173, %v2084
        %v2175 = vrot.slane %v2174, 4
        %v2176 = vadd.f32 %v2174, %v2175
        %v2177 = vrot.slane %v2176, 2
        %v2178 = vadd.f32 %v2176, %v2177
        %v2179 = vrot.slane %v2178, 1
        %v2180 = vadd.f32 %v2178, %v2179
        %v2181 = vperm.slane %v1662, 2
        %v2182 = vmul.f32 %v2092, %v2181
        %v2183 = vmul.f32 %v2116, %v2181
        %v2184 = vmul.f32 %v2140, %v2181
        %v2185 = vmul.f32 %v2164, %v2181
        %v2186 = vpack.c.bf16 %v2182, %v2182
        %v2187 = vpack.c.bf16 %v2183, %v2183
        %v2188 = vpack.c.bf16 %v2184, %v2184
        %v2189 = vpack.c.bf16 %v2185, %v2185
        %v2194 = vunpack.c.l.b16 %v2186
        %v2195 = vunpack.c.l.b16 %v2187
        %v2196 = vunpack.c.l.b16 %v2188
        %v2197 = vunpack.c.l.b16 %v2189
        %v2198 = vrot.slane %v2195, 7
        %vm2199 = vcmask 1041409
        %v2200 = vsel %vm2199, %v2198, %v2194
        %v2201 = vrot.slane %v2196, 6
        %vm2202 = vcmask 1042434
        %v2203 = vsel %vm2202, %v2201, %v2200
        %v2204 = vrot.slane %v2197, 5
        %vm2205 = vcmask 1043459
        %v2206 = vsel %vm2205, %v2204, %v2203
        %v2207 = vpack.c.b16 %v2206, %v2206
        %2209 = vst [vmem:[#allocation2] sm:$0x3] %v2207
        %v2210 = vperm.slane %v1662, 3
        %v2211 = vmul.f32 %v2100, %v2210
        %v2212 = vmul.f32 %v2124, %v2210
        %v2213 = vmul.f32 %v2148, %v2210
        %v2214 = vmul.f32 %v2172, %v2210
        %v2215 = vpack.c.bf16 %v2211, %v2211
        %v2216 = vpack.c.bf16 %v2212, %v2212
        %v2217 = vpack.c.bf16 %v2213, %v2213
        %v2218 = vpack.c.bf16 %v2214, %v2214
        %v2223 = vunpack.c.l.b16 %v2215
        %v2224 = vunpack.c.l.b16 %v2216
        %v2225 = vunpack.c.l.b16 %v2217
        %v2226 = vunpack.c.l.b16 %v2218
        %v2227 = vrot.slane %v2223, 4
        %v2228 = vrot.slane %v2224, 3
        %vm2229 = vcmask 1045509
        %v2230 = vsel %vm2229, %v2228, %v2227
        %v2231 = vrot.slane %v2225, 2
        %vm2232 = vcmask 1046534
        %v2233 = vsel %vm2232, %v2231, %v2230
        %v2234 = vrot.slane %v2226, 1
        %vm2235 = vcmask 1047559
        %v2236 = vsel %vm2235, %v2234, %v2233
        %v2237 = vpack.c.b16 %v2236, %v2236
        %2239 = vst [vmem:[#allocation2] sm:$0xc] %v2237
        %v2240 = vperm.slane %v1662, 4
        %v2241 = vmul.f32 %v2108, %v2240
        %v2242 = vmul.f32 %v2132, %v2240
        %v2243 = vmul.f32 %v2156, %v2240
        %v2244 = vmul.f32 %v2180, %v2240
        %v2245 = vpack.c.bf16 %v2241, %v2241
        %v2246 = vpack.c.bf16 %v2242, %v2242
        %v2247 = vpack.c.bf16 %v2243, %v2243
        %v2248 = vpack.c.bf16 %v2244, %v2244
        %v2253 = vunpack.c.l.b16 %v2245
        %v2254 = vunpack.c.l.b16 %v2246
        %v2255 = vunpack.c.l.b16 %v2247
        %v2256 = vunpack.c.l.b16 %v2248
        %v2257 = vrot.slane %v2254, 7
        %v2258 = vsel %vm2199, %v2257, %v2253
        %v2259 = vrot.slane %v2255, 6
        %v2260 = vsel %vm2202, %v2259, %v2258
        %v2261 = vrot.slane %v2256, 5
        %v2262 = vsel %vm2205, %v2261, %v2260
        %v2263 = vpack.c.b16 %v2262, %v2262
        %2265 = vst [vmem:[#allocation2 + $0x4] sm:$0x3] %v2263
        %v2266 = vadd.f32 %v1682, 1.0
        %v2267 = vrot.slane %v1615, 6
        %v2269 = vadd.f32 %v2266, %v2267
        %v2270 = vrot.slane %v1615, 7
        %v2272 = vadd.f32 %v1686, %v2270
        %v2273 = vfloor.f32 %v2269
        %v2274 = vfloor.f32 %v2272
        %v2275 = vsub.f32 %v2269, %v2273
        %v2276 = vsub.f32 %v2272, %v2274
        %v2277 = vmax.f32 %v2273, -2.0
        %v2278 = vmin.f32 %v2277, 17.0
        %v2279 = vcvt.f32.s32.to.zero.pseudo %v2278
        %v2280 = vadd.s32 %v2279, 1
        %v2281 = vmax.f32 %v2274, -2.0
        %v2282 = vmin.f32 %v2281, 17.0
        %v2283 = vcvt.f32.s32.to.zero.pseudo %v2282
        %v2284 = vadd.s32 %v2283, 1
        %v2285 = vperm.slane %v2280, 0
        %vm2286 = vcmp.eq.s32.totalorder %v1679, %v2285
        %vm2287 = vcmp.eq.s32.totalorder %v1680, %v2285
        %vm2288 = vcmp.eq.s32.totalorder %v1681, %v2285
        %v2289 = vsub.f32 1.0, %v2275
        %v2290 = vperm.slane %v2289, 0
        %v2291 = vsel %vm2286, %v2290, 0.0
        %v2292 = vsel %vm2287, %v2290, 0.0
        %v2293 = vsel %vm2288, %v2290, 0.0
        %v2294 = vadd.s32 %v2280, 1
        %v2295 = vperm.slane %v2294, 0
        %vm2296 = vcmp.eq.s32.totalorder %v1679, %v2295
        %vm2297 = vcmp.eq.s32.totalorder %v1680, %v2295
        %vm2298 = vcmp.eq.s32.totalorder %v1681, %v2295
        %v2299 = vperm.slane %v2275, 0
        %v2300 = vsel %vm2296, %v2299, 0.0
        %v2301 = vsel %vm2297, %v2299, 0.0
        %v2302 = vsel %vm2298, %v2299, 0.0
        %v2303 = vadd.f32 %v2291, %v2300
        %v2304 = vadd.f32 %v2292, %v2301
        %v2305 = vadd.f32 %v2293, %v2302
        %v2306 = vperm.slane %v2284, 0
        %vm2307 = vcmp.eq.s32.totalorder %v1679, %v2306
        %vm2308 = vcmp.eq.s32.totalorder %v1680, %v2306
        %vm2309 = vcmp.eq.s32.totalorder %v1681, %v2306
        %v2310 = vsub.f32 1.0, %v2276
        %v2311 = vperm.slane %v2310, 0
        %v2312 = vsel %vm2307, %v2311, 0.0
        %v2313 = vsel %vm2308, %v2311, 0.0
        %v2314 = vsel %vm2309, %v2311, 0.0
        %v2315 = vadd.s32 %v2284, 1
        %v2316 = vperm.slane %v2315, 0
        %vm2317 = vcmp.eq.s32.totalorder %v1679, %v2316
        %vm2318 = vcmp.eq.s32.totalorder %v1680, %v2316
        %vm2319 = vcmp.eq.s32.totalorder %v1681, %v2316
        %v2320 = vperm.slane %v2276, 0
        %v2321 = vsel %vm2317, %v2320, 0.0
        %v2322 = vsel %vm2318, %v2320, 0.0
        %v2323 = vsel %vm2319, %v2320, 0.0
        %v2324 = vadd.f32 %v2312, %v2321
        %v2325 = vadd.f32 %v2313, %v2322
        %v2326 = vadd.f32 %v2314, %v2323
        %v2327 = vadd.f32 %v2266, %v1617
        %v2329 = vrot.slane %v1617, 1
        %v2331 = vadd.f32 %v1748, %v2329
        %v2332 = vfloor.f32 %v2327
        %v2333 = vfloor.f32 %v2331
        %v2334 = vsub.f32 %v2327, %v2332
        %v2335 = vsub.f32 %v2331, %v2333
        %v2336 = vmax.f32 %v2332, -2.0
        %v2337 = vmin.f32 %v2336, 17.0
        %v2338 = vcvt.f32.s32.to.zero.pseudo %v2337
        %v2339 = vadd.s32 %v2338, 1
        %v2340 = vmax.f32 %v2333, -2.0
        %v2341 = vmin.f32 %v2340, 17.0
        %v2342 = vcvt.f32.s32.to.zero.pseudo %v2341
        %v2343 = vadd.s32 %v2342, 1
        %v2344 = vperm.slane %v2339, 0
        %vm2345 = vcmp.eq.s32.totalorder %v1679, %v2344
        %vm2346 = vcmp.eq.s32.totalorder %v1680, %v2344
        %vm2347 = vcmp.eq.s32.totalorder %v1681, %v2344
        %v2348 = vsub.f32 1.0, %v2334
        %v2349 = vperm.slane %v2348, 0
        %v2350 = vsel %vm2345, %v2349, 0.0
        %v2351 = vsel %vm2346, %v2349, 0.0
        %v2352 = vsel %vm2347, %v2349, 0.0
        %v2353 = vadd.s32 %v2339, 1
        %v2354 = vperm.slane %v2353, 0
        %vm2355 = vcmp.eq.s32.totalorder %v1679, %v2354
        %vm2356 = vcmp.eq.s32.totalorder %v1680, %v2354
        %vm2357 = vcmp.eq.s32.totalorder %v1681, %v2354
        %v2358 = vperm.slane %v2334, 0
        %v2359 = vsel %vm2355, %v2358, 0.0
        %v2360 = vsel %vm2356, %v2358, 0.0
        %v2361 = vsel %vm2357, %v2358, 0.0
        %v2362 = vadd.f32 %v2350, %v2359
        %v2363 = vadd.f32 %v2351, %v2360
        %v2364 = vadd.f32 %v2352, %v2361
        %v2365 = vperm.slane %v2343, 0
        %vm2366 = vcmp.eq.s32.totalorder %v1679, %v2365
        %vm2367 = vcmp.eq.s32.totalorder %v1680, %v2365
        %vm2368 = vcmp.eq.s32.totalorder %v1681, %v2365
        %v2369 = vsub.f32 1.0, %v2335
        %v2370 = vperm.slane %v2369, 0
        %v2371 = vsel %vm2366, %v2370, 0.0
        %v2372 = vsel %vm2367, %v2370, 0.0
        %v2373 = vsel %vm2368, %v2370, 0.0
        %v2374 = vadd.s32 %v2343, 1
        %v2375 = vperm.slane %v2374, 0
        %vm2376 = vcmp.eq.s32.totalorder %v1679, %v2375
        %vm2377 = vcmp.eq.s32.totalorder %v1680, %v2375
        %vm2378 = vcmp.eq.s32.totalorder %v1681, %v2375
        %v2379 = vperm.slane %v2335, 0
        %v2380 = vsel %vm2376, %v2379, 0.0
        %v2381 = vsel %vm2377, %v2379, 0.0
        %v2382 = vsel %vm2378, %v2379, 0.0
        %v2383 = vadd.f32 %v2371, %v2380
        %v2384 = vadd.f32 %v2372, %v2381
        %v2385 = vadd.f32 %v2373, %v2382
        %v2386 = vrot.slane %v1617, 2
        %v2388 = vadd.f32 %v2266, %v2386
        %v2389 = vrot.slane %v1617, 3
        %v2391 = vadd.f32 %v1809, %v2389
        %v2392 = vfloor.f32 %v2388
        %v2393 = vfloor.f32 %v2391
        %v2394 = vsub.f32 %v2388, %v2392
        %v2395 = vsub.f32 %v2391, %v2393
        %v2396 = vmax.f32 %v2392, -2.0
        %v2397 = vmin.f32 %v2396, 17.0
        %v2398 = vcvt.f32.s32.to.zero.pseudo %v2397
        %v2399 = vadd.s32 %v2398, 1
        %v2400 = vmax.f32 %v2393, -2.0
        %v2401 = vmin.f32 %v2400, 17.0
        %v2402 = vcvt.f32.s32.to.zero.pseudo %v2401
        %v2403 = vadd.s32 %v2402, 1
        %v2404 = vperm.slane %v2399, 0
        %vm2405 = vcmp.eq.s32.totalorder %v1679, %v2404
        %vm2406 = vcmp.eq.s32.totalorder %v1680, %v2404
        %vm2407 = vcmp.eq.s32.totalorder %v1681, %v2404
        %v2408 = vsub.f32 1.0, %v2394
        %v2409 = vperm.slane %v2408, 0
        %v2410 = vsel %vm2405, %v2409, 0.0
        %v2411 = vsel %vm2406, %v2409, 0.0
        %v2412 = vsel %vm2407, %v2409, 0.0
        %v2413 = vadd.s32 %v2399, 1
        %v2414 = vperm.slane %v2413, 0
        %vm2415 = vcmp.eq.s32.totalorder %v1679, %v2414
        %vm2416 = vcmp.eq.s32.totalorder %v1680, %v2414
        %vm2417 = vcmp.eq.s32.totalorder %v1681, %v2414
        %v2418 = vperm.slane %v2394, 0
        %v2419 = vsel %vm2415, %v2418, 0.0
        %v2420 = vsel %vm2416, %v2418, 0.0
        %v2421 = vsel %vm2417, %v2418, 0.0
        %v2422 = vadd.f32 %v2410, %v2419
        %v2423 = vadd.f32 %v2411, %v2420
        %v2424 = vadd.f32 %v2412, %v2421
        %v2425 = vperm.slane %v2403, 0
        %vm2426 = vcmp.eq.s32.totalorder %v1679, %v2425
        %vm2427 = vcmp.eq.s32.totalorder %v1680, %v2425
        %vm2428 = vcmp.eq.s32.totalorder %v1681, %v2425
        %v2429 = vsub.f32 1.0, %v2395
        %v2430 = vperm.slane %v2429, 0
        %v2431 = vsel %vm2426, %v2430, 0.0
        %v2432 = vsel %vm2427, %v2430, 0.0
        %v2433 = vsel %vm2428, %v2430, 0.0
        %v2434 = vadd.s32 %v2403, 1
        %v2435 = vperm.slane %v2434, 0
        %vm2436 = vcmp.eq.s32.totalorder %v1679, %v2435
        %vm2437 = vcmp.eq.s32.totalorder %v1680, %v2435
        %vm2438 = vcmp.eq.s32.totalorder %v1681, %v2435
        %v2439 = vperm.slane %v2395, 0
        %v2440 = vsel %vm2436, %v2439, 0.0
        %v2441 = vsel %vm2437, %v2439, 0.0
        %v2442 = vsel %vm2438, %v2439, 0.0
        %v2443 = vadd.f32 %v2431, %v2440
        %v2444 = vadd.f32 %v2432, %v2441
        %v2445 = vadd.f32 %v2433, %v2442
        %v2446 = vpack.c.bf16 %v2325, %v2324
        %v2447 = vpack.c.bf16 %v2384, %v2383
        %v2448 = vpack.c.bf16 %v2444, %v2443
        %v2449 = vpack.c.bf16 %v2326, %v2326
        %v2450 = vpack.c.bf16 %v2385, %v2385
        %v2451 = vpack.c.bf16 %v2445, %v2445
        %v2453 = vsel %vm1922, %v2449, 0
        %v2456 = vsel %vm1922, %v2450, 0
        %v2459 = vsel %vm1922, %v2451, 0
        %2461 = vmatpush.bf16.msra.mxu0 0
        %2462 = vmatpush.bf16.msra.mxu0 0
        %2463 = vmatpush.bf16.msra.mxu0 0
        %2464 = vmatpush.bf16.msra.mxu0 0
        %2465 = vmatpush.bf16.msra.mxu0 0
        %2466 = vmatpush.bf16.msra.mxu0 0
        %2467 = vmatpush.bf16.msra.mxu0 %v2453
        %2468 = vmatpush.bf16.msra.mxu0 %v2446
        %2469 = vmatmul.bf16.gmra.mxu0 %v1905
        %v2470 = vpop.f32.mrf.mxu0
        %v2471 = vadd.f32 0.0, %v2470
        %v2472 = vpop.f32.mrf.mxu0
        %v2473 = vadd.f32 0.0, %v2472
        %2474 = vmatmul.bf16.gmra.mxu0 %v1908
        %v2475 = vpop.f32.mrf.mxu0
        %v2476 = vadd.f32 0.0, %v2475
        %v2477 = vpop.f32.mrf.mxu0
        %v2478 = vadd.f32 0.0, %v2477
        %2479 = vmatmul.bf16.gmra.mxu0 %v1911
        %v2480 = vpop.f32.mrf.mxu0
        %v2481 = vadd.f32 0.0, %v2480
        %v2482 = vpop.f32.mrf.mxu0
        %v2483 = vadd.f32 0.0, %v2482
        %2484 = vmatmul.bf16.gmra.mxu0 %v1914
        %v2485 = vpop.f32.mrf.mxu0
        %v2486 = vadd.f32 0.0, %v2485
        %v2487 = vpop.f32.mrf.mxu0
        %v2488 = vadd.f32 0.0, %v2487
        %2489 = vmatmul.bf16.gmra.mxu0 %v1917
        %v2490 = vpop.f32.mrf.mxu0
        %v2491 = vadd.f32 0.0, %v2490
        %v2492 = vpop.f32.mrf.mxu0
        %v2493 = vadd.f32 0.0, %v2492
        %2494 = vmatmul.bf16.gmra.mxu0 %v1920
        %v2495 = vpop.f32.mrf.mxu0
        %v2496 = vadd.f32 0.0, %v2495
        %v2497 = vpop.f32.mrf.mxu0
        %v2498 = vadd.f32 0.0, %v2497
        %2499 = vdwg.mxu0
        %2500 = vmatpush.bf16.msra.mxu0 0
        %2501 = vmatpush.bf16.msra.mxu0 0
        %2502 = vmatpush.bf16.msra.mxu0 0
        %2503 = vmatpush.bf16.msra.mxu0 0
        %2504 = vmatpush.bf16.msra.mxu0 0
        %2505 = vmatpush.bf16.msra.mxu0 0
        %2506 = vmatpush.bf16.msra.mxu0 %v2456
        %2507 = vmatpush.bf16.msra.mxu0 %v2447
        %2508 = vmatmul.bf16.gmra.mxu0 %v1905
        %v2509 = vpop.f32.mrf.mxu0
        %v2510 = vadd.f32 0.0, %v2509
        %v2511 = vpop.f32.mrf.mxu0
        %v2512 = vadd.f32 0.0, %v2511
        %2513 = vmatmul.bf16.gmra.mxu0 %v1908
        %v2514 = vpop.f32.mrf.mxu0
        %v2515 = vadd.f32 0.0, %v2514
        %v2516 = vpop.f32.mrf.mxu0
        %v2517 = vadd.f32 0.0, %v2516
        %2518 = vmatmul.bf16.gmra.mxu0 %v1911
        %v2519 = vpop.f32.mrf.mxu0
        %v2520 = vadd.f32 0.0, %v2519
        %v2521 = vpop.f32.mrf.mxu0
        %v2522 = vadd.f32 0.0, %v2521
        %2523 = vmatmul.bf16.gmra.mxu0 %v1914
        %v2524 = vpop.f32.mrf.mxu0
        %v2525 = vadd.f32 0.0, %v2524
        %v2526 = vpop.f32.mrf.mxu0
        %v2527 = vadd.f32 0.0, %v2526
        %2528 = vmatmul.bf16.gmra.mxu0 %v1917
        %v2529 = vpop.f32.mrf.mxu0
        %v2530 = vadd.f32 0.0, %v2529
        %v2531 = vpop.f32.mrf.mxu0
        %v2532 = vadd.f32 0.0, %v2531
        %2533 = vmatmul.bf16.gmra.mxu0 %v1920
        %v2534 = vpop.f32.mrf.mxu0
        %v2535 = vadd.f32 0.0, %v2534
        %v2536 = vpop.f32.mrf.mxu0
        %v2537 = vadd.f32 0.0, %v2536
        %2538 = vdwg.mxu0
        %2539 = vmatpush.bf16.msra.mxu0 0
        %2540 = vmatpush.bf16.msra.mxu0 0
        %2541 = vmatpush.bf16.msra.mxu0 0
        %2542 = vmatpush.bf16.msra.mxu0 0
        %2543 = vmatpush.bf16.msra.mxu0 0
        %2544 = vmatpush.bf16.msra.mxu0 0
        %2545 = vmatpush.bf16.msra.mxu0 %v2459
        %2546 = vmatpush.bf16.msra.mxu0 %v2448
        %2547 = vmatmul.bf16.gmra.mxu0 %v1905
        %v2548 = vpop.f32.mrf.mxu0
        %v2549 = vadd.f32 0.0, %v2548
        %v2550 = vpop.f32.mrf.mxu0
        %v2551 = vadd.f32 0.0, %v2550
        %2552 = vmatmul.bf16.gmra.mxu0 %v1908
        %v2553 = vpop.f32.mrf.mxu0
        %v2554 = vadd.f32 0.0, %v2553
        %v2555 = vpop.f32.mrf.mxu0
        %v2556 = vadd.f32 0.0, %v2555
        %2557 = vmatmul.bf16.gmra.mxu0 %v1911
        %v2558 = vpop.f32.mrf.mxu0
        %v2559 = vadd.f32 0.0, %v2558
        %v2560 = vpop.f32.mrf.mxu0
        %v2561 = vadd.f32 0.0, %v2560
        %2562 = vmatmul.bf16.gmra.mxu0 %v1914
        %v2563 = vpop.f32.mrf.mxu0
        %v2564 = vadd.f32 0.0, %v2563
        %v2565 = vpop.f32.mrf.mxu0
        %v2566 = vadd.f32 0.0, %v2565
        %2567 = vmatmul.bf16.gmra.mxu0 %v1917
        %v2568 = vpop.f32.mrf.mxu0
        %v2569 = vadd.f32 0.0, %v2568
        %v2570 = vpop.f32.mrf.mxu0
        %v2571 = vadd.f32 0.0, %v2570
        %2572 = vmatmul.bf16.gmra.mxu0 %v1920
        %v2573 = vpop.f32.mrf.mxu0
        %v2574 = vadd.f32 0.0, %v2573
        %v2575 = vpop.f32.mrf.mxu0
        %v2576 = vadd.f32 0.0, %v2575
        %2577 = vdwg.mxu0
        %v2578 = vmul.f32 %v2471, %v2303
        %v2579 = vmul.f32 %v2510, %v2362
        %v2580 = vmul.f32 %v2549, %v2422
        %v2581 = vmul.f32 %v2473, %v2304
        %v2582 = vmul.f32 %v2512, %v2363
        %v2583 = vmul.f32 %v2551, %v2423
        %v2584 = vmul.f32 %v2476, %v2305
        %v2585 = vmul.f32 %v2515, %v2364
        %v2586 = vmul.f32 %v2554, %v2424
        %v2587 = vmul.f32 %v2478, %v2303
        %v2588 = vmul.f32 %v2517, %v2362
        %v2589 = vmul.f32 %v2556, %v2422
        %v2590 = vmul.f32 %v2481, %v2304
        %v2591 = vmul.f32 %v2520, %v2363
        %v2592 = vmul.f32 %v2559, %v2423
        %v2593 = vmul.f32 %v2483, %v2305
        %v2594 = vmul.f32 %v2522, %v2364
        %v2595 = vmul.f32 %v2561, %v2424
        %v2596 = vmul.f32 %v2486, %v2303
        %v2597 = vmul.f32 %v2525, %v2362
        %v2598 = vmul.f32 %v2564, %v2422
        %v2599 = vmul.f32 %v2488, %v2304
        %v2600 = vmul.f32 %v2527, %v2363
        %v2601 = vmul.f32 %v2566, %v2423
        %v2602 = vmul.f32 %v2491, %v2305
        %v2603 = vmul.f32 %v2530, %v2364
        %v2604 = vmul.f32 %v2569, %v2424
        %v2605 = vmul.f32 %v2493, %v2303
        %v2606 = vmul.f32 %v2532, %v2362
        %v2607 = vmul.f32 %v2571, %v2422
        %v2608 = vmul.f32 %v2496, %v2304
        %v2609 = vmul.f32 %v2535, %v2363
        %v2610 = vmul.f32 %v2574, %v2423
        %v2611 = vmul.f32 %v2498, %v2305
        %v2612 = vmul.f32 %v2537, %v2364
        %v2613 = vmul.f32 %v2576, %v2424
        %v2614 = vadd.f32 %v2578, %v2581
        %v2615 = vadd.f32 %v2614, %v2584
        %v2616 = vrot.slane %v2615, 4
        %v2617 = vadd.f32 %v2615, %v2616
        %v2618 = vrot.slane %v2617, 2
        %v2619 = vadd.f32 %v2617, %v2618
        %v2620 = vrot.slane %v2619, 1
        %v2621 = vadd.f32 %v2619, %v2620
        %v2622 = vadd.f32 %v2579, %v2582
        %v2623 = vadd.f32 %v2622, %v2585
        %v2624 = vrot.slane %v2623, 4
        %v2625 = vadd.f32 %v2623, %v2624
        %v2626 = vrot.slane %v2625, 2
        %v2627 = vadd.f32 %v2625, %v2626
        %v2628 = vrot.slane %v2627, 1
        %v2629 = vadd.f32 %v2627, %v2628
        %v2630 = vadd.f32 %v2580, %v2583
        %v2631 = vadd.f32 %v2630, %v2586
        %v2632 = vrot.slane %v2631, 4
        %v2633 = vadd.f32 %v2631, %v2632
        %v2634 = vrot.slane %v2633, 2
        %v2635 = vadd.f32 %v2633, %v2634
        %v2636 = vrot.slane %v2635, 1
        %v2637 = vadd.f32 %v2635, %v2636
        %v2638 = vadd.f32 %v2587, %v2590
        %v2639 = vadd.f32 %v2638, %v2593
        %v2640 = vrot.slane %v2639, 4
        %v2641 = vadd.f32 %v2639, %v2640
        %v2642 = vrot.slane %v2641, 2
        %v2643 = vadd.f32 %v2641, %v2642
        %v2644 = vrot.slane %v2643, 1
        %v2645 = vadd.f32 %v2643, %v2644
        %v2646 = vadd.f32 %v2588, %v2591
        %v2647 = vadd.f32 %v2646, %v2594
        %v2648 = vrot.slane %v2647, 4
        %v2649 = vadd.f32 %v2647, %v2648
        %v2650 = vrot.slane %v2649, 2
        %v2651 = vadd.f32 %v2649, %v2650
        %v2652 = vrot.slane %v2651, 1
        %v2653 = vadd.f32 %v2651, %v2652
        %v2654 = vadd.f32 %v2589, %v2592
        %v2655 = vadd.f32 %v2654, %v2595
        %v2656 = vrot.slane %v2655, 4
        %v2657 = vadd.f32 %v2655, %v2656
        %v2658 = vrot.slane %v2657, 2
        %v2659 = vadd.f32 %v2657, %v2658
        %v2660 = vrot.slane %v2659, 1
        %v2661 = vadd.f32 %v2659, %v2660
        %v2662 = vadd.f32 %v2596, %v2599
        %v2663 = vadd.f32 %v2662, %v2602
        %v2664 = vrot.slane %v2663, 4
        %v2665 = vadd.f32 %v2663, %v2664
        %v2666 = vrot.slane %v2665, 2
        %v2667 = vadd.f32 %v2665, %v2666
        %v2668 = vrot.slane %v2667, 1
        %v2669 = vadd.f32 %v2667, %v2668
        %v2670 = vadd.f32 %v2597, %v2600
        %v2671 = vadd.f32 %v2670, %v2603
        %v2672 = vrot.slane %v2671, 4
        %v2673 = vadd.f32 %v2671, %v2672
        %v2674 = vrot.slane %v2673, 2
        %v2675 = vadd.f32 %v2673, %v2674
        %v2676 = vrot.slane %v2675, 1
        %v2677 = vadd.f32 %v2675, %v2676
        %v2678 = vadd.f32 %v2598, %v2601
        %v2679 = vadd.f32 %v2678, %v2604
        %v2680 = vrot.slane %v2679, 4
        %v2681 = vadd.f32 %v2679, %v2680
        %v2682 = vrot.slane %v2681, 2
        %v2683 = vadd.f32 %v2681, %v2682
        %v2684 = vrot.slane %v2683, 1
        %v2685 = vadd.f32 %v2683, %v2684
        %v2686 = vadd.f32 %v2605, %v2608
        %v2687 = vadd.f32 %v2686, %v2611
        %v2688 = vrot.slane %v2687, 4
        %v2689 = vadd.f32 %v2687, %v2688
        %v2690 = vrot.slane %v2689, 2
        %v2691 = vadd.f32 %v2689, %v2690
        %v2692 = vrot.slane %v2691, 1
        %v2693 = vadd.f32 %v2691, %v2692
        %v2694 = vadd.f32 %v2606, %v2609
        %v2695 = vadd.f32 %v2694, %v2612
        %v2696 = vrot.slane %v2695, 4
        %v2697 = vadd.f32 %v2695, %v2696
        %v2698 = vrot.slane %v2697, 2
        %v2699 = vadd.f32 %v2697, %v2698
        %v2700 = vrot.slane %v2699, 1
        %v2701 = vadd.f32 %v2699, %v2700
        %v2702 = vadd.f32 %v2607, %v2610
        %v2703 = vadd.f32 %v2702, %v2613
        %v2704 = vrot.slane %v2703, 4
        %v2705 = vadd.f32 %v2703, %v2704
        %v2706 = vrot.slane %v2705, 2
        %v2707 = vadd.f32 %v2705, %v2706
        %v2708 = vrot.slane %v2707, 1
        %v2709 = vadd.f32 %v2707, %v2708
        %v2710 = vperm.slane %v1662, 5
        %v2711 = vmul.f32 %v2621, %v2710
        %v2712 = vmul.f32 %v2645, %v2710
        %v2713 = vmul.f32 %v2669, %v2710
        %v2714 = vmul.f32 %v2693, %v2710
        %v2715 = vpack.c.bf16 %v2711, %v2711
        %v2716 = vpack.c.bf16 %v2712, %v2712
        %v2717 = vpack.c.bf16 %v2713, %v2713
        %v2718 = vpack.c.bf16 %v2714, %v2714
        %v2723 = vunpack.c.l.b16 %v2715
        %v2724 = vunpack.c.l.b16 %v2716
        %v2725 = vunpack.c.l.b16 %v2717
        %v2726 = vunpack.c.l.b16 %v2718
        %v2727 = vrot.slane %v2723, 4
        %v2728 = vrot.slane %v2724, 3
        %v2729 = vsel %vm2229, %v2728, %v2727
        %v2730 = vrot.slane %v2725, 2
        %v2731 = vsel %vm2232, %v2730, %v2729
        %v2732 = vrot.slane %v2726, 1
        %v2733 = vsel %vm2235, %v2732, %v2731
        %v2734 = vpack.c.b16 %v2733, %v2733
        %2736 = vst [vmem:[#allocation2 + $0x4] sm:$0xc] %v2734
        %v2737 = vperm.slane %v1662, 6
        %v2738 = vmul.f32 %v2629, %v2737
        %v2739 = vmul.f32 %v2653, %v2737
        %v2740 = vmul.f32 %v2677, %v2737
        %v2741 = vmul.f32 %v2701, %v2737
        %v2742 = vpack.c.bf16 %v2738, %v2738
        %v2743 = vpack.c.bf16 %v2739, %v2739
        %v2744 = vpack.c.bf16 %v2740, %v2740
        %v2745 = vpack.c.bf16 %v2741, %v2741
        %v2750 = vunpack.c.l.b16 %v2742
        %v2751 = vunpack.c.l.b16 %v2743
        %v2752 = vunpack.c.l.b16 %v2744
        %v2753 = vunpack.c.l.b16 %v2745
        %v2754 = vrot.slane %v2751, 7
        %v2755 = vsel %vm2199, %v2754, %v2750
        %v2756 = vrot.slane %v2752, 6
        %v2757 = vsel %vm2202, %v2756, %v2755
        %v2758 = vrot.slane %v2753, 5
        %v2759 = vsel %vm2205, %v2758, %v2757
        %v2760 = vpack.c.b16 %v2759, %v2759
        %2762 = vst [vmem:[#allocation2 + $0x8] sm:$0x3] %v2760
        %v2763 = vperm.slane %v1662, 7
        %v2764 = vmul.f32 %v2637, %v2763
        %v2765 = vmul.f32 %v2661, %v2763
        %v2766 = vmul.f32 %v2685, %v2763
        %v2767 = vmul.f32 %v2709, %v2763
        %v2768 = vpack.c.bf16 %v2764, %v2764
        %v2769 = vpack.c.bf16 %v2765, %v2765
        %v2770 = vpack.c.bf16 %v2766, %v2766
        %v2771 = vpack.c.bf16 %v2767, %v2767
        %v2776 = vunpack.c.l.b16 %v2768
        %v2777 = vunpack.c.l.b16 %v2769
        %v2778 = vunpack.c.l.b16 %v2770
        %v2779 = vunpack.c.l.b16 %v2771
        %v2780 = vrot.slane %v2776, 4
        %v2781 = vrot.slane %v2777, 3
        %v2782 = vsel %vm2229, %v2781, %v2780
        %v2783 = vrot.slane %v2778, 2
        %v2784 = vsel %vm2232, %v2783, %v2782
        %v2785 = vrot.slane %v2779, 1
        %v2786 = vsel %vm2235, %v2785, %v2784
        %v2787 = vpack.c.b16 %v2786, %v2786
        %2789 = vst [vmem:[#allocation2 + $0x8] sm:$0xc] %v2787
        %v2790 = vadd.f32 %v1682, 2.0
        %v2791 = vrot.slane %v1617, 4
        %v2793 = vadd.f32 %v2790, %v2791
        %v2794 = vrot.slane %v1617, 5
        %v2796 = vadd.f32 %v1686, %v2794
        %v2797 = vfloor.f32 %v2793
        %v2798 = vfloor.f32 %v2796
        %v2799 = vsub.f32 %v2793, %v2797
        %v2800 = vsub.f32 %v2796, %v2798
        %v2801 = vmax.f32 %v2797, -2.0
        %v2802 = vmin.f32 %v2801, 17.0
        %v2803 = vcvt.f32.s32.to.zero.pseudo %v2802
        %v2804 = vadd.s32 %v2803, 1
        %v2805 = vmax.f32 %v2798, -2.0
        %v2806 = vmin.f32 %v2805, 17.0
        %v2807 = vcvt.f32.s32.to.zero.pseudo %v2806
        %v2808 = vadd.s32 %v2807, 1
        %v2809 = vperm.slane %v2804, 0
        %vm2810 = vcmp.eq.s32.totalorder %v1679, %v2809
        %vm2811 = vcmp.eq.s32.totalorder %v1680, %v2809
        %vm2812 = vcmp.eq.s32.totalorder %v1681, %v2809
        %v2813 = vsub.f32 1.0, %v2799
        %v2814 = vperm.slane %v2813, 0
        %v2815 = vsel %vm2810, %v2814, 0.0
        %v2816 = vsel %vm2811, %v2814, 0.0
        %v2817 = vsel %vm2812, %v2814, 0.0
        %v2818 = vadd.s32 %v2804, 1
        %v2819 = vperm.slane %v2818, 0
        %vm2820 = vcmp.eq.s32.totalorder %v1679, %v2819
        %vm2821 = vcmp.eq.s32.totalorder %v1680, %v2819
        %vm2822 = vcmp.eq.s32.totalorder %v1681, %v2819
        %v2823 = vperm.slane %v2799, 0
        %v2824 = vsel %vm2820, %v2823, 0.0
        %v2825 = vsel %vm2821, %v2823, 0.0
        %v2826 = vsel %vm2822, %v2823, 0.0
        %v2827 = vadd.f32 %v2815, %v2824
        %v2828 = vadd.f32 %v2816, %v2825
        %v2829 = vadd.f32 %v2817, %v2826
        %v2830 = vperm.slane %v2808, 0
        %vm2831 = vcmp.eq.s32.totalorder %v1679, %v2830
        %vm2832 = vcmp.eq.s32.totalorder %v1680, %v2830
        %vm2833 = vcmp.eq.s32.totalorder %v1681, %v2830
        %v2834 = vsub.f32 1.0, %v2800
        %v2835 = vperm.slane %v2834, 0
        %v2836 = vsel %vm2831, %v2835, 0.0
        %v2837 = vsel %vm2832, %v2835, 0.0
        %v2838 = vsel %vm2833, %v2835, 0.0
        %v2839 = vadd.s32 %v2808, 1
        %v2840 = vperm.slane %v2839, 0
        %vm2841 = vcmp.eq.s32.totalorder %v1679, %v2840
        %vm2842 = vcmp.eq.s32.totalorder %v1680, %v2840
        %vm2843 = vcmp.eq.s32.totalorder %v1681, %v2840
        %v2844 = vperm.slane %v2800, 0
        %v2845 = vsel %vm2841, %v2844, 0.0
        %v2846 = vsel %vm2842, %v2844, 0.0
        %v2847 = vsel %vm2843, %v2844, 0.0
        %v2848 = vadd.f32 %v2836, %v2845
        %v2849 = vadd.f32 %v2837, %v2846
        %v2850 = vadd.f32 %v2838, %v2847
        %v2851 = vrot.slane %v1617, 6
        %v2853 = vadd.f32 %v2790, %v2851
        %v2854 = vrot.slane %v1617, 7
        %v2856 = vadd.f32 %v1748, %v2854
        %v2857 = vfloor.f32 %v2853
        %v2858 = vfloor.f32 %v2856
        %v2859 = vsub.f32 %v2853, %v2857
        %v2860 = vsub.f32 %v2856, %v2858
        %v2861 = vmax.f32 %v2857, -2.0
        %v2862 = vmin.f32 %v2861, 17.0
        %v2863 = vcvt.f32.s32.to.zero.pseudo %v2862
        %v2864 = vadd.s32 %v2863, 1
        %v2865 = vmax.f32 %v2858, -2.0
        %v2866 = vmin.f32 %v2865, 17.0
        %v2867 = vcvt.f32.s32.to.zero.pseudo %v2866
        %v2868 = vadd.s32 %v2867, 1
        %v2869 = vperm.slane %v2864, 0
        %vm2870 = vcmp.eq.s32.totalorder %v1679, %v2869
        %vm2871 = vcmp.eq.s32.totalorder %v1680, %v2869
        %vm2872 = vcmp.eq.s32.totalorder %v1681, %v2869
        %v2873 = vsub.f32 1.0, %v2859
        %v2874 = vperm.slane %v2873, 0
        %v2875 = vsel %vm2870, %v2874, 0.0
        %v2876 = vsel %vm2871, %v2874, 0.0
        %v2877 = vsel %vm2872, %v2874, 0.0
        %v2878 = vadd.s32 %v2864, 1
        %v2879 = vperm.slane %v2878, 0
        %vm2880 = vcmp.eq.s32.totalorder %v1679, %v2879
        %vm2881 = vcmp.eq.s32.totalorder %v1680, %v2879
        %vm2882 = vcmp.eq.s32.totalorder %v1681, %v2879
        %v2883 = vperm.slane %v2859, 0
        %v2884 = vsel %vm2880, %v2883, 0.0
        %v2885 = vsel %vm2881, %v2883, 0.0
        %v2886 = vsel %vm2882, %v2883, 0.0
        %v2887 = vadd.f32 %v2875, %v2884
        %v2888 = vadd.f32 %v2876, %v2885
        %v2889 = vadd.f32 %v2877, %v2886
        %v2890 = vperm.slane %v2868, 0
        %vm2891 = vcmp.eq.s32.totalorder %v1679, %v2890
        %vm2892 = vcmp.eq.s32.totalorder %v1680, %v2890
        %vm2893 = vcmp.eq.s32.totalorder %v1681, %v2890
        %v2894 = vsub.f32 1.0, %v2860
        %v2895 = vperm.slane %v2894, 0
        %v2896 = vsel %vm2891, %v2895, 0.0
        %v2897 = vsel %vm2892, %v2895, 0.0
        %v2898 = vsel %vm2893, %v2895, 0.0
        %v2899 = vadd.s32 %v2868, 1
        %v2900 = vperm.slane %v2899, 0
        %vm2901 = vcmp.eq.s32.totalorder %v1679, %v2900
        %vm2902 = vcmp.eq.s32.totalorder %v1680, %v2900
        %vm2903 = vcmp.eq.s32.totalorder %v1681, %v2900
        %v2904 = vperm.slane %v2860, 0
        %v2905 = vsel %vm2901, %v2904, 0.0
        %v2906 = vsel %vm2902, %v2904, 0.0
        %v2907 = vsel %vm2903, %v2904, 0.0
        %v2908 = vadd.f32 %v2896, %v2905
        %v2909 = vadd.f32 %v2897, %v2906
        %v2910 = vadd.f32 %v2898, %v2907
        %v2911 = vadd.f32 %v2790, %v1620
        %v2913 = vrot.slane %v1620, 1
        %v2915 = vadd.f32 %v1809, %v2913
        %v2916 = vfloor.f32 %v2911
        %v2917 = vfloor.f32 %v2915
        %v2918 = vsub.f32 %v2911, %v2916
        %v2919 = vsub.f32 %v2915, %v2917
        %v2920 = vmax.f32 %v2916, -2.0
        %v2921 = vmin.f32 %v2920, 17.0
        %v2922 = vcvt.f32.s32.to.zero.pseudo %v2921
        %v2923 = vadd.s32 %v2922, 1
        %v2924 = vmax.f32 %v2917, -2.0
        %v2925 = vmin.f32 %v2924, 17.0
        %v2926 = vcvt.f32.s32.to.zero.pseudo %v2925
        %v2927 = vadd.s32 %v2926, 1
        %v2928 = vperm.slane %v2923, 0
        %vm2929 = vcmp.eq.s32.totalorder %v1679, %v2928
        %vm2930 = vcmp.eq.s32.totalorder %v1680, %v2928
        %vm2931 = vcmp.eq.s32.totalorder %v1681, %v2928
        %v2932 = vsub.f32 1.0, %v2918
        %v2933 = vperm.slane %v2932, 0
        %v2934 = vsel %vm2929, %v2933, 0.0
        %v2935 = vsel %vm2930, %v2933, 0.0
        %v2936 = vsel %vm2931, %v2933, 0.0
        %v2937 = vadd.s32 %v2923, 1
        %v2938 = vperm.slane %v2937, 0
        %vm2939 = vcmp.eq.s32.totalorder %v1679, %v2938
        %vm2940 = vcmp.eq.s32.totalorder %v1680, %v2938
        %vm2941 = vcmp.eq.s32.totalorder %v1681, %v2938
        %v2942 = vperm.slane %v2918, 0
        %v2943 = vsel %vm2939, %v2942, 0.0
        %v2944 = vsel %vm2940, %v2942, 0.0
        %v2945 = vsel %vm2941, %v2942, 0.0
        %v2946 = vadd.f32 %v2934, %v2943
        %v2947 = vadd.f32 %v2935, %v2944
        %v2948 = vadd.f32 %v2936, %v2945
        %v2949 = vperm.slane %v2927, 0
        %vm2950 = vcmp.eq.s32.totalorder %v1679, %v2949
        %vm2951 = vcmp.eq.s32.totalorder %v1680, %v2949
        %vm2952 = vcmp.eq.s32.totalorder %v1681, %v2949
        %v2953 = vsub.f32 1.0, %v2919
        %v2954 = vperm.slane %v2953, 0
        %v2955 = vsel %vm2950, %v2954, 0.0
        %v2956 = vsel %vm2951, %v2954, 0.0
        %v2957 = vsel %vm2952, %v2954, 0.0
        %v2958 = vadd.s32 %v2927, 1
        %v2959 = vperm.slane %v2958, 0
        %vm2960 = vcmp.eq.s32.totalorder %v1679, %v2959
        %vm2961 = vcmp.eq.s32.totalorder %v1680, %v2959
        %vm2962 = vcmp.eq.s32.totalorder %v1681, %v2959
        %v2963 = vperm.slane %v2919, 0
        %v2964 = vsel %vm2960, %v2963, 0.0
        %v2965 = vsel %vm2961, %v2963, 0.0
        %v2966 = vsel %vm2962, %v2963, 0.0
        %v2967 = vadd.f32 %v2955, %v2964
        %v2968 = vadd.f32 %v2956, %v2965
        %v2969 = vadd.f32 %v2957, %v2966
        %v2970 = vpack.c.bf16 %v2849, %v2848
        %v2971 = vpack.c.bf16 %v2909, %v2908
        %v2972 = vpack.c.bf16 %v2968, %v2967
        %v2973 = vpack.c.bf16 %v2850, %v2850
        %v2974 = vpack.c.bf16 %v2910, %v2910
        %v2975 = vpack.c.bf16 %v2969, %v2969
        %v2977 = vsel %vm1922, %v2973, 0
        %v2980 = vsel %vm1922, %v2974, 0
        %v2983 = vsel %vm1922, %v2975, 0
        %2985 = vmatpush.bf16.msra.mxu0 0
        %2986 = vmatpush.bf16.msra.mxu0 0
        %2987 = vmatpush.bf16.msra.mxu0 0
        %2988 = vmatpush.bf16.msra.mxu0 0
        %2989 = vmatpush.bf16.msra.mxu0 0
        %2990 = vmatpush.bf16.msra.mxu0 0
        %2991 = vmatpush.bf16.msra.mxu0 %v2977
        %2992 = vmatpush.bf16.msra.mxu0 %v2970
        %2993 = vmatmul.bf16.gmra.mxu0 %v1905
        %v2994 = vpop.f32.mrf.mxu0
        %v2995 = vadd.f32 0.0, %v2994
        %v2996 = vpop.f32.mrf.mxu0
        %v2997 = vadd.f32 0.0, %v2996
        %2998 = vmatmul.bf16.gmra.mxu0 %v1908
        %v2999 = vpop.f32.mrf.mxu0
        %v3000 = vadd.f32 0.0, %v2999
        %v3001 = vpop.f32.mrf.mxu0
        %v3002 = vadd.f32 0.0, %v3001
        %3003 = vmatmul.bf16.gmra.mxu0 %v1911
        %v3004 = vpop.f32.mrf.mxu0
        %v3005 = vadd.f32 0.0, %v3004
        %v3006 = vpop.f32.mrf.mxu0
        %v3007 = vadd.f32 0.0, %v3006
        %3008 = vmatmul.bf16.gmra.mxu0 %v1914
        %v3009 = vpop.f32.mrf.mxu0
        %v3010 = vadd.f32 0.0, %v3009
        %v3011 = vpop.f32.mrf.mxu0
        %v3012 = vadd.f32 0.0, %v3011
        %3013 = vmatmul.bf16.gmra.mxu0 %v1917
        %v3014 = vpop.f32.mrf.mxu0
        %v3015 = vadd.f32 0.0, %v3014
        %v3016 = vpop.f32.mrf.mxu0
        %v3017 = vadd.f32 0.0, %v3016
        %3018 = vmatmul.bf16.gmra.mxu0 %v1920
        %v3019 = vpop.f32.mrf.mxu0
        %v3020 = vadd.f32 0.0, %v3019
        %v3021 = vpop.f32.mrf.mxu0
        %v3022 = vadd.f32 0.0, %v3021
        %3023 = vdwg.mxu0
        %3024 = vmatpush.bf16.msra.mxu0 0
        %3025 = vmatpush.bf16.msra.mxu0 0
        %3026 = vmatpush.bf16.msra.mxu0 0
        %3027 = vmatpush.bf16.msra.mxu0 0
        %3028 = vmatpush.bf16.msra.mxu0 0
        %3029 = vmatpush.bf16.msra.mxu0 0
        %3030 = vmatpush.bf16.msra.mxu0 %v2980
        %3031 = vmatpush.bf16.msra.mxu0 %v2971
        %3032 = vmatmul.bf16.gmra.mxu0 %v1905
        %v3033 = vpop.f32.mrf.mxu0
        %v3034 = vadd.f32 0.0, %v3033
        %v3035 = vpop.f32.mrf.mxu0
        %v3036 = vadd.f32 0.0, %v3035
        %3037 = vmatmul.bf16.gmra.mxu0 %v1908
        %v3038 = vpop.f32.mrf.mxu0
        %v3039 = vadd.f32 0.0, %v3038
        %v3040 = vpop.f32.mrf.mxu0
        %v3041 = vadd.f32 0.0, %v3040
        %3042 = vmatmul.bf16.gmra.mxu0 %v1911
        %v3043 = vpop.f32.mrf.mxu0
        %v3044 = vadd.f32 0.0, %v3043
        %v3045 = vpop.f32.mrf.mxu0
        %v3046 = vadd.f32 0.0, %v3045
        %3047 = vmatmul.bf16.gmra.mxu0 %v1914
        %v3048 = vpop.f32.mrf.mxu0
        %v3049 = vadd.f32 0.0, %v3048
        %v3050 = vpop.f32.mrf.mxu0
        %v3051 = vadd.f32 0.0, %v3050
        %3052 = vmatmul.bf16.gmra.mxu0 %v1917
        %v3053 = vpop.f32.mrf.mxu0
        %v3054 = vadd.f32 0.0, %v3053
        %v3055 = vpop.f32.mrf.mxu0
        %v3056 = vadd.f32 0.0, %v3055
        %3057 = vmatmul.bf16.gmra.mxu0 %v1920
        %v3058 = vpop.f32.mrf.mxu0
        %v3059 = vadd.f32 0.0, %v3058
        %v3060 = vpop.f32.mrf.mxu0
        %v3061 = vadd.f32 0.0, %v3060
        %3062 = vdwg.mxu0
        %3063 = vmatpush.bf16.msra.mxu0 0
        %3064 = vmatpush.bf16.msra.mxu0 0
        %3065 = vmatpush.bf16.msra.mxu0 0
        %3066 = vmatpush.bf16.msra.mxu0 0
        %3067 = vmatpush.bf16.msra.mxu0 0
        %3068 = vmatpush.bf16.msra.mxu0 0
        %3069 = vmatpush.bf16.msra.mxu0 %v2983
        %3070 = vmatpush.bf16.msra.mxu0 %v2972
        %3071 = vmatmul.bf16.gmra.mxu0 %v1905
        %v3072 = vpop.f32.mrf.mxu0
        %v3073 = vadd.f32 0.0, %v3072
        %v3074 = vpop.f32.mrf.mxu0
        %v3075 = vadd.f32 0.0, %v3074
        %3076 = vmatmul.bf16.gmra.mxu0 %v1908
        %v3077 = vpop.f32.mrf.mxu0
        %v3078 = vadd.f32 0.0, %v3077
        %v3079 = vpop.f32.mrf.mxu0
        %v3080 = vadd.f32 0.0, %v3079
        %3081 = vmatmul.bf16.gmra.mxu0 %v1911
        %v3082 = vpop.f32.mrf.mxu0
        %v3083 = vadd.f32 0.0, %v3082
        %v3084 = vpop.f32.mrf.mxu0
        %v3085 = vadd.f32 0.0, %v3084
        %3086 = vmatmul.bf16.gmra.mxu0 %v1914
        %v3087 = vpop.f32.mrf.mxu0
        %v3088 = vadd.f32 0.0, %v3087
        %v3089 = vpop.f32.mrf.mxu0
        %v3090 = vadd.f32 0.0, %v3089
        %3091 = vmatmul.bf16.gmra.mxu0 %v1917
        %v3092 = vpop.f32.mrf.mxu0
        %v3093 = vadd.f32 0.0, %v3092
        %v3094 = vpop.f32.mrf.mxu0
        %v3095 = vadd.f32 0.0, %v3094
        %3096 = vmatmul.bf16.gmra.mxu0 %v1920
        %v3097 = vpop.f32.mrf.mxu0
        %v3098 = vadd.f32 0.0, %v3097
        %v3099 = vpop.f32.mrf.mxu0
        %v3100 = vadd.f32 0.0, %v3099
        %3101 = vdwg.mxu0
        %v3102 = vmul.f32 %v2995, %v2827
        %v3103 = vmul.f32 %v3034, %v2887
        %v3104 = vmul.f32 %v3073, %v2946
        %v3105 = vmul.f32 %v2997, %v2828
        %v3106 = vmul.f32 %v3036, %v2888
        %v3107 = vmul.f32 %v3075, %v2947
        %v3108 = vmul.f32 %v3000, %v2829
        %v3109 = vmul.f32 %v3039, %v2889
        %v3110 = vmul.f32 %v3078, %v2948
        %v3111 = vmul.f32 %v3002, %v2827
        %v3112 = vmul.f32 %v3041, %v2887
        %v3113 = vmul.f32 %v3080, %v2946
        %v3114 = vmul.f32 %v3005, %v2828
        %v3115 = vmul.f32 %v3044, %v2888
        %v3116 = vmul.f32 %v3083, %v2947
        %v3117 = vmul.f32 %v3007, %v2829
        %v3118 = vmul.f32 %v3046, %v2889
        %v3119 = vmul.f32 %v3085, %v2948
        %v3120 = vmul.f32 %v3010, %v2827
        %v3121 = vmul.f32 %v3049, %v2887
        %v3122 = vmul.f32 %v3088, %v2946
        %v3123 = vmul.f32 %v3012, %v2828
        %v3124 = vmul.f32 %v3051, %v2888
        %v3125 = vmul.f32 %v3090, %v2947
        %v3126 = vmul.f32 %v3015, %v2829
        %v3127 = vmul.f32 %v3054, %v2889
        %v3128 = vmul.f32 %v3093, %v2948
        %v3129 = vmul.f32 %v3017, %v2827
        %v3130 = vmul.f32 %v3056, %v2887
        %v3131 = vmul.f32 %v3095, %v2946
        %v3132 = vmul.f32 %v3020, %v2828
        %v3133 = vmul.f32 %v3059, %v2888
        %v3134 = vmul.f32 %v3098, %v2947
        %v3135 = vmul.f32 %v3022, %v2829
        %v3136 = vmul.f32 %v3061, %v2889
        %v3137 = vmul.f32 %v3100, %v2948
        %v3138 = vadd.f32 %v3102, %v3105
        %v3139 = vadd.f32 %v3138, %v3108
        %v3140 = vrot.slane %v3139, 4
        %v3141 = vadd.f32 %v3139, %v3140
        %v3142 = vrot.slane %v3141, 2
        %v3143 = vadd.f32 %v3141, %v3142
        %v3144 = vrot.slane %v3143, 1
        %v3145 = vadd.f32 %v3143, %v3144
        %v3146 = vadd.f32 %v3103, %v3106
        %v3147 = vadd.f32 %v3146, %v3109
        %v3148 = vrot.slane %v3147, 4
        %v3149 = vadd.f32 %v3147, %v3148
        %v3150 = vrot.slane %v3149, 2
        %v3151 = vadd.f32 %v3149, %v3150
        %v3152 = vrot.slane %v3151, 1
        %v3153 = vadd.f32 %v3151, %v3152
        %v3154 = vadd.f32 %v3104, %v3107
        %v3155 = vadd.f32 %v3154, %v3110
        %v3156 = vrot.slane %v3155, 4
        %v3157 = vadd.f32 %v3155, %v3156
        %v3158 = vrot.slane %v3157, 2
        %v3159 = vadd.f32 %v3157, %v3158
        %v3160 = vrot.slane %v3159, 1
        %v3161 = vadd.f32 %v3159, %v3160
        %v3162 = vadd.f32 %v3111, %v3114
        %v3163 = vadd.f32 %v3162, %v3117
        %v3164 = vrot.slane %v3163, 4
        %v3165 = vadd.f32 %v3163, %v3164
        %v3166 = vrot.slane %v3165, 2
        %v3167 = vadd.f32 %v3165, %v3166
        %v3168 = vrot.slane %v3167, 1
        %v3169 = vadd.f32 %v3167, %v3168
        %v3170 = vadd.f32 %v3112, %v3115
        %v3171 = vadd.f32 %v3170, %v3118
        %v3172 = vrot.slane %v3171, 4
        %v3173 = vadd.f32 %v3171, %v3172
        %v3174 = vrot.slane %v3173, 2
        %v3175 = vadd.f32 %v3173, %v3174
        %v3176 = vrot.slane %v3175, 1
        %v3177 = vadd.f32 %v3175, %v3176
        %v3178 = vadd.f32 %v3113, %v3116
        %v3179 = vadd.f32 %v3178, %v3119
        %v3180 = vrot.slane %v3179, 4
        %v3181 = vadd.f32 %v3179, %v3180
        %v3182 = vrot.slane %v3181, 2
        %v3183 = vadd.f32 %v3181, %v3182
        %v3184 = vrot.slane %v3183, 1
        %v3185 = vadd.f32 %v3183, %v3184
        %v3186 = vadd.f32 %v3120, %v3123
        %v3187 = vadd.f32 %v3186, %v3126
        %v3188 = vrot.slane %v3187, 4
        %v3189 = vadd.f32 %v3187, %v3188
        %v3190 = vrot.slane %v3189, 2
        %v3191 = vadd.f32 %v3189, %v3190
        %v3192 = vrot.slane %v3191, 1
        %v3193 = vadd.f32 %v3191, %v3192
        %v3194 = vadd.f32 %v3121, %v3124
        %v3195 = vadd.f32 %v3194, %v3127
        %v3196 = vrot.slane %v3195, 4
        %v3197 = vadd.f32 %v3195, %v3196
        %v3198 = vrot.slane %v3197, 2
        %v3199 = vadd.f32 %v3197, %v3198
        %v3200 = vrot.slane %v3199, 1
        %v3201 = vadd.f32 %v3199, %v3200
        %v3202 = vadd.f32 %v3122, %v3125
        %v3203 = vadd.f32 %v3202, %v3128
        %v3204 = vrot.slane %v3203, 4
        %v3205 = vadd.f32 %v3203, %v3204
        %v3206 = vrot.slane %v3205, 2
        %v3207 = vadd.f32 %v3205, %v3206
        %v3208 = vrot.slane %v3207, 1
        %v3209 = vadd.f32 %v3207, %v3208
        %v3210 = vadd.f32 %v3129, %v3132
        %v3211 = vadd.f32 %v3210, %v3135
        %v3212 = vrot.slane %v3211, 4
        %v3213 = vadd.f32 %v3211, %v3212
        %v3214 = vrot.slane %v3213, 2
        %v3215 = vadd.f32 %v3213, %v3214
        %v3216 = vrot.slane %v3215, 1
        %v3217 = vadd.f32 %v3215, %v3216
        %v3218 = vadd.f32 %v3130, %v3133
        %v3219 = vadd.f32 %v3218, %v3136
        %v3220 = vrot.slane %v3219, 4
        %v3221 = vadd.f32 %v3219, %v3220
        %v3222 = vrot.slane %v3221, 2
        %v3223 = vadd.f32 %v3221, %v3222
        %v3224 = vrot.slane %v3223, 1
        %v3225 = vadd.f32 %v3223, %v3224
        %v3226 = vadd.f32 %v3131, %v3134
        %v3227 = vadd.f32 %v3226, %v3137
        %v3228 = vrot.slane %v3227, 4
        %v3229 = vadd.f32 %v3227, %v3228
        %v3230 = vrot.slane %v3229, 2
        %v3231 = vadd.f32 %v3229, %v3230
        %v3232 = vrot.slane %v3231, 1
        %v3233 = vadd.f32 %v3231, %v3232
        %v3234 = vperm.slane %v1663, 0
        %v3235 = vmul.f32 %v3145, %v3234
        %v3236 = vmul.f32 %v3169, %v3234
        %v3237 = vmul.f32 %v3193, %v3234
        %v3238 = vmul.f32 %v3217, %v3234
        %v3239 = vpack.c.bf16 %v3235, %v3235
        %v3240 = vpack.c.bf16 %v3236, %v3236
        %v3241 = vpack.c.bf16 %v3237, %v3237
        %v3242 = vpack.c.bf16 %v3238, %v3238
        %v3247 = vunpack.c.l.b16 %v3239
        %v3248 = vunpack.c.l.b16 %v3240
        %v3249 = vunpack.c.l.b16 %v3241
        %v3250 = vunpack.c.l.b16 %v3242
        %v3251 = vrot.slane %v3248, 7
        %v3252 = vsel %vm2199, %v3251, %v3247
        %v3253 = vrot.slane %v3249, 6
        %v3254 = vsel %vm2202, %v3253, %v3252
        %v3255 = vrot.slane %v3250, 5
        %v3256 = vsel %vm2205, %v3255, %v3254
        %v3257 = vpack.c.b16 %v3256, %v3256
        %3259 = vst [vmem:[#allocation2 + $0xc] sm:$0x3] %v3257
        %v3260 = vperm.slane %v1663, 1
        %v3261 = vmul.f32 %v3153, %v3260
        %v3262 = vmul.f32 %v3177, %v3260
        %v3263 = vmul.f32 %v3201, %v3260
        %v3264 = vmul.f32 %v3225, %v3260
        %v3265 = vpack.c.bf16 %v3261, %v3261
        %v3266 = vpack.c.bf16 %v3262, %v3262
        %v3267 = vpack.c.bf16 %v3263, %v3263
        %v3268 = vpack.c.bf16 %v3264, %v3264
        %v3273 = vunpack.c.l.b16 %v3265
        %v3274 = vunpack.c.l.b16 %v3266
        %v3275 = vunpack.c.l.b16 %v3267
        %v3276 = vunpack.c.l.b16 %v3268
        %v3277 = vrot.slane %v3273, 4
        %v3278 = vrot.slane %v3274, 3
        %v3279 = vsel %vm2229, %v3278, %v3277
        %v3280 = vrot.slane %v3275, 2
        %v3281 = vsel %vm2232, %v3280, %v3279
        %v3282 = vrot.slane %v3276, 1
        %v3283 = vsel %vm2235, %v3282, %v3281
        %v3284 = vpack.c.b16 %v3283, %v3283
        %3286 = vst [vmem:[#allocation2 + $0xc] sm:$0xc] %v3284
        %v3287 = vperm.slane %v1663, 2
        %v3288 = vmul.f32 %v3161, %v3287
        %v3289 = vmul.f32 %v3185, %v3287
        %v3290 = vmul.f32 %v3209, %v3287
        %v3291 = vmul.f32 %v3233, %v3287
        %v3292 = vpack.c.bf16 %v3288, %v3288
        %v3293 = vpack.c.bf16 %v3289, %v3289
        %v3294 = vpack.c.bf16 %v3290, %v3290
        %v3295 = vpack.c.bf16 %v3291, %v3291
        %v3300 = vunpack.c.l.b16 %v3292
        %v3301 = vunpack.c.l.b16 %v3293
        %v3302 = vunpack.c.l.b16 %v3294
        %v3303 = vunpack.c.l.b16 %v3295
        %v3304 = vrot.slane %v3301, 7
        %v3305 = vsel %vm2199, %v3304, %v3300
        %v3306 = vrot.slane %v3302, 6
        %v3307 = vsel %vm2202, %v3306, %v3305
        %v3308 = vrot.slane %v3303, 5
        %v3309 = vsel %vm2205, %v3308, %v3307
        %v3310 = vpack.c.b16 %v3309, %v3309
        %3312 = vst [vmem:[#allocation2 + $0x10] sm:$0x3] %v3310
        %v3313 = vld [vmem:[%s5] sm:$0xf]
        %v3314 = vld [vmem:[#allocation2] sm:$0xf]
        %v3315 = vld [vmem:[#allocation2 + $0x4] sm:$0xf]
        %v3316 = vld [vmem:[#allocation2 + $0x8] sm:$0xf]
        %v3317 = vld [vmem:[#allocation2 + $0xc] sm:$0xf]
        %v3318 = vld [vmem:[#allocation2 + $0x10] sm:$0x3]
        %v3319 = vld [vmem:[%s6] sm:$0xff]
        %3321 = vset.pattern.permute.xlu0 0
        %3322 = vperm.xlu0 %3321, %v3319
        %v3323 = vpop.permute.xlu0 %3322
        %v3330 = vunpack.c.l.b16 %v3314
        %v3331 = vunpack.c.l.b16 %v3315
        %v3332 = vunpack.c.l.b16 %v3316
        %v3333 = vunpack.c.l.b16 %v3317
        %v3334 = vunpack.c.l.b16 %v3318
        %v3335 = vpack.c.b16 %v3331, %v3330
        %v3336 = vpack.c.b16 %v3333, %v3332
        %v3337 = vpack.c.b16 %v3334, %v3334
        %v3341 = vsel %vm1594, %v3313, 0
        %v3344 = vsel %vm1601, %v3337, 0
        %3346 = vmatpush.bf16.msra.mxu0 0
        %3347 = vmatpush.bf16.msra.mxu0 0
        %3348 = vmatpush.bf16.msra.mxu0 0
        %3349 = vmatpush.bf16.msra.mxu0 0
        %3350 = vmatpush.bf16.msra.mxu0 0
        %3351 = vmatpush.bf16.msra.mxu0 %v3344
        %3352 = vmatpush.bf16.msra.mxu0 %v3336
        %3353 = vmatpush.bf16.msra.mxu0 %v3335
        %3354 = vmatmul.bf16.gmra.mxu0 %v3341
        %v3355 = vpop.f32.mrf.mxu0
        %v3356 = vadd.f32 %v3323, %v3355
        %v3357 = vpop.f32.mrf.mxu0
        %3358 = vdwg.mxu0
        %3359 = vst [vmem:[%s313] sm:$0xff] %v3356
        %s3360 = sand.u32 %s205, 1
        %s3361 = scalar_lea.sflag [#allocation4], %s3360
        %s3362 = sand.u32 %s205, 1
        %s3363 = smul.addr %s3362, 8
        %s3364 = scalar_lea.vmem [#allocation3], %s3363
        // Predicated region
        $region49: #{tpu_custom_call.1} parent=47 // pred_check
          %p3365 = pneg %p215
        $region50: #{tpu_custom_call.1} parent=47 // pred_check_branch
          %3367 = sbr.rel (%p3365) target = $region52
        $region51: #{tpu_custom_call.1} parent=47 // pred_region
          %3369 = vsyncadd %s3361, 0
          %s3370 = smul.addr %s25, 2
          %s3371 = sadd.s32 %s26, %s3370
          %s3372 = smul.addr %s3371, 8
          %s3373 = scalar_lea.hbm %s7, %s3372
          %s3375 = sshll.u32 %s3364, 4
          %s3376 = int_to_ptr.vmem [resolvable:$true] %s3375
          %s3377 = sshll.u32 %s3373, 4
          %s3378 = int_to_ptr.hbm [resolvable:$true] %s3377
          %3380 = dma.vmem_to_hbm [thread:$0]  %s3376, 128, %s3378, %s3361
        $region52: #{tpu_custom_call.1} parent=47 // pred_fallthru
          _
      $region48: #{tpu_custom_call.1} parent=5 // pred_fallthru
        _
      %p3381 = scmp.le.s32.totalorder 2, %s16
      // Predicated region
      $region53: #{tpu_custom_call.1} parent=5 // pred_check
        %p3382 = pneg %p3381
      $region54: #{tpu_custom_call.1} parent=5 // pred_check_branch
        %3384 = sbr.rel (%p3382) target = $region56
      $region55: #{tpu_custom_call.1} parent=5 // pred_region
        %s3385 = ssub.s32 %s16, 2
        // Predicated region
        $region57: #{tpu_custom_call.1} parent=55 // pred_check
          %p3386 = pneg %p221
        $region58: #{tpu_custom_call.1} parent=55 // pred_check_branch
          %3388 = sbr.rel (%p3386) target = $region60
        $region59: #{tpu_custom_call.1} parent=55 // pred_region
          %s3389 = sand.u32 %s206, 1
          %s3390 = scalar_lea.sflag [#allocation4], %s3389
          %s3391 = sand.u32 %s206, 1
          %s3392 = smul.addr %s3391, 8
          %s3393 = scalar_lea.vmem [#allocation3], %s3392
          %3395 = dma.done %s3390, 128
        $region60: #{tpu_custom_call.1} parent=55 // pred_fallthru
          _
      $region56: #{tpu_custom_call.1} parent=5 // pred_fallthru
        _
    $region6: #{tpu_custom_call.1} parent=1 // loop_footer
      %s20 = sadd.s32 1, %s16
    $region7: #{tpu_custom_call.1} parent=1 // loop_footer_branch
      %15 = sbr.rel target = $region3
    $region8: #{tpu_custom_call.1} parent=1 // loop_exit
      _
    %3396 = vsyncpa [#allocation4], 1
    %s3397 = scalar_lea.sflag [#allocation4], 1
    %3398 = vsyncpa %s3397, 1

</llo_original>
